<compile_context>
chip_gen: v5e
topology: v5e:2x2
jax: 0.10.0
libtpu: 0.0.40
codegen_flags: <defaults>
</compile_context>

<pallas_src>
import functools

import jax
import jax.numpy as jnp
from jax.experimental import pallas as pl
from jax.experimental.pallas import tpu as pltpu

EPS = 1e-5
K = 4      # kernel size
S = 2      # stride
P = 1      # padding
LAYER_CHANNELS = [(32, 32), (32, 16), (16, 8), (8, 1)]


# ---------------------------------------------------------------------------
# Weight repacking: ConvTranspose2d(k=4,s=2,p=1) as a 3x3-window phase matmul.
#
# With oy = 2*iy - 1 + ky, output pixel (2my+py, 2mx+px) receives exactly the
# taps  iy = my-1+ty (ty in {0,1,2}),  ky = 3 - 2*ty + py  (valid iff
# 0 <= ty-py <= 1), and likewise along x.  So one matmul over a 3x3 window of
# the 1-padded input produces all four sub-pixel phases at once; the phase-
# major (p*Cout + co) column layout is lane-dense.
# ---------------------------------------------------------------------------
def convt_weight_to_phase_matmul(w_t):
    """(Cin, Cout, 4, 4) torch ConvTranspose2d weight -> (9*Cin, 4*Cout)."""
    cin, cout = w_t.shape[0], w_t.shape[1]
    w_all = jnp.zeros((3, 3, cin, 4, cout), jnp.float32)
    for ty in range(3):
        for tx in range(3):
            for py in range(2):
                for px in range(2):
                    ay, ax = ty - py, tx - px
                    if 0 <= ay <= 1 and 0 <= ax <= 1:
                        ky, kx = 3 - 2 * ty + py, 3 - 2 * tx + px
                        w_all = w_all.at[ty, tx, :, 2 * py + px, :].set(
                            w_t[:, :, ky, kx])
    return w_all.reshape(9 * cin, 4 * cout)


def extract_patches3(x_nhwc):
    """NHWC input -> (B*H*W, 9*C) 3x3-window patches of the 1-padded input."""
    b, h, w, c = x_nhwc.shape
    xp = jnp.pad(x_nhwc, ((0, 0), (1, 1), (1, 1), (0, 0)))
    cols = [xp[:, ty:ty + h, tx:tx + w, :] for ty in range(3) for tx in range(3)]
    return jnp.concatenate(cols, axis=-1).reshape(b * h * w, 9 * c)


def phases_to_nhwc(y, b, h, w, cout):
    """(B*H*W, 4*Cout) phase-major columns -> (B, 2H, 2W, Cout)."""
    y = y.reshape(b, h, w, 2, 2, cout)          # (b, my, mx, py, px, c)
    y = jnp.transpose(y, (0, 1, 3, 2, 4, 5))    # (b, my, py, mx, px, c)
    return y.reshape(b, 2 * h, 2 * w, cout)


# ---------------------------------------------------------------------------
# Pallas kernels
# ---------------------------------------------------------------------------
def _convt_bn_relu_kernel(p_ref, w_ref, g_ref, b_ref, o_ref, *, cout, inv_npix):
    # p_ref: (N, 9*Cin)  bf16     w_ref: (9*Cin, 4*Cout) bf16
    # g_ref, b_ref: (1, 4*Cout)   f32 BN gamma/beta tiled phase-major
    # o_ref: (N, 4*Cout) f32
    c = cout
    y = jnp.dot(p_ref[...], w_ref[...], preferred_element_type=jnp.float32)

    # Training-mode BatchNorm2d: per-channel stats pooled over all rows and
    # all 4 phase column-groups (= every output pixel of the layer).
    # Conv bias is omitted: it cancels exactly against the batch mean.
    csum = jnp.sum(y, axis=0, keepdims=True)                          # (1,4C)
    mean_c = (csum[:, 0:c] + csum[:, c:2 * c]
              + csum[:, 2 * c:3 * c] + csum[:, 3 * c:4 * c]) * inv_npix
    mean = jnp.concatenate([mean_c, mean_c, mean_c, mean_c], axis=1)  # (1,4C)
    d = y - mean
    vsum = jnp.sum(d * d, axis=0, keepdims=True)                      # (1,4C)
    var_c = (vsum[:, 0:c] + vsum[:, c:2 * c]
             + vsum[:, 2 * c:3 * c] + vsum[:, 3 * c:4 * c]) * inv_npix
    var = jnp.concatenate([var_c, var_c, var_c, var_c], axis=1)

    y = d * jax.lax.rsqrt(var + EPS)
    y = y * g_ref[...] + b_ref[...]
    o_ref[...] = jnp.maximum(y, 0.0)


def convt_bn_relu(patches, w_all, gamma_t, beta_t, *, cout, n_out_pix):
    n, kdim = patches.shape
    c4 = w_all.shape[1]
    kernel = functools.partial(_convt_bn_relu_kernel, cout=cout,
                               inv_npix=1.0 / float(n_out_pix))
    return pl.pallas_call(
        kernel,
        out_shape=jax.ShapeDtypeStruct((n, c4), jnp.float32),
        grid=(1,),
        in_specs=[
            pl.BlockSpec((n, kdim), lambda i: (0, 0)),
            pl.BlockSpec((kdim, c4), lambda i: (0, 0)),
            pl.BlockSpec((1, c4), lambda i: (0, 0)),
            pl.BlockSpec((1, c4), lambda i: (0, 0)),
        ],
        out_specs=pl.BlockSpec((n, c4), lambda i: (0, 0)),
        compiler_params=pltpu.CompilerParams(
            dimension_semantics=("arbitrary",),
            vmem_limit_bytes=32 * 1024 * 1024),
    )(patches, w_all, gamma_t, beta_t)


def _convt_sigmoid_kernel(w_ref, p_ref, bias_ref, o_ref):
    # Transposed orientation so the Cout=1 output is lane-dense:
    # w_ref: (4, 9*Cin) bf16   p_ref: (9*Cin, M) bf16   bias_ref: (1, M) f32
    # o_ref: (4, M) f32,  M = B*H_in*W_in, rows = the 4 sub-pixel phases.
    y = jnp.dot(w_ref[...], p_ref[...], preferred_element_type=jnp.float32)
    y = y + bias_ref[...]
    o_ref[...] = jax.nn.sigmoid(y)


def convt_sigmoid(w4, patches_t, bias_row):
    c4, kdim = w4.shape
    m = patches_t.shape[1]
    return pl.pallas_call(
        _convt_sigmoid_kernel,
        out_shape=jax.ShapeDtypeStruct((c4, m), jnp.float32),
        grid=(1,),
        in_specs=[
            pl.BlockSpec((c4, kdim), lambda i: (0, 0)),
            pl.BlockSpec((kdim, m), lambda i: (0, 0)),
            pl.BlockSpec((1, m), lambda i: (0, 0)),
        ],
        out_specs=pl.BlockSpec((c4, m), lambda i: (0, 0)),
        compiler_params=pltpu.CompilerParams(
            dimension_semantics=("arbitrary",),
            vmem_limit_bytes=32 * 1024 * 1024),
    )(w4, patches_t, bias_row)


# ---------------------------------------------------------------------------
# Parameters (deterministic synthetic init) — raw torch-convention tensors are
# kept alongside the repacked kernel-form tensors so we can check against a
# pure-JAX reference.
# ---------------------------------------------------------------------------
def init_params(key):
    params = []
    for li, (cin, cout) in enumerate(LAYER_CHANNELS):
        key, kw, kb, kg, kbt = jax.random.split(key, 5)
        w_t = jax.random.normal(kw, (cin, cout, K, K), jnp.float32) * 0.1
        bias = jax.random.normal(kb, (cout,), jnp.float32) * 0.05
        layer = dict(w_t=w_t, bias=bias)
        w_all = convt_weight_to_phase_matmul(w_t)          # (9*Cin, 4*Cout)
        if li < len(LAYER_CHANNELS) - 1:                   # BN + ReLU layers
            gamma = 1.0 + 0.1 * jax.random.normal(kg, (cout,), jnp.float32)
            beta = 0.05 * jax.random.normal(kbt, (cout,), jnp.float32)
            layer.update(
                gamma=gamma, beta=beta,
                wm=w_all.astype(jnp.bfloat16),
                gamma_t=jnp.tile(gamma.reshape(1, cout), (1, 4)),
                beta_t=jnp.tile(beta.reshape(1, cout), (1, 4)))
        else:                                              # final sigmoid layer
            layer.update(wm4=w_all.T.astype(jnp.bfloat16))  # (4, 9*Cin)
        params.append(layer)
    return params


# ---------------------------------------------------------------------------
# Decoder forward (Pallas) and pure-JAX reference
# ---------------------------------------------------------------------------
@jax.jit
def decoder_forward(x_nchw, params):
    x = jnp.transpose(x_nchw, (0, 2, 3, 1)).astype(jnp.float32)   # NCHW->NHWC
    # Three ConvTranspose + BN + ReLU layers.
    for lp in params[:3]:
        b, h, w, _ = x.shape
        cout = lp["wm"].shape[1] // 4
        patches = extract_patches3(x).astype(jnp.bfloat16)
        y = convt_bn_relu(patches, lp["wm"], lp["gamma_t"], lp["beta_t"],
                          cout=cout, n_out_pix=4 * b * h * w)
        x = phases_to_nhwc(y, b, h, w, cout)
    # Final ConvTranspose + Sigmoid layer (Cout=1), transposed for lane density.
    lp = params[3]
    b, h, w, _ = x.shape
    m = b * h * w
    patches_t = extract_patches3(x).astype(jnp.bfloat16).T        # (9*Cin, M)
    bias_row = jnp.broadcast_to(lp["bias"].reshape(1, 1), (1, m))
    y4 = convt_sigmoid(lp["wm4"], patches_t, bias_row)            # (4, M)
    y4 = jnp.transpose(y4.reshape(2, 2, b, h, w), (2, 3, 0, 4, 1))
    return y4.reshape(b, 1, 2 * h, 2 * w)                         # NCHW


@jax.jit
def reference_decoder(x_nchw, params):
    """Pure-JAX reference mirroring the PyTorch module (training-mode BN)."""
    x = jnp.transpose(x_nchw, (0, 2, 3, 1)).astype(jnp.float32)
    for li, lp in enumerate(params):
        w_hwio = jnp.transpose(jnp.flip(lp["w_t"], (2, 3)), (2, 3, 0, 1))
        y = jax.lax.conv_general_dilated(
            x, w_hwio, window_strides=(1, 1),
            padding=[(K - 1 - P, K - 1 - P)] * 2, lhs_dilation=(S, S),
            dimension_numbers=("NHWC", "HWIO", "NHWC"),
            precision=jax.lax.Precision.HIGHEST)
        y = y + lp["bias"].reshape(1, 1, 1, -1)
        if li < len(params) - 1:
            mean = jnp.mean(y, axis=(0, 1, 2), keepdims=True)
            var = jnp.mean((y - mean) ** 2, axis=(0, 1, 2), keepdims=True)
            y = (y - mean) * jax.lax.rsqrt(var + EPS)
            y = y * lp["gamma"].reshape(1, 1, 1, -1) + lp["beta"].reshape(1, 1, 1, -1)
            y = jnp.maximum(y, 0.0)
        else:
            y = jax.nn.sigmoid(y)
        x = y
    return jnp.transpose(x, (0, 3, 1, 2))


if __name__ == "__main__":
    key = jax.random.PRNGKey(0)
    k_in, k_par = jax.random.split(key)
    params = init_params(k_par)
    # Module spec: input (B, 32, 4, 4) -> output (B, 1, 64, 64). Small batch.
    x = jax.random.normal(k_in, (2, 32, 4, 4), jnp.float32)

    out = jax.block_until_ready(decoder_forward(x, params))
    assert out.shape == (2, 1, 64, 64), out.shape
    assert bool(jnp.all(jnp.isfinite(out)))
    assert bool(jnp.all((out >= 0.0) & (out <= 1.0)))   # sigmoid output range

    ref = jax.block_until_ready(reference_decoder(x, params))
    max_err = float(jnp.max(jnp.abs(out - ref)))
    assert max_err < 5e-2, f"mismatch vs pure-JAX reference: max abs err {max_err}"

    print("KERNEL_OK")
</pallas_src>

<mosaic_0001>
module attributes {stable_mosaic.version = 11 : i64} {
  func.func @_convt_bn_relu_kernel(%arg0: i32, %arg1: memref<32x288xbf16, #tpu.memory_space<vmem>>, %arg2: memref<288x128xbf16, #tpu.memory_space<vmem>>, %arg3: memref<1x128xf32, #tpu.memory_space<vmem>>, %arg4: memref<1x128xf32, #tpu.memory_space<vmem>>, %arg5: memref<32x128xf32, #tpu.memory_space<vmem>>) attributes {dimension_semantics = [#tpu.dimension_semantics<arbitrary>], iteration_bounds = array<i64: 1>, scalar_prefetch = 0 : i64, scratch_operands = 0 : i64, tpu.core_type = #tpu.core_type<tc>, window_params = [{pipeline_mode = #tpu.pipeline_mode<synchronous>, transform_indices = @transform_0, window_bounds = array<i64: 32, 288>}, {pipeline_mode = #tpu.pipeline_mode<synchronous>, transform_indices = @transform_1, window_bounds = array<i64: 288, 128>}, {pipeline_mode = #tpu.pipeline_mode<synchronous>, transform_indices = @transform_2, window_bounds = array<i64: 1, 128>}, {pipeline_mode = #tpu.pipeline_mode<synchronous>, transform_indices = @transform_3, window_bounds = array<i64: 1, 128>}, {pipeline_mode = #tpu.pipeline_mode<synchronous>, transform_indices = @transform_4, window_bounds = array<i64: 32, 128>}]} {
    %c0 = arith.constant 0 : index
    %c0_0 = arith.constant 0 : index
    %0 = vector.load %arg1[%c0, %c0_0] : memref<32x288xbf16, #tpu.memory_space<vmem>>, vector<32x288xbf16>
    %c0_1 = arith.constant 0 : index
    %c0_2 = arith.constant 0 : index
    %1 = vector.load %arg2[%c0_1, %c0_2] : memref<288x128xbf16, #tpu.memory_space<vmem>>, vector<288x128xbf16>
    %cst = arith.constant dense<0.000000e+00> : vector<32x128xf32>
    %2 = tpu.matmul %0, %1, %cst {dimension_numbers = #tpu.dot_dimension_numbers<[1], [0], [0], [1], [0, 0, 1, 1], [], []>} : vector<32x288xbf16>, vector<288x128xbf16>, vector<32x128xf32> -> vector<32x128xf32>
    %cst_3 = arith.constant dense<0.000000e+00> : vector<128xf32>
    %3 = vector.multi_reduction <add>, %2, %cst_3 [0] : vector<32x128xf32> to vector<128xf32>
    %4 = vector.shape_cast %3 : vector<128xf32> to vector<1x128xf32>
    %5 = vector.extract_strided_slice %4 {offsets = [0, 0], sizes = [1, 32], strides = [1, 1]} : vector<1x128xf32> to vector<1x32xf32>
    %6 = vector.extract_strided_slice %4 {offsets = [0, 32], sizes = [1, 32], strides = [1, 1]} : vector<1x128xf32> to vector<1x32xf32>
    %7 = arith.addf %5, %6 : vector<1x32xf32>
    %8 = vector.extract_strided_slice %4 {offsets = [0, 64], sizes = [1, 32], strides = [1, 1]} : vector<1x128xf32> to vector<1x32xf32>
    %9 = arith.addf %7, %8 : vector<1x32xf32>
    %10 = vector.extract_strided_slice %4 {offsets = [0, 96], sizes = [1, 32], strides = [1, 1]} : vector<1x128xf32> to vector<1x32xf32>
    %11 = arith.addf %9, %10 : vector<1x32xf32>
    %cst_4 = arith.constant 7.812500e-03 : f32
    %12 = vector.broadcast %cst_4 : f32 to vector<1x32xf32>
    %13 = arith.mulf %11, %12 : vector<1x32xf32>
    %14 = tpu.concatenate %13, %13, %13, %13 in 1 : vector<1x32xf32>, vector<1x32xf32>, vector<1x32xf32>, vector<1x32xf32> -> vector<1x128xf32>
    %15 = vector.broadcast %14 : vector<1x128xf32> to vector<32x128xf32>
    %16 = arith.subf %2, %15 : vector<32x128xf32>
    %17 = arith.mulf %16, %16 : vector<32x128xf32>
    %cst_5 = arith.constant dense<0.000000e+00> : vector<128xf32>
    %18 = vector.multi_reduction <add>, %17, %cst_5 [0] : vector<32x128xf32> to vector<128xf32>
    %19 = vector.shape_cast %18 : vector<128xf32> to vector<1x128xf32>
    %20 = vector.extract_strided_slice %19 {offsets = [0, 0], sizes = [1, 32], strides = [1, 1]} : vector<1x128xf32> to vector<1x32xf32>
    %21 = vector.extract_strided_slice %19 {offsets = [0, 32], sizes = [1, 32], strides = [1, 1]} : vector<1x128xf32> to vector<1x32xf32>
    %22 = arith.addf %20, %21 : vector<1x32xf32>
    %23 = vector.extract_strided_slice %19 {offsets = [0, 64], sizes = [1, 32], strides = [1, 1]} : vector<1x128xf32> to vector<1x32xf32>
    %24 = arith.addf %22, %23 : vector<1x32xf32>
    %25 = vector.extract_strided_slice %19 {offsets = [0, 96], sizes = [1, 32], strides = [1, 1]} : vector<1x128xf32> to vector<1x32xf32>
    %26 = arith.addf %24, %25 : vector<1x32xf32>
    %cst_6 = arith.constant 7.812500e-03 : f32
    %27 = vector.broadcast %cst_6 : f32 to vector<1x32xf32>
    %28 = arith.mulf %26, %27 : vector<1x32xf32>
    %29 = tpu.concatenate %28, %28, %28, %28 in 1 : vector<1x32xf32>, vector<1x32xf32>, vector<1x32xf32>, vector<1x32xf32> -> vector<1x128xf32>
    %cst_7 = arith.constant 9.99999974E-6 : f32
    %30 = vector.broadcast %cst_7 : f32 to vector<1x128xf32>
    %31 = arith.addf %29, %30 : vector<1x128xf32>
    %32 = math.rsqrt %31 : vector<1x128xf32>
    %33 = vector.broadcast %32 : vector<1x128xf32> to vector<32x128xf32>
    %34 = arith.mulf %16, %33 : vector<32x128xf32>
    %c0_8 = arith.constant 0 : index
    %c0_9 = arith.constant 0 : index
    %35 = vector.load %arg3[%c0_8, %c0_9] : memref<1x128xf32, #tpu.memory_space<vmem>>, vector<1x128xf32>
    %36 = vector.broadcast %35 : vector<1x128xf32> to vector<32x128xf32>
    %37 = arith.mulf %34, %36 : vector<32x128xf32>
    %c0_10 = arith.constant 0 : index
    %c0_11 = arith.constant 0 : index
    %38 = vector.load %arg4[%c0_10, %c0_11] : memref<1x128xf32, #tpu.memory_space<vmem>>, vector<1x128xf32>
    %39 = vector.broadcast %38 : vector<1x128xf32> to vector<32x128xf32>
    %40 = arith.addf %37, %39 : vector<32x128xf32>
    %cst_12 = arith.constant 0.000000e+00 : f32
    %41 = vector.broadcast %cst_12 : f32 to vector<32x128xf32>
    %42 = arith.maximumf %40, %41 : vector<32x128xf32>
    %c0_13 = arith.constant 0 : index
    %c0_14 = arith.constant 0 : index
    %43 = vector.load %arg5[%c0_13, %c0_14] : memref<32x128xf32, #tpu.memory_space<vmem>>, vector<32x128xf32>
    tpu.vector_store %arg5[%c0_13, %c0_14], %42 {strides = array<i32>} : memref<32x128xf32, #tpu.memory_space<vmem>>, vector<32x128xf32>,
    return
  }
  func.func @transform_0(%arg0: i32) -> (i32, i32) {
    %c0_i32 = arith.constant 0 : i32
    %c0_i32_0 = arith.constant 0 : i32
    %c0_i32_1 = arith.constant 0 : i32
    return %c0_i32, %c0_i32_0 : i32, i32
  }
  func.func @transform_1(%arg0: i32) -> (i32, i32) {
    %c0_i32 = arith.constant 0 : i32
    %c0_i32_0 = arith.constant 0 : i32
    %c0_i32_1 = arith.constant 0 : i32
    return %c0_i32, %c0_i32_0 : i32, i32
  }
  func.func @transform_2(%arg0: i32) -> (i32, i32) {
    %c0_i32 = arith.constant 0 : i32
    %c0_i32_0 = arith.constant 0 : i32
    %c0_i32_1 = arith.constant 0 : i32
    return %c0_i32, %c0_i32_0 : i32, i32
  }
  func.func @transform_3(%arg0: i32) -> (i32, i32) {
    %c0_i32 = arith.constant 0 : i32
    %c0_i32_0 = arith.constant 0 : i32
    %c0_i32_1 = arith.constant 0 : i32
    return %c0_i32, %c0_i32_0 : i32, i32
  }
  func.func @transform_4(%arg0: i32) -> (i32, i32) {
    %c0_i32 = arith.constant 0 : i32
    %c0_i32_0 = arith.constant 0 : i32
    %c0_i32_1 = arith.constant 0 : i32
    return %c0_i32, %c0_i32_0 : i32, i32
  }
}

module attributes {stable_mosaic.version = 11 : i64} {
  func.func @_convt_bn_relu_kernel(%arg0: i32, %arg1: memref<128x288xbf16, #tpu.memory_space<vmem>>, %arg2: memref<288x64xbf16, #tpu.memory_space<vmem>>, %arg3: memref<1x64xf32, #tpu.memory_space<vmem>>, %arg4: memref<1x64xf32, #tpu.memory_space<vmem>>, %arg5: memref<128x64xf32, #tpu.memory_space<vmem>>) attributes {dimension_semantics = [#tpu.dimension_semantics<arbitrary>], iteration_bounds = array<i64: 1>, scalar_prefetch = 0 : i64, scratch_operands = 0 : i64, tpu.core_type = #tpu.core_type<tc>, window_params = [{pipeline_mode = #tpu.pipeline_mode<synchronous>, transform_indices = @transform_0, window_bounds = array<i64: 128, 288>}, {pipeline_mode = #tpu.pipeline_mode<synchronous>, transform_indices = @transform_1, window_bounds = array<i64: 288, 64>}, {pipeline_mode = #tpu.pipeline_mode<synchronous>, transform_indices = @transform_2, window_bounds = array<i64: 1, 64>}, {pipeline_mode = #tpu.pipeline_mode<synchronous>, transform_indices = @transform_3, window_bounds = array<i64: 1, 64>}, {pipeline_mode = #tpu.pipeline_mode<synchronous>, transform_indices = @transform_4, window_bounds = array<i64: 128, 64>}]} {
    %c0 = arith.constant 0 : index
    %c0_0 = arith.constant 0 : index
    %0 = vector.load %arg1[%c0, %c0_0] : memref<128x288xbf16, #tpu.memory_space<vmem>>, vector<128x288xbf16>
    %c0_1 = arith.constant 0 : index
    %c0_2 = arith.constant 0 : index
    %1 = vector.load %arg2[%c0_1, %c0_2] : memref<288x64xbf16, #tpu.memory_space<vmem>>, vector<288x64xbf16>
    %cst = arith.constant dense<0.000000e+00> : vector<128x64xf32>
    %2 = tpu.matmul %0, %1, %cst {dimension_numbers = #tpu.dot_dimension_numbers<[1], [0], [0], [1], [0, 0, 1, 1], [], []>} : vector<128x288xbf16>, vector<288x64xbf16>, vector<128x64xf32> -> vector<128x64xf32>
    %cst_3 = arith.constant dense<0.000000e+00> : vector<64xf32>
    %3 = vector.multi_reduction <add>, %2, %cst_3 [0] : vector<128x64xf32> to vector<64xf32>
    %4 = vector.shape_cast %3 : vector<64xf32> to vector<1x64xf32>
    %5 = vector.extract_strided_slice %4 {offsets = [0, 0], sizes = [1, 16], strides = [1, 1]} : vector<1x64xf32> to vector<1x16xf32>
    %6 = vector.extract_strided_slice %4 {offsets = [0, 16], sizes = [1, 16], strides = [1, 1]} : vector<1x64xf32> to vector<1x16xf32>
    %7 = arith.addf %5, %6 : vector<1x16xf32>
    %8 = vector.extract_strided_slice %4 {offsets = [0, 32], sizes = [1, 16], strides = [1, 1]} : vector<1x64xf32> to vector<1x16xf32>
    %9 = arith.addf %7, %8 : vector<1x16xf32>
    %10 = vector.extract_strided_slice %4 {offsets = [0, 48], sizes = [1, 16], strides = [1, 1]} : vector<1x64xf32> to vector<1x16xf32>
    %11 = arith.addf %9, %10 : vector<1x16xf32>
    %cst_4 = arith.constant 0.001953125 : f32
    %12 = vector.broadcast %cst_4 : f32 to vector<1x16xf32>
    %13 = arith.mulf %11, %12 : vector<1x16xf32>
    %14 = tpu.concatenate %13, %13, %13, %13 in 1 : vector<1x16xf32>, vector<1x16xf32>, vector<1x16xf32>, vector<1x16xf32> -> vector<1x64xf32>
    %15 = vector.broadcast %14 : vector<1x64xf32> to vector<128x64xf32>
    %16 = arith.subf %2, %15 : vector<128x64xf32>
    %17 = arith.mulf %16, %16 : vector<128x64xf32>
    %cst_5 = arith.constant dense<0.000000e+00> : vector<64xf32>
    %18 = vector.multi_reduction <add>, %17, %cst_5 [0] : vector<128x64xf32> to vector<64xf32>
    %19 = vector.shape_cast %18 : vector<64xf32> to vector<1x64xf32>
    %20 = vector.extract_strided_slice %19 {offsets = [0, 0], sizes = [1, 16], strides = [1, 1]} : vector<1x64xf32> to vector<1x16xf32>
    %21 = vector.extract_strided_slice %19 {offsets = [0, 16], sizes = [1, 16], strides = [1, 1]} : vector<1x64xf32> to vector<1x16xf32>
    %22 = arith.addf %20, %21 : vector<1x16xf32>
    %23 = vector.extract_strided_slice %19 {offsets = [0, 32], sizes = [1, 16], strides = [1, 1]} : vector<1x64xf32> to vector<1x16xf32>
    %24 = arith.addf %22, %23 : vector<1x16xf32>
    %25 = vector.extract_strided_slice %19 {offsets = [0, 48], sizes = [1, 16], strides = [1, 1]} : vector<1x64xf32> to vector<1x16xf32>
    %26 = arith.addf %24, %25 : vector<1x16xf32>
    %cst_6 = arith.constant 0.001953125 : f32
    %27 = vector.broadcast %cst_6 : f32 to vector<1x16xf32>
    %28 = arith.mulf %26, %27 : vector<1x16xf32>
    %29 = tpu.concatenate %28, %28, %28, %28 in 1 : vector<1x16xf32>, vector<1x16xf32>, vector<1x16xf32>, vector<1x16xf32> -> vector<1x64xf32>
    %cst_7 = arith.constant 9.99999974E-6 : f32
    %30 = vector.broadcast %cst_7 : f32 to vector<1x64xf32>
    %31 = arith.addf %29, %30 : vector<1x64xf32>
    %32 = math.rsqrt %31 : vector<1x64xf32>
    %33 = vector.broadcast %32 : vector<1x64xf32> to vector<128x64xf32>
    %34 = arith.mulf %16, %33 : vector<128x64xf32>
    %c0_8 = arith.constant 0 : index
    %c0_9 = arith.constant 0 : index
    %35 = vector.load %arg3[%c0_8, %c0_9] : memref<1x64xf32, #tpu.memory_space<vmem>>, vector<1x64xf32>
    %36 = vector.broadcast %35 : vector<1x64xf32> to vector<128x64xf32>
    %37 = arith.mulf %34, %36 : vector<128x64xf32>
    %c0_10 = arith.constant 0 : index
    %c0_11 = arith.constant 0 : index
    %38 = vector.load %arg4[%c0_10, %c0_11] : memref<1x64xf32, #tpu.memory_space<vmem>>, vector<1x64xf32>
    %39 = vector.broadcast %38 : vector<1x64xf32> to vector<128x64xf32>
    %40 = arith.addf %37, %39 : vector<128x64xf32>
    %cst_12 = arith.constant 0.000000e+00 : f32
    %41 = vector.broadcast %cst_12 : f32 to vector<128x64xf32>
    %42 = arith.maximumf %40, %41 : vector<128x64xf32>
    %c0_13 = arith.constant 0 : index
    %c0_14 = arith.constant 0 : index
    %43 = vector.load %arg5[%c0_13, %c0_14] : memref<128x64xf32, #tpu.memory_space<vmem>>, vector<128x64xf32>
    tpu.vector_store %arg5[%c0_13, %c0_14], %42 {strides = array<i32>} : memref<128x64xf32, #tpu.memory_space<vmem>>, vector<128x64xf32>,
    return
  }
  func.func @transform_0(%arg0: i32) -> (i32, i32) {
    %c0_i32 = arith.constant 0 : i32
    %c0_i32_0 = arith.constant 0 : i32
    %c0_i32_1 = arith.constant 0 : i32
    return %c0_i32, %c0_i32_0 : i32, i32
  }
  func.func @transform_1(%arg0: i32) -> (i32, i32) {
    %c0_i32 = arith.constant 0 : i32
    %c0_i32_0 = arith.constant 0 : i32
    %c0_i32_1 = arith.constant 0 : i32
    return %c0_i32, %c0_i32_0 : i32, i32
  }
  func.func @transform_2(%arg0: i32) -> (i32, i32) {
    %c0_i32 = arith.constant 0 : i32
    %c0_i32_0 = arith.constant 0 : i32
    %c0_i32_1 = arith.constant 0 : i32
    return %c0_i32, %c0_i32_0 : i32, i32
  }
  func.func @transform_3(%arg0: i32) -> (i32, i32) {
    %c0_i32 = arith.constant 0 : i32
    %c0_i32_0 = arith.constant 0 : i32
    %c0_i32_1 = arith.constant 0 : i32
    return %c0_i32, %c0_i32_0 : i32, i32
  }
  func.func @transform_4(%arg0: i32) -> (i32, i32) {
    %c0_i32 = arith.constant 0 : i32
    %c0_i32_0 = arith.constant 0 : i32
    %c0_i32_1 = arith.constant 0 : i32
    return %c0_i32, %c0_i32_0 : i32, i32
  }
}

module attributes {stable_mosaic.version = 11 : i64} {
  func.func @_convt_bn_relu_kernel(%arg0: i32, %arg1: memref<512x144xbf16, #tpu.memory_space<vmem>>, %arg2: memref<144x32xbf16, #tpu.memory_space<vmem>>, %arg3: memref<1x32xf32, #tpu.memory_space<vmem>>, %arg4: memref<1x32xf32, #tpu.memory_space<vmem>>, %arg5: memref<512x32xf32, #tpu.memory_space<vmem>>) attributes {dimension_semantics = [#tpu.dimension_semantics<arbitrary>], iteration_bounds = array<i64: 1>, scalar_prefetch = 0 : i64, scratch_operands = 0 : i64, tpu.core_type = #tpu.core_type<tc>, window_params = [{pipeline_mode = #tpu.pipeline_mode<synchronous>, transform_indices = @transform_0, window_bounds = array<i64: 512, 144>}, {pipeline_mode = #tpu.pipeline_mode<synchronous>, transform_indices = @transform_1, window_bounds = array<i64: 144, 32>}, {pipeline_mode = #tpu.pipeline_mode<synchronous>, transform_indices = @transform_2, window_bounds = array<i64: 1, 32>}, {pipeline_mode = #tpu.pipeline_mode<synchronous>, transform_indices = @transform_3, window_bounds = array<i64: 1, 32>}, {pipeline_mode = #tpu.pipeline_mode<synchronous>, transform_indices = @transform_4, window_bounds = array<i64: 512, 32>}]} {
    %c0 = arith.constant 0 : index
    %c0_0 = arith.constant 0 : index
    %0 = vector.load %arg1[%c0, %c0_0] : memref<512x144xbf16, #tpu.memory_space<vmem>>, vector<512x144xbf16>
    %c0_1 = arith.constant 0 : index
    %c0_2 = arith.constant 0 : index
    %1 = vector.load %arg2[%c0_1, %c0_2] : memref<144x32xbf16, #tpu.memory_space<vmem>>, vector<144x32xbf16>
    %cst = arith.constant dense<0.000000e+00> : vector<512x32xf32>
    %2 = tpu.matmul %0, %1, %cst {dimension_numbers = #tpu.dot_dimension_numbers<[1], [0], [0], [1], [0, 0, 1, 1], [], []>} : vector<512x144xbf16>, vector<144x32xbf16>, vector<512x32xf32> -> vector<512x32xf32>
    %cst_3 = arith.constant dense<0.000000e+00> : vector<32xf32>
    %3 = vector.multi_reduction <add>, %2, %cst_3 [0] : vector<512x32xf32> to vector<32xf32>
    %4 = vector.shape_cast %3 : vector<32xf32> to vector<1x32xf32>
    %5 = vector.extract_strided_slice %4 {offsets = [0, 0], sizes = [1, 8], strides = [1, 1]} : vector<1x32xf32> to vector<1x8xf32>
    %6 = vector.extract_strided_slice %4 {offsets = [0, 8], sizes = [1, 8], strides = [1, 1]} : vector<1x32xf32> to vector<1x8xf32>
    %7 = arith.addf %5, %6 : vector<1x8xf32>
    %8 = vector.extract_strided_slice %4 {offsets = [0, 16], sizes = [1, 8], strides = [1, 1]} : vector<1x32xf32> to vector<1x8xf32>
    %9 = arith.addf %7, %8 : vector<1x8xf32>
    %10 = vector.extract_strided_slice %4 {offsets = [0, 24], sizes = [1, 8], strides = [1, 1]} : vector<1x32xf32> to vector<1x8xf32>
    %11 = arith.addf %9, %10 : vector<1x8xf32>
    %cst_4 = arith.constant 4.8828125E-4 : f32
    %12 = vector.broadcast %cst_4 : f32 to vector<1x8xf32>
    %13 = arith.mulf %11, %12 : vector<1x8xf32>
    %14 = tpu.concatenate %13, %13, %13, %13 in 1 : vector<1x8xf32>, vector<1x8xf32>, vector<1x8xf32>, vector<1x8xf32> -> vector<1x32xf32>
    %15 = vector.broadcast %14 : vector<1x32xf32> to vector<512x32xf32>
    %16 = arith.subf %2, %15 : vector<512x32xf32>
    %17 = arith.mulf %16, %16 : vector<512x32xf32>
    %cst_5 = arith.constant dense<0.000000e+00> : vector<32xf32>
    %18 = vector.multi_reduction <add>, %17, %cst_5 [0] : vector<512x32xf32> to vector<32xf32>
    %19 = vector.shape_cast %18 : vector<32xf32> to vector<1x32xf32>
    %20 = vector.extract_strided_slice %19 {offsets = [0, 0], sizes = [1, 8], strides = [1, 1]} : vector<1x32xf32> to vector<1x8xf32>
    %21 = vector.extract_strided_slice %19 {offsets = [0, 8], sizes = [1, 8], strides = [1, 1]} : vector<1x32xf32> to vector<1x8xf32>
    %22 = arith.addf %20, %21 : vector<1x8xf32>
    %23 = vector.extract_strided_slice %19 {offsets = [0, 16], sizes = [1, 8], strides = [1, 1]} : vector<1x32xf32> to vector<1x8xf32>
    %24 = arith.addf %22, %23 : vector<1x8xf32>
    %25 = vector.extract_strided_slice %19 {offsets = [0, 24], sizes = [1, 8], strides = [1, 1]} : vector<1x32xf32> to vector<1x8xf32>
    %26 = arith.addf %24, %25 : vector<1x8xf32>
    %cst_6 = arith.constant 4.8828125E-4 : f32
    %27 = vector.broadcast %cst_6 : f32 to vector<1x8xf32>
    %28 = arith.mulf %26, %27 : vector<1x8xf32>
    %29 = tpu.concatenate %28, %28, %28, %28 in 1 : vector<1x8xf32>, vector<1x8xf32>, vector<1x8xf32>, vector<1x8xf32> -> vector<1x32xf32>
    %cst_7 = arith.constant 9.99999974E-6 : f32
    %30 = vector.broadcast %cst_7 : f32 to vector<1x32xf32>
    %31 = arith.addf %29, %30 : vector<1x32xf32>
    %32 = math.rsqrt %31 : vector<1x32xf32>
    %33 = vector.broadcast %32 : vector<1x32xf32> to vector<512x32xf32>
    %34 = arith.mulf %16, %33 : vector<512x32xf32>
    %c0_8 = arith.constant 0 : index
    %c0_9 = arith.constant 0 : index
    %35 = vector.load %arg3[%c0_8, %c0_9] : memref<1x32xf32, #tpu.memory_space<vmem>>, vector<1x32xf32>
    %36 = vector.broadcast %35 : vector<1x32xf32> to vector<512x32xf32>
    %37 = arith.mulf %34, %36 : vector<512x32xf32>
    %c0_10 = arith.constant 0 : index
    %c0_11 = arith.constant 0 : index
    %38 = vector.load %arg4[%c0_10, %c0_11] : memref<1x32xf32, #tpu.memory_space<vmem>>, vector<1x32xf32>
    %39 = vector.broadcast %38 : vector<1x32xf32> to vector<512x32xf32>
    %40 = arith.addf %37, %39 : vector<512x32xf32>
    %cst_12 = arith.constant 0.000000e+00 : f32
    %41 = vector.broadcast %cst_12 : f32 to vector<512x32xf32>
    %42 = arith.maximumf %40, %41 : vector<512x32xf32>
    %c0_13 = arith.constant 0 : index
    %c0_14 = arith.constant 0 : index
    %43 = vector.load %arg5[%c0_13, %c0_14] : memref<512x32xf32, #tpu.memory_space<vmem>>, vector<512x32xf32>
    tpu.vector_store %arg5[%c0_13, %c0_14], %42 {strides = array<i32>} : memref<512x32xf32, #tpu.memory_space<vmem>>, vector<512x32xf32>,
    return
  }
  func.func @transform_0(%arg0: i32) -> (i32, i32) {
    %c0_i32 = arith.constant 0 : i32
    %c0_i32_0 = arith.constant 0 : i32
    %c0_i32_1 = arith.constant 0 : i32
    return %c0_i32, %c0_i32_0 : i32, i32
  }
  func.func @transform_1(%arg0: i32) -> (i32, i32) {
    %c0_i32 = arith.constant 0 : i32
    %c0_i32_0 = arith.constant 0 : i32
    %c0_i32_1 = arith.constant 0 : i32
    return %c0_i32, %c0_i32_0 : i32, i32
  }
  func.func @transform_2(%arg0: i32) -> (i32, i32) {
    %c0_i32 = arith.constant 0 : i32
    %c0_i32_0 = arith.constant 0 : i32
    %c0_i32_1 = arith.constant 0 : i32
    return %c0_i32, %c0_i32_0 : i32, i32
  }
  func.func @transform_3(%arg0: i32) -> (i32, i32) {
    %c0_i32 = arith.constant 0 : i32
    %c0_i32_0 = arith.constant 0 : i32
    %c0_i32_1 = arith.constant 0 : i32
    return %c0_i32, %c0_i32_0 : i32, i32
  }
  func.func @transform_4(%arg0: i32) -> (i32, i32) {
    %c0_i32 = arith.constant 0 : i32
    %c0_i32_0 = arith.constant 0 : i32
    %c0_i32_1 = arith.constant 0 : i32
    return %c0_i32, %c0_i32_0 : i32, i32
  }
}

module attributes {stable_mosaic.version = 11 : i64} {
  func.func @_convt_sigmoid_kernel(%arg0: i32, %arg1: memref<4x72xbf16, #tpu.memory_space<vmem>>, %arg2: memref<72x2048xbf16, #tpu.memory_space<vmem>>, %arg3: memref<1x2048xf32, #tpu.memory_space<vmem>>, %arg4: memref<4x2048xf32, #tpu.memory_space<vmem>>) attributes {dimension_semantics = [#tpu.dimension_semantics<arbitrary>], iteration_bounds = array<i64: 1>, scalar_prefetch = 0 : i64, scratch_operands = 0 : i64, tpu.core_type = #tpu.core_type<tc>, window_params = [{pipeline_mode = #tpu.pipeline_mode<synchronous>, transform_indices = @transform_0, window_bounds = array<i64: 4, 72>}, {pipeline_mode = #tpu.pipeline_mode<synchronous>, transform_indices = @transform_1, window_bounds = array<i64: 72, 2048>}, {pipeline_mode = #tpu.pipeline_mode<synchronous>, transform_indices = @transform_2, window_bounds = array<i64: 1, 2048>}, {pipeline_mode = #tpu.pipeline_mode<synchronous>, transform_indices = @transform_3, window_bounds = array<i64: 4, 2048>}]} {
    %c0 = arith.constant 0 : index
    %c0_0 = arith.constant 0 : index
    %0 = vector.load %arg1[%c0, %c0_0] : memref<4x72xbf16, #tpu.memory_space<vmem>>, vector<4x72xbf16>
    %c0_1 = arith.constant 0 : index
    %c0_2 = arith.constant 0 : index
    %1 = vector.load %arg2[%c0_1, %c0_2] : memref<72x2048xbf16, #tpu.memory_space<vmem>>, vector<72x2048xbf16>
    %cst = arith.constant dense<0.000000e+00> : vector<4x2048xf32>
    %2 = tpu.matmul %0, %1, %cst {dimension_numbers = #tpu.dot_dimension_numbers<[1], [0], [0], [1], [0, 0, 1, 1], [], []>} : vector<4x72xbf16>, vector<72x2048xbf16>, vector<4x2048xf32> -> vector<4x2048xf32>
    %c0_3 = arith.constant 0 : index
    %c0_4 = arith.constant 0 : index
    %3 = vector.load %arg3[%c0_3, %c0_4] : memref<1x2048xf32, #tpu.memory_space<vmem>>, vector<1x2048xf32>
    %4 = vector.broadcast %3 : vector<1x2048xf32> to vector<4x2048xf32>
    %5 = arith.addf %2, %4 : vector<4x2048xf32>
    %6 = arith.negf %5 : vector<4x2048xf32>
    %7 = math.exp %6 : vector<4x2048xf32>
    %cst_5 = arith.constant 1.000000e+00 : f32
    %8 = vector.broadcast %cst_5 : f32 to vector<4x2048xf32>
    %9 = arith.addf %8, %7 : vector<4x2048xf32>
    %10 = arith.divf %8, %9 : vector<4x2048xf32>
    %c0_6 = arith.constant 0 : index
    %c0_7 = arith.constant 0 : index
    %11 = vector.load %arg4[%c0_6, %c0_7] : memref<4x2048xf32, #tpu.memory_space<vmem>>, vector<4x2048xf32>
    tpu.vector_store %arg4[%c0_6, %c0_7], %10 {strides = array<i32>} : memref<4x2048xf32, #tpu.memory_space<vmem>>, vector<4x2048xf32>,
    return
  }
  func.func @transform_0(%arg0: i32) -> (i32, i32) {
    %c0_i32 = arith.constant 0 : i32
    %c0_i32_0 = arith.constant 0 : i32
    %c0_i32_1 = arith.constant 0 : i32
    return %c0_i32, %c0_i32_0 : i32, i32
  }
  func.func @transform_1(%arg0: i32) -> (i32, i32) {
    %c0_i32 = arith.constant 0 : i32
    %c0_i32_0 = arith.constant 0 : i32
    %c0_i32_1 = arith.constant 0 : i32
    return %c0_i32, %c0_i32_0 : i32, i32
  }
  func.func @transform_2(%arg0: i32) -> (i32, i32) {
    %c0_i32 = arith.constant 0 : i32
    %c0_i32_0 = arith.constant 0 : i32
    %c0_i32_1 = arith.constant 0 : i32
    return %c0_i32, %c0_i32_0 : i32, i32
  }
  func.func @transform_3(%arg0: i32) -> (i32, i32) {
    %c0_i32 = arith.constant 0 : i32
    %c0_i32_0 = arith.constant 0 : i32
    %c0_i32_1 = arith.constant 0 : i32
    return %c0_i32, %c0_i32_0 : i32, i32
  }
}

</mosaic_0001>

<llo_original>
// kernel: decoder_forward.4
$region0: #{decoder_forward.4}
  #allocation0 [shape = 'u32[]', space=smem, size = 0x4, offset = 0x4, fixed_abs, tag = 'smem constant byte address 0x4 - core index']
  #allocation1 [shape = 'u32[72,128]{1,0:T(1,128)}', space=vmem, size = 0x9000, scoped, tag = 'internal scratch']
  %s0 = inlined_call_operand.vmem [shape: bf16[32,288], index: 0, kind: input, shape index: {}]
  %s1 = inlined_call_operand.hbm [shape: bf16[288,128], index: 1, kind: input, shape index: {}]
  %s2 = inlined_call_operand.hbm [shape: f32[1,128], index: 2, kind: input, shape index: {}]
  %s3 = inlined_call_operand.hbm [shape: f32[1,128], index: 3, kind: input, shape index: {}]
  %s4 = inlined_call_operand.vmem [shape: f32[32,128], index: 4, kind: output, shape index: {}]
  %s5 = sld [smem:[#allocation0]]
  $region38: #{decoder_forward.4} parent=0
    _
  %s7 = ssub.s32 1, %s5
  %s8 = scalar_select 0, %s7, %s5
  $region1: #{decoder_forward.4} parent=0
    #allocation2 [shape = 'u8[73728]{0}', space=vmem, size = 0x12000, scoped, tag = 'input window, operand 1, single buffered']
    #allocation3 [shape = 's32[1]{0}', space=sflag, size = 0x4, scoped, tag = 'scoped memory for decoder_forward.4']
    #allocation4 [shape = 'u8[512]{0}', space=vmem, size = 0x400, scoped, tag = 'input window, operand 2, single buffered']
    #allocation5 [shape = 's32[1]{0}', space=sflag, size = 0x4, scoped, tag = 'scoped memory for decoder_forward.4']
    #allocation6 [shape = 'u8[512]{0}', space=vmem, size = 0x400, scoped, tag = 'input window, operand 3, single buffered']
    %9 = vsyncpa [#allocation3], 0
    %10 = vsyncpa [#allocation5], 0
    // Predicated region
    $region2: #{decoder_forward.4} parent=1 // pred_check
      _
    $region3: #{decoder_forward.4} parent=1 // pred_check_branch
      %12 = sbr.rel (0) target = $region5
    $region4: #{decoder_forward.4} parent=1 // pred_region
      _
    $region5: #{decoder_forward.4} parent=1 // pred_fallthru
      _
    // Predicated region
    $region6: #{decoder_forward.4} parent=1 // pred_check
      _
    $region7: #{decoder_forward.4} parent=1 // pred_check_branch
      %14 = sbr.rel (0) target = $region9
    $region8: #{decoder_forward.4} parent=1 // pred_region
      %16 = vsyncadd [#allocation3], 0
      %s17 = sshll.u32 %s1, 4
      %s18 = int_to_ptr.hbm [resolvable:$true] %s17
      %s19 = sshll.u32 [#allocation2], 4
      %s20 = int_to_ptr.vmem [resolvable:$true] %s19
      %25 = dma.hbm_to_vmem [thread:$0]  %s18, 2304, %s20, [#allocation3], 64, 64, 4
    $region9: #{decoder_forward.4} parent=1 // pred_fallthru
      _
    // Predicated region
    $region10: #{decoder_forward.4} parent=1 // pred_check
      _
    $region11: #{decoder_forward.4} parent=1 // pred_check_branch
      %27 = sbr.rel (0) target = $region13
    $region12: #{decoder_forward.4} parent=1 // pred_region
      %29 = vsyncadd [#allocation5], 0
      %s31 = sshll.u32 %s2, 4
      %s32 = int_to_ptr.hbm [resolvable:$true] %s31
      %s33 = sshll.u32 [#allocation4], 4
      %s34 = int_to_ptr.vmem [resolvable:$true] %s33
      %36 = dma.hbm_to_vmem [thread:$0]  %s32, 16, %s34, [#allocation5]
    $region13: #{decoder_forward.4} parent=1 // pred_fallthru
      _
    // Predicated region
    $region14: #{decoder_forward.4} parent=1 // pred_check
      _
    $region15: #{decoder_forward.4} parent=1 // pred_check_branch
      %38 = sbr.rel (0) target = $region17
    $region16: #{decoder_forward.4} parent=1 // pred_region
      %40 = vsyncadd [#allocation5], 0
      %s42 = sshll.u32 %s3, 4
      %s43 = int_to_ptr.hbm [resolvable:$true] %s42
      %s44 = sshll.u32 [#allocation6], 4
      %s45 = int_to_ptr.vmem [resolvable:$true] %s44
      %47 = dma.hbm_to_vmem [thread:$0]  %s43, 16, %s45, [#allocation5]
    $region17: #{decoder_forward.4} parent=1 // pred_fallthru
      _
    // Predicated region
    $region18: #{decoder_forward.4} parent=1 // pred_check
      _
    $region19: #{decoder_forward.4} parent=1 // pred_check_branch
      %49 = sbr.rel (0) target = $region21
    $region20: #{decoder_forward.4} parent=1 // pred_region
      %51 = dma.done [#allocation3], 2304
    $region21: #{decoder_forward.4} parent=1 // pred_fallthru
      _
    // Predicated region
    $region22: #{decoder_forward.4} parent=1 // pred_check
      _
    $region23: #{decoder_forward.4} parent=1 // pred_check_branch
      %53 = sbr.rel (0) target = $region25
    $region24: #{decoder_forward.4} parent=1 // pred_region
      %55 = dma.done [#allocation5], 16
    $region25: #{decoder_forward.4} parent=1 // pred_fallthru
      _
    // Predicated region
    $region26: #{decoder_forward.4} parent=1 // pred_check
      _
    $region27: #{decoder_forward.4} parent=1 // pred_check_branch
      %57 = sbr.rel (0) target = $region29
    $region28: #{decoder_forward.4} parent=1 // pred_region
      %59 = dma.done [#allocation5], 16
    $region29: #{decoder_forward.4} parent=1 // pred_fallthru
      _
    %v61 = vld [vmem:[%s0] sm:$0xff]
    %v62 = vld [vmem:[%s0 + $0x8] sm:$0xf]
    %v63 = vld [vmem:[%s0 + $0xc] sm:$0xff]
    %v64 = vld [vmem:[%s0 + $0x14] sm:$0xf]
    %v65 = vld [vmem:[%s0 + $0x18] sm:$0xff]
    %v66 = vld [vmem:[%s0 + $0x20] sm:$0xf]
    %v67 = vld [vmem:[%s0 + $0x24] sm:$0xff]
    %v68 = vld [vmem:[%s0 + $0x2c] sm:$0xf]
    %v69 = vld [vmem:[#allocation2] sm:$0xf]
    %v70 = vld [vmem:[#allocation2 + $0x4] sm:$0xf]
    %v71 = vld [vmem:[#allocation2 + $0x8] sm:$0xf]
    %v72 = vld [vmem:[#allocation2 + $0xc] sm:$0xf]
    %v73 = vld [vmem:[#allocation2 + $0x10] sm:$0xf]
    %v74 = vld [vmem:[#allocation2 + $0x14] sm:$0xf]
    %v75 = vld [vmem:[#allocation2 + $0x18] sm:$0xf]
    %v76 = vld [vmem:[#allocation2 + $0x1c] sm:$0xf]
    %v77 = vld [vmem:[#allocation2 + $0x20] sm:$0xf]
    %v78 = vld [vmem:[#allocation2 + $0x24] sm:$0xf]
    %v79 = vld [vmem:[#allocation2 + $0x28] sm:$0xf]
    %v80 = vld [vmem:[#allocation2 + $0x2c] sm:$0xf]
    %v81 = vld [vmem:[#allocation2 + $0x30] sm:$0xf]
    %v82 = vld [vmem:[#allocation2 + $0x34] sm:$0xf]
    %v83 = vld [vmem:[#allocation2 + $0x38] sm:$0xf]
    %v84 = vld [vmem:[#allocation2 + $0x3c] sm:$0xf]
    %v85 = vld [vmem:[#allocation2 + $0x40] sm:$0xf]
    %v86 = vld [vmem:[#allocation2 + $0x44] sm:$0xf]
    %v87 = vld [vmem:[#allocation2 + $0x48] sm:$0xf]
    %v88 = vld [vmem:[#allocation2 + $0x4c] sm:$0xf]
    %v89 = vld [vmem:[#allocation2 + $0x50] sm:$0xf]
    %v90 = vld [vmem:[#allocation2 + $0x54] sm:$0xf]
    %v91 = vld [vmem:[#allocation2 + $0x58] sm:$0xf]
    %v92 = vld [vmem:[#allocation2 + $0x5c] sm:$0xf]
    %v93 = vld [vmem:[#allocation2 + $0x60] sm:$0xf]
    %v94 = vld [vmem:[#allocation2 + $0x64] sm:$0xf]
    %v95 = vld [vmem:[#allocation2 + $0x68] sm:$0xf]
    %v96 = vld [vmem:[#allocation2 + $0x6c] sm:$0xf]
    %v97 = vld [vmem:[#allocation2 + $0x70] sm:$0xf]
    %v98 = vld [vmem:[#allocation2 + $0x74] sm:$0xf]
    %v99 = vld [vmem:[#allocation2 + $0x78] sm:$0xf]
    %v100 = vld [vmem:[#allocation2 + $0x7c] sm:$0xf]
    %v101 = vld [vmem:[#allocation2 + $0x80] sm:$0xf]
    %v102 = vld [vmem:[#allocation2 + $0x84] sm:$0xf]
    %v103 = vld [vmem:[#allocation2 + $0x88] sm:$0xf]
    %v104 = vld [vmem:[#allocation2 + $0x8c] sm:$0xf]
    %v113 = vunpack.c.l.b16 %v61
    %v114 = vunpack.c.h.b16 %v61
    %v115 = vunpack.c.l.b16 %v62
    %v116 = vunpack.c.l.b16 %v63
    %v117 = vunpack.c.h.b16 %v63
    %v118 = vunpack.c.l.b16 %v64
    %v119 = vunpack.c.l.b16 %v65
    %v120 = vunpack.c.h.b16 %v65
    %v121 = vunpack.c.l.b16 %v66
    %v122 = vunpack.c.l.b16 %v67
    %v123 = vunpack.c.h.b16 %v67
    %v124 = vunpack.c.l.b16 %v68
    %v125 = vpack.c.b16 %v116, %v113
    %v126 = vpack.c.b16 %v117, %v114
    %v127 = vpack.c.b16 %v118, %v115
    %v128 = vpack.c.b16 %v122, %v119
    %v129 = vpack.c.b16 %v123, %v120
    %v130 = vpack.c.b16 %v124, %v121
    %v171 = vunpack.c.l.b16 %v69
    %v172 = vunpack.c.l.b16 %v70
    %v173 = vunpack.c.l.b16 %v71
    %v174 = vunpack.c.l.b16 %v72
    %v175 = vunpack.c.l.b16 %v73
    %v176 = vunpack.c.l.b16 %v74
    %v177 = vunpack.c.l.b16 %v75
    %v178 = vunpack.c.l.b16 %v76
    %v179 = vunpack.c.l.b16 %v77
    %v180 = vunpack.c.l.b16 %v78
    %v181 = vunpack.c.l.b16 %v79
    %v182 = vunpack.c.l.b16 %v80
    %v183 = vunpack.c.l.b16 %v81
    %v184 = vunpack.c.l.b16 %v82
    %v185 = vunpack.c.l.b16 %v83
    %v186 = vunpack.c.l.b16 %v84
    %v187 = vunpack.c.l.b16 %v85
    %v188 = vunpack.c.l.b16 %v86
    %v189 = vunpack.c.l.b16 %v87
    %v190 = vunpack.c.l.b16 %v88
    %v191 = vunpack.c.l.b16 %v89
    %v192 = vunpack.c.l.b16 %v90
    %v193 = vunpack.c.l.b16 %v91
    %v194 = vunpack.c.l.b16 %v92
    %v195 = vunpack.c.l.b16 %v93
    %v196 = vunpack.c.l.b16 %v94
    %v197 = vunpack.c.l.b16 %v95
    %v198 = vunpack.c.l.b16 %v96
    %v199 = vunpack.c.l.b16 %v97
    %v200 = vunpack.c.l.b16 %v98
    %v201 = vunpack.c.l.b16 %v99
    %v202 = vunpack.c.l.b16 %v100
    %v203 = vunpack.c.l.b16 %v101
    %v204 = vunpack.c.l.b16 %v102
    %v205 = vunpack.c.l.b16 %v103
    %v206 = vunpack.c.l.b16 %v104
    %v207 = vpack.c.b16 %v172, %v171
    %v208 = vpack.c.b16 %v174, %v173
    %v209 = vpack.c.b16 %v176, %v175
    %v210 = vpack.c.b16 %v178, %v177
    %v211 = vpack.c.b16 %v180, %v179
    %v212 = vpack.c.b16 %v182, %v181
    %v213 = vpack.c.b16 %v184, %v183
    %v214 = vpack.c.b16 %v186, %v185
    %v215 = vpack.c.b16 %v188, %v187
    %v216 = vpack.c.b16 %v190, %v189
    %v217 = vpack.c.b16 %v192, %v191
    %v218 = vpack.c.b16 %v194, %v193
    %v219 = vpack.c.b16 %v196, %v195
    %v220 = vpack.c.b16 %v198, %v197
    %v221 = vpack.c.b16 %v200, %v199
    %v222 = vpack.c.b16 %v202, %v201
    %v223 = vpack.c.b16 %v204, %v203
    %v224 = vpack.c.b16 %v206, %v205
    %vm243 = vcmask 261120
    %v245 = vsel %vm243, %v127, 0
    %v248 = vsel %vm243, %v130, 0
    %250 = vmatpush.bf16.msra.mxu0 %v214
    %251 = vmatpush.bf16.msra.mxu0 %v213
    %252 = vmatpush.bf16.msra.mxu0 %v212
    %253 = vmatpush.bf16.msra.mxu0 %v211
    %254 = vmatpush.bf16.msra.mxu0 %v210
    %255 = vmatpush.bf16.msra.mxu0 %v209
    %256 = vmatpush.bf16.msra.mxu0 %v208
    %257 = vmatpush.bf16.msra.mxu0 %v207
    %258 = vmatmul.bf16.gmra.mxu0 %v125
    %v259 = vpop.f32.mrf.mxu0
    %v260 = vadd.f32 0.0, %v259
    %v261 = vpop.f32.mrf.mxu0
    %v262 = vadd.f32 0.0, %v261
    %263 = vmatmul.bf16.gmra.mxu0 %v128
    %v264 = vpop.f32.mrf.mxu0
    %v265 = vadd.f32 0.0, %v264
    %v266 = vpop.f32.mrf.mxu0
    %v267 = vadd.f32 0.0, %v266
    %268 = vdwg.mxu0
    %269 = vmatpush.bf16.msra.mxu0 %v222
    %270 = vmatpush.bf16.msra.mxu0 %v221
    %271 = vmatpush.bf16.msra.mxu0 %v220
    %272 = vmatpush.bf16.msra.mxu0 %v219
    %273 = vmatpush.bf16.msra.mxu0 %v218
    %274 = vmatpush.bf16.msra.mxu0 %v217
    %275 = vmatpush.bf16.msra.mxu0 %v216
    %276 = vmatpush.bf16.msra.mxu0 %v215
    %277 = vmatmul.bf16.gmra.mxu0 %v126
    %v278 = vpop.f32.mrf.mxu0
    %v279 = vadd.f32 %v260, %v278
    %v280 = vpop.f32.mrf.mxu0
    %v281 = vadd.f32 %v262, %v280
    %282 = vmatmul.bf16.gmra.mxu0 %v129
    %v283 = vpop.f32.mrf.mxu0
    %v284 = vadd.f32 %v265, %v283
    %v285 = vpop.f32.mrf.mxu0
    %v286 = vadd.f32 %v267, %v285
    %287 = vdwg.mxu0
    %288 = vmatpush.bf16.msra.mxu0 0
    %289 = vmatpush.bf16.msra.mxu0 0
    %290 = vmatpush.bf16.msra.mxu0 0
    %291 = vmatpush.bf16.msra.mxu0 0
    %292 = vmatpush.bf16.msra.mxu0 0
    %293 = vmatpush.bf16.msra.mxu0 0
    %294 = vmatpush.bf16.msra.mxu0 %v224
    %295 = vmatpush.bf16.msra.mxu0 %v223
    %296 = vmatmul.bf16.gmra.mxu0 %v245
    %v297 = vpop.f32.mrf.mxu0
    %v298 = vadd.f32 %v279, %v297
    %v299 = vpop.f32.mrf.mxu0
    %v300 = vadd.f32 %v281, %v299
    %301 = vmatmul.bf16.gmra.mxu0 %v248
    %v302 = vpop.f32.mrf.mxu0
    %v303 = vadd.f32 %v284, %v302
    %v304 = vpop.f32.mrf.mxu0
    %v305 = vadd.f32 %v286, %v304
    %306 = vdwg.mxu0
    %v307 = vadd.f32 %v298, %v300
    %v308 = vadd.f32 %v307, %v303
    %v309 = vadd.f32 %v308, %v305
    %v310 = vrot.slane %v309, 4
    %v311 = vadd.f32 %v309, %v310
    %v312 = vrot.slane %v311, 2
    %v313 = vadd.f32 %v311, %v312
    %v314 = vrot.slane %v313, 1
    %v315 = vadd.f32 %v313, %v314
    %317 = vrot.lane.b32.xlu0 %v315, 96
    %v318 = vpop.permute.xlu0 %317
    %v320 = vadd.f32 %v315, %v318
    %321 = vrot.lane.b32.xlu0 %v315, 64
    %v322 = vpop.permute.xlu0 %321
    %v324 = vadd.f32 %v320, %v322
    %325 = vrot.lane.b32.xlu0 %v315, 32
    %v326 = vpop.permute.xlu0 %325
    %v328 = vadd.f32 %v324, %v326
    %v329 = vmul.f32 %v328, 0.0078125
    %331 = vrot.lane.b32.xlu0 %v329, 32
    %v332 = vpop.permute.xlu0 %331
    %334 = vrot.lane.b32.xlu0 %v329, 64
    %v335 = vpop.permute.xlu0 %334
    %337 = vrot.lane.b32.xlu0 %v329, 96
    %v338 = vpop.permute.xlu0 %337
    %v340 = vsel %vm243, %v329, %v332
    %vm341 = vcmask 523264
    %v342 = vsel %vm341, %v340, %v335
    %vm343 = vcmask 785408
    %v344 = vsel %vm343, %v342, %v338
    %v345 = vperm.slane %v344, 0
    %v346 = vsub.f32 %v298, %v345
    %v347 = vsub.f32 %v300, %v345
    %v348 = vsub.f32 %v303, %v345
    %v349 = vsub.f32 %v305, %v345
    %v350 = vmul.f32 %v346, %v346
    %v351 = vmul.f32 %v347, %v347
    %v352 = vmul.f32 %v348, %v348
    %v353 = vmul.f32 %v349, %v349
    %v354 = vadd.f32 %v350, %v351
    %v355 = vadd.f32 %v354, %v352
    %v356 = vadd.f32 %v355, %v353
    %v357 = vrot.slane %v356, 4
    %v358 = vadd.f32 %v356, %v357
    %v359 = vrot.slane %v358, 2
    %v360 = vadd.f32 %v358, %v359
    %v361 = vrot.slane %v360, 1
    %v362 = vadd.f32 %v360, %v361
    %364 = vrot.lane.b32.xlu0 %v362, 96
    %v365 = vpop.permute.xlu0 %364
    %v367 = vadd.f32 %v362, %v365
    %368 = vrot.lane.b32.xlu0 %v362, 64
    %v369 = vpop.permute.xlu0 %368
    %v371 = vadd.f32 %v367, %v369
    %372 = vrot.lane.b32.xlu0 %v362, 32
    %v373 = vpop.permute.xlu0 %372
    %v375 = vadd.f32 %v371, %v373
    %v376 = vmul.f32 %v375, 0.0078125
    %378 = vrot.lane.b32.xlu0 %v376, 32
    %v379 = vpop.permute.xlu0 %378
    %381 = vrot.lane.b32.xlu0 %v376, 64
    %v382 = vpop.permute.xlu0 %381
    %384 = vrot.lane.b32.xlu0 %v376, 96
    %v385 = vpop.permute.xlu0 %384
    %v387 = vsel %vm243, %v376, %v379
    %v388 = vsel %vm341, %v387, %v382
    %v389 = vsel %vm343, %v388, %v385
    %v390 = vadd.f32 %v389, 1e-05
    %v391 = vrsqrt.pop %v390
    %v392 = vmul.f32 %v391, %v390
    %v393 = vmul.f32 %v392, %v391
    %v394 = vmul.f32 0.5, %v393
    %v395 = vsub.f32 1.5, %v394
    %v396 = vmul.f32 %v391, %v395
    %vm397 = vweird.f32 %v390
    %vm398 = vweird.f32 %v391
    %vm399 = vmor %vm397, %vm398
    %v400 = vsel %vm399, %v391, %v396
    %v401 = vperm.slane %v400, 0
    %v402 = vmul.f32 %v346, %v401
    %v403 = vmul.f32 %v347, %v401
    %v404 = vmul.f32 %v348, %v401
    %v405 = vmul.f32 %v349, %v401
    %v406 = vld [vmem:[#allocation4] sm:$0x1]
    %v408 = vperm.slane %v406, 0
    %v410 = vmul.f32 %v402, %v408
    %v411 = vmul.f32 %v403, %v408
    %v412 = vmul.f32 %v404, %v408
    %v413 = vmul.f32 %v405, %v408
    %v414 = vld [vmem:[#allocation6] sm:$0x1]
    %v416 = vperm.slane %v414, 0
    %v418 = vadd.f32 %v410, %v416
    %v419 = vadd.f32 %v411, %v416
    %v420 = vadd.f32 %v412, %v416
    %v421 = vadd.f32 %v413, %v416
    %v422 = vmax.f32 %v418, 0.0
    %v423 = vmax.f32 %v419, 0.0
    %v424 = vmax.f32 %v420, 0.0
    %v425 = vmax.f32 %v421, 0.0
    %426 = vst [vmem:[%s4] sm:$0xff] %v422
    %427 = vst [vmem:[%s4 + $0x8] sm:$0xff] %v423
    %428 = vst [vmem:[%s4 + $0x10] sm:$0xff] %v424
    %429 = vst [vmem:[%s4 + $0x18] sm:$0xff] %v425
    // Predicated region
    $region30: #{decoder_forward.4} parent=1 // pred_check
      _
    $region31: #{decoder_forward.4} parent=1 // pred_check_branch
      %431 = sbr.rel (0) target = $region33
    $region32: #{decoder_forward.4} parent=1 // pred_region
      _
    $region33: #{decoder_forward.4} parent=1 // pred_fallthru
      _
    // Predicated region
    $region34: #{decoder_forward.4} parent=1 // pred_check
      _
    $region35: #{decoder_forward.4} parent=1 // pred_check_branch
      %433 = sbr.rel (0) target = $region37
    $region36: #{decoder_forward.4} parent=1 // pred_region
      _
    $region37: #{decoder_forward.4} parent=1 // pred_fallthru
      _
    %434 = vsyncpa [#allocation3], 1
    %435 = vsyncpa [#allocation5], 1

// kernel: decoder_forward.5
$region0: #{decoder_forward.5}
  #allocation0 [shape = 'u32[]', space=smem, size = 0x4, offset = 0x4, fixed_abs, tag = 'smem constant byte address 0x4 - core index']
  #allocation1 [shape = 'u32[72,128]{1,0:T(1,128)}', space=vmem, size = 0x9000, scoped, tag = 'internal scratch']
  %s0 = inlined_call_operand.vmem [shape: bf16[128,288], index: 0, kind: input, shape index: {}]
  %s1 = inlined_call_operand.vmem [shape: bf16[288,64], index: 1, kind: input, shape index: {}]
  %s2 = inlined_call_operand.hbm [shape: f32[1,64], index: 2, kind: input, shape index: {}]
  %s3 = inlined_call_operand.hbm [shape: f32[1,64], index: 3, kind: input, shape index: {}]
  %s4 = inlined_call_operand.vmem [shape: f32[128,64], index: 4, kind: output, shape index: {}]
  %s5 = sld [smem:[#allocation0]]
  $region34: #{decoder_forward.5} parent=0
    _
  %s7 = ssub.s32 1, %s5
  %s8 = scalar_select 0, %s7, %s5
  $region1: #{decoder_forward.5} parent=0
    #allocation2 [shape = 'u8[512]{0}', space=vmem, size = 0x400, scoped, tag = 'input window, operand 2, single buffered']
    #allocation3 [shape = 's32[1]{0}', space=sflag, size = 0x4, scoped, tag = 'scoped memory for decoder_forward.5']
    #allocation4 [shape = 'u8[512]{0}', space=vmem, size = 0x400, scoped, tag = 'input window, operand 3, single buffered']
    #allocation5 [shape = 's32[1]{0}', space=sflag, size = 0x4, scoped, tag = 'scoped memory for decoder_forward.5']
    %9 = vsyncpa [#allocation3], 0
    %10 = vsyncpa [#allocation5], 0
    // Predicated region
    $region2: #{decoder_forward.5} parent=1 // pred_check
      _
    $region3: #{decoder_forward.5} parent=1 // pred_check_branch
      %12 = sbr.rel (0) target = $region5
    $region4: #{decoder_forward.5} parent=1 // pred_region
      _
    $region5: #{decoder_forward.5} parent=1 // pred_fallthru
      _
    // Predicated region
    $region6: #{decoder_forward.5} parent=1 // pred_check
      _
    $region7: #{decoder_forward.5} parent=1 // pred_check_branch
      %14 = sbr.rel (0) target = $region9
    $region8: #{decoder_forward.5} parent=1 // pred_region
      _
    $region9: #{decoder_forward.5} parent=1 // pred_fallthru
      _
    // Predicated region
    $region10: #{decoder_forward.5} parent=1 // pred_check
      _
    $region11: #{decoder_forward.5} parent=1 // pred_check_branch
      %16 = sbr.rel (0) target = $region13
    $region12: #{decoder_forward.5} parent=1 // pred_region
      %18 = vsyncadd [#allocation3], 0
      %s20 = sshll.u32 %s2, 4
      %s21 = int_to_ptr.hbm [resolvable:$true] %s20
      %s22 = sshll.u32 [#allocation2], 4
      %s23 = int_to_ptr.vmem [resolvable:$true] %s22
      %25 = dma.hbm_to_vmem [thread:$0]  %s21, 16, %s23, [#allocation3]
    $region13: #{decoder_forward.5} parent=1 // pred_fallthru
      _
    // Predicated region
    $region14: #{decoder_forward.5} parent=1 // pred_check
      _
    $region15: #{decoder_forward.5} parent=1 // pred_check_branch
      %27 = sbr.rel (0) target = $region17
    $region16: #{decoder_forward.5} parent=1 // pred_region
      %29 = vsyncadd [#allocation5], 0
      %s31 = sshll.u32 %s3, 4
      %s32 = int_to_ptr.hbm [resolvable:$true] %s31
      %s33 = sshll.u32 [#allocation4], 4
      %s34 = int_to_ptr.vmem [resolvable:$true] %s33
      %36 = dma.hbm_to_vmem [thread:$0]  %s32, 16, %s34, [#allocation5]
    $region17: #{decoder_forward.5} parent=1 // pred_fallthru
      _
    // Predicated region
    $region18: #{decoder_forward.5} parent=1 // pred_check
      _
    $region19: #{decoder_forward.5} parent=1 // pred_check_branch
      %38 = sbr.rel (0) target = $region21
    $region20: #{decoder_forward.5} parent=1 // pred_region
      %40 = dma.done [#allocation3], 16
    $region21: #{decoder_forward.5} parent=1 // pred_fallthru
      _
    // Predicated region
    $region22: #{decoder_forward.5} parent=1 // pred_check
      _
    $region23: #{decoder_forward.5} parent=1 // pred_check_branch
      %42 = sbr.rel (0) target = $region25
    $region24: #{decoder_forward.5} parent=1 // pred_region
      %44 = dma.done [#allocation5], 16
    $region25: #{decoder_forward.5} parent=1 // pred_fallthru
      _
    %v46 = vld [vmem:[%s0] sm:$0xff]
    %v47 = vld [vmem:[%s0 + $0x8] sm:$0xf]
    %v48 = vld [vmem:[%s0 + $0xc] sm:$0xff]
    %v49 = vld [vmem:[%s0 + $0x14] sm:$0xf]
    %v50 = vld [vmem:[%s0 + $0x18] sm:$0xff]
    %v51 = vld [vmem:[%s0 + $0x20] sm:$0xf]
    %v52 = vld [vmem:[%s0 + $0x24] sm:$0xff]
    %v53 = vld [vmem:[%s0 + $0x2c] sm:$0xf]
    %v54 = vld [vmem:[%s0 + $0x30] sm:$0xff]
    %v55 = vld [vmem:[%s0 + $0x38] sm:$0xf]
    %v56 = vld [vmem:[%s0 + $0x3c] sm:$0xff]
    %v57 = vld [vmem:[%s0 + $0x44] sm:$0xf]
    %v58 = vld [vmem:[%s0 + $0x48] sm:$0xff]
    %v59 = vld [vmem:[%s0 + $0x50] sm:$0xf]
    %v60 = vld [vmem:[%s0 + $0x54] sm:$0xff]
    %v61 = vld [vmem:[%s0 + $0x5c] sm:$0xf]
    %v62 = vld [vmem:[%s0 + $0x60] sm:$0xff]
    %v63 = vld [vmem:[%s0 + $0x68] sm:$0xf]
    %v64 = vld [vmem:[%s0 + $0x6c] sm:$0xff]
    %v65 = vld [vmem:[%s0 + $0x74] sm:$0xf]
    %v66 = vld [vmem:[%s0 + $0x78] sm:$0xff]
    %v67 = vld [vmem:[%s0 + $0x80] sm:$0xf]
    %v68 = vld [vmem:[%s0 + $0x84] sm:$0xff]
    %v69 = vld [vmem:[%s0 + $0x8c] sm:$0xf]
    %v70 = vld [vmem:[%s0 + $0x90] sm:$0xff]
    %v71 = vld [vmem:[%s0 + $0x98] sm:$0xf]
    %v72 = vld [vmem:[%s0 + $0x9c] sm:$0xff]
    %v73 = vld [vmem:[%s0 + $0xa4] sm:$0xf]
    %v74 = vld [vmem:[%s0 + $0xa8] sm:$0xff]
    %v75 = vld [vmem:[%s0 + $0xb0] sm:$0xf]
    %v76 = vld [vmem:[%s0 + $0xb4] sm:$0xff]
    %v77 = vld [vmem:[%s0 + $0xbc] sm:$0xf]
    %v78 = vld [vmem:[%s1] sm:$0xf]
    %v79 = vld [vmem:[%s1 + $0x4] sm:$0xf]
    %v80 = vld [vmem:[%s1 + $0x8] sm:$0xf]
    %v81 = vld [vmem:[%s1 + $0xc] sm:$0xf]
    %v82 = vld [vmem:[%s1 + $0x10] sm:$0xf]
    %v83 = vld [vmem:[%s1 + $0x14] sm:$0xf]
    %v84 = vld [vmem:[%s1 + $0x18] sm:$0xf]
    %v85 = vld [vmem:[%s1 + $0x1c] sm:$0xf]
    %v86 = vld [vmem:[%s1 + $0x20] sm:$0xf]
    %v87 = vld [vmem:[%s1 + $0x24] sm:$0xf]
    %v88 = vld [vmem:[%s1 + $0x28] sm:$0xf]
    %v89 = vld [vmem:[%s1 + $0x2c] sm:$0xf]
    %v90 = vld [vmem:[%s1 + $0x30] sm:$0xf]
    %v91 = vld [vmem:[%s1 + $0x34] sm:$0xf]
    %v92 = vld [vmem:[%s1 + $0x38] sm:$0xf]
    %v93 = vld [vmem:[%s1 + $0x3c] sm:$0xf]
    %v94 = vld [vmem:[%s1 + $0x40] sm:$0xf]
    %v95 = vld [vmem:[%s1 + $0x44] sm:$0xf]
    %v96 = vld [vmem:[%s1 + $0x48] sm:$0xf]
    %v97 = vld [vmem:[%s1 + $0x4c] sm:$0xf]
    %v98 = vld [vmem:[%s1 + $0x50] sm:$0xf]
    %v99 = vld [vmem:[%s1 + $0x54] sm:$0xf]
    %v100 = vld [vmem:[%s1 + $0x58] sm:$0xf]
    %v101 = vld [vmem:[%s1 + $0x5c] sm:$0xf]
    %v102 = vld [vmem:[%s1 + $0x60] sm:$0xf]
    %v103 = vld [vmem:[%s1 + $0x64] sm:$0xf]
    %v104 = vld [vmem:[%s1 + $0x68] sm:$0xf]
    %v105 = vld [vmem:[%s1 + $0x6c] sm:$0xf]
    %v106 = vld [vmem:[%s1 + $0x70] sm:$0xf]
    %v107 = vld [vmem:[%s1 + $0x74] sm:$0xf]
    %v108 = vld [vmem:[%s1 + $0x78] sm:$0xf]
    %v109 = vld [vmem:[%s1 + $0x7c] sm:$0xf]
    %v110 = vld [vmem:[%s1 + $0x80] sm:$0xf]
    %v111 = vld [vmem:[%s1 + $0x84] sm:$0xf]
    %v112 = vld [vmem:[%s1 + $0x88] sm:$0xf]
    %v113 = vld [vmem:[%s1 + $0x8c] sm:$0xf]
    %v146 = vunpack.c.l.b16 %v46
    %v147 = vunpack.c.h.b16 %v46
    %v148 = vunpack.c.l.b16 %v47
    %v149 = vunpack.c.l.b16 %v48
    %v150 = vunpack.c.h.b16 %v48
    %v151 = vunpack.c.l.b16 %v49
    %v152 = vunpack.c.l.b16 %v50
    %v153 = vunpack.c.h.b16 %v50
    %v154 = vunpack.c.l.b16 %v51
    %v155 = vunpack.c.l.b16 %v52
    %v156 = vunpack.c.h.b16 %v52
    %v157 = vunpack.c.l.b16 %v53
    %v158 = vunpack.c.l.b16 %v54
    %v159 = vunpack.c.h.b16 %v54
    %v160 = vunpack.c.l.b16 %v55
    %v161 = vunpack.c.l.b16 %v56
    %v162 = vunpack.c.h.b16 %v56
    %v163 = vunpack.c.l.b16 %v57
    %v164 = vunpack.c.l.b16 %v58
    %v165 = vunpack.c.h.b16 %v58
    %v166 = vunpack.c.l.b16 %v59
    %v167 = vunpack.c.l.b16 %v60
    %v168 = vunpack.c.h.b16 %v60
    %v169 = vunpack.c.l.b16 %v61
    %v170 = vunpack.c.l.b16 %v62
    %v171 = vunpack.c.h.b16 %v62
    %v172 = vunpack.c.l.b16 %v63
    %v173 = vunpack.c.l.b16 %v64
    %v174 = vunpack.c.h.b16 %v64
    %v175 = vunpack.c.l.b16 %v65
    %v176 = vunpack.c.l.b16 %v66
    %v177 = vunpack.c.h.b16 %v66
    %v178 = vunpack.c.l.b16 %v67
    %v179 = vunpack.c.l.b16 %v68
    %v180 = vunpack.c.h.b16 %v68
    %v181 = vunpack.c.l.b16 %v69
    %v182 = vunpack.c.l.b16 %v70
    %v183 = vunpack.c.h.b16 %v70
    %v184 = vunpack.c.l.b16 %v71
    %v185 = vunpack.c.l.b16 %v72
    %v186 = vunpack.c.h.b16 %v72
    %v187 = vunpack.c.l.b16 %v73
    %v188 = vunpack.c.l.b16 %v74
    %v189 = vunpack.c.h.b16 %v74
    %v190 = vunpack.c.l.b16 %v75
    %v191 = vunpack.c.l.b16 %v76
    %v192 = vunpack.c.h.b16 %v76
    %v193 = vunpack.c.l.b16 %v77
    %v194 = vpack.c.b16 %v149, %v146
    %v195 = vpack.c.b16 %v150, %v147
    %v196 = vpack.c.b16 %v151, %v148
    %v197 = vpack.c.b16 %v155, %v152
    %v198 = vpack.c.b16 %v156, %v153
    %v199 = vpack.c.b16 %v157, %v154
    %v200 = vpack.c.b16 %v161, %v158
    %v201 = vpack.c.b16 %v162, %v159
    %v202 = vpack.c.b16 %v163, %v160
    %v203 = vpack.c.b16 %v167, %v164
    %v204 = vpack.c.b16 %v168, %v165
    %v205 = vpack.c.b16 %v169, %v166
    %v206 = vpack.c.b16 %v173, %v170
    %v207 = vpack.c.b16 %v174, %v171
    %v208 = vpack.c.b16 %v175, %v172
    %v209 = vpack.c.b16 %v179, %v176
    %v210 = vpack.c.b16 %v180, %v177
    %v211 = vpack.c.b16 %v181, %v178
    %v212 = vpack.c.b16 %v185, %v182
    %v213 = vpack.c.b16 %v186, %v183
    %v214 = vpack.c.b16 %v187, %v184
    %v215 = vpack.c.b16 %v191, %v188
    %v216 = vpack.c.b16 %v192, %v189
    %v217 = vpack.c.b16 %v193, %v190
    %v270 = vunpack.c.l.b16 %v78
    %v271 = vunpack.c.l.b16 %v79
    %v272 = vunpack.c.l.b16 %v80
    %v273 = vunpack.c.l.b16 %v81
    %v274 = vunpack.c.l.b16 %v82
    %v275 = vunpack.c.l.b16 %v83
    %v276 = vunpack.c.l.b16 %v84
    %v277 = vunpack.c.l.b16 %v85
    %v278 = vunpack.c.l.b16 %v86
    %v279 = vunpack.c.l.b16 %v87
    %v280 = vunpack.c.l.b16 %v88
    %v281 = vunpack.c.l.b16 %v89
    %v282 = vunpack.c.l.b16 %v90
    %v283 = vunpack.c.l.b16 %v91
    %v284 = vunpack.c.l.b16 %v92
    %v285 = vunpack.c.l.b16 %v93
    %v286 = vunpack.c.l.b16 %v94
    %v287 = vunpack.c.l.b16 %v95
    %v288 = vunpack.c.l.b16 %v96
    %v289 = vunpack.c.l.b16 %v97
    %v290 = vunpack.c.l.b16 %v98
    %v291 = vunpack.c.l.b16 %v99
    %v292 = vunpack.c.l.b16 %v100
    %v293 = vunpack.c.l.b16 %v101
    %v294 = vunpack.c.l.b16 %v102
    %v295 = vunpack.c.l.b16 %v103
    %v296 = vunpack.c.l.b16 %v104
    %v297 = vunpack.c.l.b16 %v105
    %v298 = vunpack.c.l.b16 %v106
    %v299 = vunpack.c.l.b16 %v107
    %v300 = vunpack.c.l.b16 %v108
    %v301 = vunpack.c.l.b16 %v109
    %v302 = vunpack.c.l.b16 %v110
    %v303 = vunpack.c.l.b16 %v111
    %v304 = vunpack.c.l.b16 %v112
    %v305 = vunpack.c.l.b16 %v113
    %v306 = vpack.c.b16 %v271, %v270
    %v307 = vpack.c.b16 %v273, %v272
    %v308 = vpack.c.b16 %v275, %v274
    %v309 = vpack.c.b16 %v277, %v276
    %v310 = vpack.c.b16 %v279, %v278
    %v311 = vpack.c.b16 %v281, %v280
    %v312 = vpack.c.b16 %v283, %v282
    %v313 = vpack.c.b16 %v285, %v284
    %v314 = vpack.c.b16 %v287, %v286
    %v315 = vpack.c.b16 %v289, %v288
    %v316 = vpack.c.b16 %v291, %v290
    %v317 = vpack.c.b16 %v293, %v292
    %v318 = vpack.c.b16 %v295, %v294
    %v319 = vpack.c.b16 %v297, %v296
    %v320 = vpack.c.b16 %v299, %v298
    %v321 = vpack.c.b16 %v301, %v300
    %v322 = vpack.c.b16 %v303, %v302
    %v323 = vpack.c.b16 %v305, %v304
    %vm342 = vcmask 261120
    %v344 = vsel %vm342, %v196, 0
    %v347 = vsel %vm342, %v199, 0
    %v350 = vsel %vm342, %v202, 0
    %v353 = vsel %vm342, %v205, 0
    %v356 = vsel %vm342, %v208, 0
    %v359 = vsel %vm342, %v211, 0
    %v362 = vsel %vm342, %v214, 0
    %v365 = vsel %vm342, %v217, 0
    %367 = vmatpush.bf16.msra.mxu0 %v313
    %368 = vmatpush.bf16.msra.mxu0 %v312
    %369 = vmatpush.bf16.msra.mxu0 %v311
    %370 = vmatpush.bf16.msra.mxu0 %v310
    %371 = vmatpush.bf16.msra.mxu0 %v309
    %372 = vmatpush.bf16.msra.mxu0 %v308
    %373 = vmatpush.bf16.msra.mxu0 %v307
    %374 = vmatpush.bf16.msra.mxu0 %v306
    %375 = vmatmul.bf16.gmra.mxu0 %v194
    %v376 = vpop.f32.mrf.mxu0
    %v377 = vadd.f32 0.0, %v376
    %v378 = vpop.f32.mrf.mxu0
    %v379 = vadd.f32 0.0, %v378
    %380 = vmatmul.bf16.gmra.mxu0 %v197
    %v381 = vpop.f32.mrf.mxu0
    %v382 = vadd.f32 0.0, %v381
    %v383 = vpop.f32.mrf.mxu0
    %v384 = vadd.f32 0.0, %v383
    %385 = vmatmul.bf16.gmra.mxu0 %v200
    %v386 = vpop.f32.mrf.mxu0
    %v387 = vadd.f32 0.0, %v386
    %v388 = vpop.f32.mrf.mxu0
    %v389 = vadd.f32 0.0, %v388
    %390 = vmatmul.bf16.gmra.mxu0 %v203
    %v391 = vpop.f32.mrf.mxu0
    %v392 = vadd.f32 0.0, %v391
    %v393 = vpop.f32.mrf.mxu0
    %v394 = vadd.f32 0.0, %v393
    %395 = vmatmul.bf16.gmra.mxu0 %v206
    %v396 = vpop.f32.mrf.mxu0
    %v397 = vadd.f32 0.0, %v396
    %v398 = vpop.f32.mrf.mxu0
    %v399 = vadd.f32 0.0, %v398
    %400 = vmatmul.bf16.gmra.mxu0 %v209
    %v401 = vpop.f32.mrf.mxu0
    %v402 = vadd.f32 0.0, %v401
    %v403 = vpop.f32.mrf.mxu0
    %v404 = vadd.f32 0.0, %v403
    %405 = vmatmul.bf16.gmra.mxu0 %v212
    %v406 = vpop.f32.mrf.mxu0
    %v407 = vadd.f32 0.0, %v406
    %v408 = vpop.f32.mrf.mxu0
    %v409 = vadd.f32 0.0, %v408
    %410 = vmatmul.bf16.gmra.mxu0 %v215
    %v411 = vpop.f32.mrf.mxu0
    %v412 = vadd.f32 0.0, %v411
    %v413 = vpop.f32.mrf.mxu0
    %v414 = vadd.f32 0.0, %v413
    %415 = vdwg.mxu0
    %416 = vmatpush.bf16.msra.mxu0 %v321
    %417 = vmatpush.bf16.msra.mxu0 %v320
    %418 = vmatpush.bf16.msra.mxu0 %v319
    %419 = vmatpush.bf16.msra.mxu0 %v318
    %420 = vmatpush.bf16.msra.mxu0 %v317
    %421 = vmatpush.bf16.msra.mxu0 %v316
    %422 = vmatpush.bf16.msra.mxu0 %v315
    %423 = vmatpush.bf16.msra.mxu0 %v314
    %424 = vmatmul.bf16.gmra.mxu0 %v195
    %v425 = vpop.f32.mrf.mxu0
    %v426 = vadd.f32 %v377, %v425
    %v427 = vpop.f32.mrf.mxu0
    %v428 = vadd.f32 %v379, %v427
    %429 = vmatmul.bf16.gmra.mxu0 %v198
    %v430 = vpop.f32.mrf.mxu0
    %v431 = vadd.f32 %v382, %v430
    %v432 = vpop.f32.mrf.mxu0
    %v433 = vadd.f32 %v384, %v432
    %434 = vmatmul.bf16.gmra.mxu0 %v201
    %v435 = vpop.f32.mrf.mxu0
    %v436 = vadd.f32 %v387, %v435
    %v437 = vpop.f32.mrf.mxu0
    %v438 = vadd.f32 %v389, %v437
    %439 = vmatmul.bf16.gmra.mxu0 %v204
    %v440 = vpop.f32.mrf.mxu0
    %v441 = vadd.f32 %v392, %v440
    %v442 = vpop.f32.mrf.mxu0
    %v443 = vadd.f32 %v394, %v442
    %444 = vmatmul.bf16.gmra.mxu0 %v207
    %v445 = vpop.f32.mrf.mxu0
    %v446 = vadd.f32 %v397, %v445
    %v447 = vpop.f32.mrf.mxu0
    %v448 = vadd.f32 %v399, %v447
    %449 = vmatmul.bf16.gmra.mxu0 %v210
    %v450 = vpop.f32.mrf.mxu0
    %v451 = vadd.f32 %v402, %v450
    %v452 = vpop.f32.mrf.mxu0
    %v453 = vadd.f32 %v404, %v452
    %454 = vmatmul.bf16.gmra.mxu0 %v213
    %v455 = vpop.f32.mrf.mxu0
    %v456 = vadd.f32 %v407, %v455
    %v457 = vpop.f32.mrf.mxu0
    %v458 = vadd.f32 %v409, %v457
    %459 = vmatmul.bf16.gmra.mxu0 %v216
    %v460 = vpop.f32.mrf.mxu0
    %v461 = vadd.f32 %v412, %v460
    %v462 = vpop.f32.mrf.mxu0
    %v463 = vadd.f32 %v414, %v462
    %464 = vdwg.mxu0
    %465 = vmatpush.bf16.msra.mxu0 0
    %466 = vmatpush.bf16.msra.mxu0 0
    %467 = vmatpush.bf16.msra.mxu0 0
    %468 = vmatpush.bf16.msra.mxu0 0
    %469 = vmatpush.bf16.msra.mxu0 0
    %470 = vmatpush.bf16.msra.mxu0 0
    %471 = vmatpush.bf16.msra.mxu0 %v323
    %472 = vmatpush.bf16.msra.mxu0 %v322
    %473 = vmatmul.bf16.gmra.mxu0 %v344
    %v474 = vpop.f32.mrf.mxu0
    %v475 = vadd.f32 %v426, %v474
    %v476 = vpop.f32.mrf.mxu0
    %v477 = vadd.f32 %v428, %v476
    %478 = vmatmul.bf16.gmra.mxu0 %v347
    %v479 = vpop.f32.mrf.mxu0
    %v480 = vadd.f32 %v431, %v479
    %v481 = vpop.f32.mrf.mxu0
    %v482 = vadd.f32 %v433, %v481
    %483 = vmatmul.bf16.gmra.mxu0 %v350
    %v484 = vpop.f32.mrf.mxu0
    %v485 = vadd.f32 %v436, %v484
    %v486 = vpop.f32.mrf.mxu0
    %v487 = vadd.f32 %v438, %v486
    %488 = vmatmul.bf16.gmra.mxu0 %v353
    %v489 = vpop.f32.mrf.mxu0
    %v490 = vadd.f32 %v441, %v489
    %v491 = vpop.f32.mrf.mxu0
    %v492 = vadd.f32 %v443, %v491
    %493 = vmatmul.bf16.gmra.mxu0 %v356
    %v494 = vpop.f32.mrf.mxu0
    %v495 = vadd.f32 %v446, %v494
    %v496 = vpop.f32.mrf.mxu0
    %v497 = vadd.f32 %v448, %v496
    %498 = vmatmul.bf16.gmra.mxu0 %v359
    %v499 = vpop.f32.mrf.mxu0
    %v500 = vadd.f32 %v451, %v499
    %v501 = vpop.f32.mrf.mxu0
    %v502 = vadd.f32 %v453, %v501
    %503 = vmatmul.bf16.gmra.mxu0 %v362
    %v504 = vpop.f32.mrf.mxu0
    %v505 = vadd.f32 %v456, %v504
    %v506 = vpop.f32.mrf.mxu0
    %v507 = vadd.f32 %v458, %v506
    %508 = vmatmul.bf16.gmra.mxu0 %v365
    %v509 = vpop.f32.mrf.mxu0
    %v510 = vadd.f32 %v461, %v509
    %v511 = vpop.f32.mrf.mxu0
    %v512 = vadd.f32 %v463, %v511
    %513 = vdwg.mxu0
    %vm514 = vcmask 523264
    %v515 = vsel %vm514, %v475, 0.0
    %v516 = vsel %vm514, %v477, 0.0
    %v517 = vadd.f32 %v515, %v516
    %v518 = vsel %vm514, %v480, 0.0
    %v519 = vadd.f32 %v517, %v518
    %v520 = vsel %vm514, %v482, 0.0
    %v521 = vadd.f32 %v519, %v520
    %v522 = vsel %vm514, %v485, 0.0
    %v523 = vadd.f32 %v521, %v522
    %v524 = vsel %vm514, %v487, 0.0
    %v525 = vadd.f32 %v523, %v524
    %v526 = vsel %vm514, %v490, 0.0
    %v527 = vadd.f32 %v525, %v526
    %v528 = vsel %vm514, %v492, 0.0
    %v529 = vadd.f32 %v527, %v528
    %v530 = vsel %vm514, %v495, 0.0
    %v531 = vadd.f32 %v529, %v530
    %v532 = vsel %vm514, %v497, 0.0
    %v533 = vadd.f32 %v531, %v532
    %v534 = vsel %vm514, %v500, 0.0
    %v535 = vadd.f32 %v533, %v534
    %v536 = vsel %vm514, %v502, 0.0
    %v537 = vadd.f32 %v535, %v536
    %v538 = vsel %vm514, %v505, 0.0
    %v539 = vadd.f32 %v537, %v538
    %v540 = vsel %vm514, %v507, 0.0
    %v541 = vadd.f32 %v539, %v540
    %v542 = vsel %vm514, %v510, 0.0
    %v543 = vadd.f32 %v541, %v542
    %v544 = vsel %vm514, %v512, 0.0
    %v545 = vadd.f32 %v543, %v544
    %v546 = vrot.slane %v545, 4
    %v547 = vadd.f32 %v545, %v546
    %v548 = vrot.slane %v547, 2
    %v549 = vadd.f32 %v547, %v548
    %v550 = vrot.slane %v549, 1
    %v551 = vadd.f32 %v549, %v550
    %553 = vrot.lane.b32.xlu0 %v551, 112
    %v554 = vpop.permute.xlu0 %553
    %v556 = vadd.f32 %v551, %v554
    %557 = vrot.lane.b32.xlu0 %v551, 96
    %v558 = vpop.permute.xlu0 %557
    %v560 = vadd.f32 %v556, %v558
    %561 = vrot.lane.b32.xlu0 %v551, 80
    %v562 = vpop.permute.xlu0 %561
    %v564 = vadd.f32 %v560, %v562
    %v565 = vmul.f32 %v564, 0.001953125
    %567 = vrot.lane.b32.xlu0 %v565, 16
    %v568 = vpop.permute.xlu0 %567
    %570 = vrot.lane.b32.xlu0 %v565, 32
    %v571 = vpop.permute.xlu0 %570
    %573 = vrot.lane.b32.xlu0 %v565, 48
    %v574 = vpop.permute.xlu0 %573
    %vm576 = vcmask 130048
    %v577 = vsel %vm576, %v565, %v568
    %v578 = vsel %vm342, %v577, %v571
    %vm579 = vcmask 392192
    %v580 = vsel %vm579, %v578, %v574
    %v581 = vperm.slane %v580, 0
    %v582 = vsub.f32 %v475, %v581
    %v583 = vsub.f32 %v477, %v581
    %v584 = vsub.f32 %v480, %v581
    %v585 = vsub.f32 %v482, %v581
    %v586 = vsub.f32 %v485, %v581
    %v587 = vsub.f32 %v487, %v581
    %v588 = vsub.f32 %v490, %v581
    %v589 = vsub.f32 %v492, %v581
    %v590 = vsub.f32 %v495, %v581
    %v591 = vsub.f32 %v497, %v581
    %v592 = vsub.f32 %v500, %v581
    %v593 = vsub.f32 %v502, %v581
    %v594 = vsub.f32 %v505, %v581
    %v595 = vsub.f32 %v507, %v581
    %v596 = vsub.f32 %v510, %v581
    %v597 = vsub.f32 %v512, %v581
    %v598 = vmul.f32 %v582, %v582
    %v599 = vmul.f32 %v583, %v583
    %v600 = vmul.f32 %v584, %v584
    %v601 = vmul.f32 %v585, %v585
    %v602 = vmul.f32 %v586, %v586
    %v603 = vmul.f32 %v587, %v587
    %v604 = vmul.f32 %v588, %v588
    %v605 = vmul.f32 %v589, %v589
    %v606 = vmul.f32 %v590, %v590
    %v607 = vmul.f32 %v591, %v591
    %v608 = vmul.f32 %v592, %v592
    %v609 = vmul.f32 %v593, %v593
    %v610 = vmul.f32 %v594, %v594
    %v611 = vmul.f32 %v595, %v595
    %v612 = vmul.f32 %v596, %v596
    %v613 = vmul.f32 %v597, %v597
    %v614 = vsel %vm514, %v598, 0.0
    %v615 = vsel %vm514, %v599, 0.0
    %v616 = vadd.f32 %v614, %v615
    %v617 = vsel %vm514, %v600, 0.0
    %v618 = vadd.f32 %v616, %v617
    %v619 = vsel %vm514, %v601, 0.0
    %v620 = vadd.f32 %v618, %v619
    %v621 = vsel %vm514, %v602, 0.0
    %v622 = vadd.f32 %v620, %v621
    %v623 = vsel %vm514, %v603, 0.0
    %v624 = vadd.f32 %v622, %v623
    %v625 = vsel %vm514, %v604, 0.0
    %v626 = vadd.f32 %v624, %v625
    %v627 = vsel %vm514, %v605, 0.0
    %v628 = vadd.f32 %v626, %v627
    %v629 = vsel %vm514, %v606, 0.0
    %v630 = vadd.f32 %v628, %v629
    %v631 = vsel %vm514, %v607, 0.0
    %v632 = vadd.f32 %v630, %v631
    %v633 = vsel %vm514, %v608, 0.0
    %v634 = vadd.f32 %v632, %v633
    %v635 = vsel %vm514, %v609, 0.0
    %v636 = vadd.f32 %v634, %v635
    %v637 = vsel %vm514, %v610, 0.0
    %v638 = vadd.f32 %v636, %v637
    %v639 = vsel %vm514, %v611, 0.0
    %v640 = vadd.f32 %v638, %v639
    %v641 = vsel %vm514, %v612, 0.0
    %v642 = vadd.f32 %v640, %v641
    %v643 = vsel %vm514, %v613, 0.0
    %v644 = vadd.f32 %v642, %v643
    %v645 = vrot.slane %v644, 4
    %v646 = vadd.f32 %v644, %v645
    %v647 = vrot.slane %v646, 2
    %v648 = vadd.f32 %v646, %v647
    %v649 = vrot.slane %v648, 1
    %v650 = vadd.f32 %v648, %v649
    %652 = vrot.lane.b32.xlu0 %v650, 112
    %v653 = vpop.permute.xlu0 %652
    %v655 = vadd.f32 %v650, %v653
    %656 = vrot.lane.b32.xlu0 %v650, 96
    %v657 = vpop.permute.xlu0 %656
    %v659 = vadd.f32 %v655, %v657
    %660 = vrot.lane.b32.xlu0 %v650, 80
    %v661 = vpop.permute.xlu0 %660
    %v663 = vadd.f32 %v659, %v661
    %v664 = vmul.f32 %v663, 0.001953125
    %666 = vrot.lane.b32.xlu0 %v664, 16
    %v667 = vpop.permute.xlu0 %666
    %669 = vrot.lane.b32.xlu0 %v664, 32
    %v670 = vpop.permute.xlu0 %669
    %672 = vrot.lane.b32.xlu0 %v664, 48
    %v673 = vpop.permute.xlu0 %672
    %v675 = vsel %vm576, %v664, %v667
    %v676 = vsel %vm342, %v675, %v670
    %v677 = vsel %vm579, %v676, %v673
    %v678 = vadd.f32 %v677, 1e-05
    %v679 = vrsqrt.pop %v678
    %v680 = vmul.f32 %v679, %v678
    %v681 = vmul.f32 %v680, %v679
    %v682 = vmul.f32 0.5, %v681
    %v683 = vsub.f32 1.5, %v682
    %v684 = vmul.f32 %v679, %v683
    %vm685 = vweird.f32 %v678
    %vm686 = vweird.f32 %v679
    %vm687 = vmor %vm685, %vm686
    %v688 = vsel %vm687, %v679, %v684
    %v689 = vperm.slane %v688, 0
    %v690 = vmul.f32 %v582, %v689
    %v691 = vmul.f32 %v583, %v689
    %v692 = vmul.f32 %v584, %v689
    %v693 = vmul.f32 %v585, %v689
    %v694 = vmul.f32 %v586, %v689
    %v695 = vmul.f32 %v587, %v689
    %v696 = vmul.f32 %v588, %v689
    %v697 = vmul.f32 %v589, %v689
    %v698 = vmul.f32 %v590, %v689
    %v699 = vmul.f32 %v591, %v689
    %v700 = vmul.f32 %v592, %v689
    %v701 = vmul.f32 %v593, %v689
    %v702 = vmul.f32 %v594, %v689
    %v703 = vmul.f32 %v595, %v689
    %v704 = vmul.f32 %v596, %v689
    %v705 = vmul.f32 %v597, %v689
    %v706 = vld [vmem:[#allocation2] sm:$0x1]
    %v708 = vperm.slane %v706, 0
    %v710 = vmul.f32 %v690, %v708
    %v711 = vmul.f32 %v691, %v708
    %v712 = vmul.f32 %v692, %v708
    %v713 = vmul.f32 %v693, %v708
    %v714 = vmul.f32 %v694, %v708
    %v715 = vmul.f32 %v695, %v708
    %v716 = vmul.f32 %v696, %v708
    %v717 = vmul.f32 %v697, %v708
    %v718 = vmul.f32 %v698, %v708
    %v719 = vmul.f32 %v699, %v708
    %v720 = vmul.f32 %v700, %v708
    %v721 = vmul.f32 %v701, %v708
    %v722 = vmul.f32 %v702, %v708
    %v723 = vmul.f32 %v703, %v708
    %v724 = vmul.f32 %v704, %v708
    %v725 = vmul.f32 %v705, %v708
    %v726 = vld [vmem:[#allocation4] sm:$0x1]
    %v728 = vperm.slane %v726, 0
    %v730 = vadd.f32 %v710, %v728
    %v731 = vadd.f32 %v711, %v728
    %v732 = vadd.f32 %v712, %v728
    %v733 = vadd.f32 %v713, %v728
    %v734 = vadd.f32 %v714, %v728
    %v735 = vadd.f32 %v715, %v728
    %v736 = vadd.f32 %v716, %v728
    %v737 = vadd.f32 %v717, %v728
    %v738 = vadd.f32 %v718, %v728
    %v739 = vadd.f32 %v719, %v728
    %v740 = vadd.f32 %v720, %v728
    %v741 = vadd.f32 %v721, %v728
    %v742 = vadd.f32 %v722, %v728
    %v743 = vadd.f32 %v723, %v728
    %v744 = vadd.f32 %v724, %v728
    %v745 = vadd.f32 %v725, %v728
    %v746 = vmax.f32 %v730, 0.0
    %v747 = vmax.f32 %v731, 0.0
    %v748 = vmax.f32 %v732, 0.0
    %v749 = vmax.f32 %v733, 0.0
    %v750 = vmax.f32 %v734, 0.0
    %v751 = vmax.f32 %v735, 0.0
    %v752 = vmax.f32 %v736, 0.0
    %v753 = vmax.f32 %v737, 0.0
    %v754 = vmax.f32 %v738, 0.0
    %v755 = vmax.f32 %v739, 0.0
    %v756 = vmax.f32 %v740, 0.0
    %v757 = vmax.f32 %v741, 0.0
    %v758 = vmax.f32 %v742, 0.0
    %v759 = vmax.f32 %v743, 0.0
    %v760 = vmax.f32 %v744, 0.0
    %v761 = vmax.f32 %v745, 0.0
    %762 = vst.msk [vmem:[%s4] sm:$0xff] %vm514, %v746
    %763 = vst.msk [vmem:[%s4 + $0x8] sm:$0xff] %vm514, %v747
    %764 = vst.msk [vmem:[%s4 + $0x10] sm:$0xff] %vm514, %v748
    %765 = vst.msk [vmem:[%s4 + $0x18] sm:$0xff] %vm514, %v749
    %766 = vst.msk [vmem:[%s4 + $0x20] sm:$0xff] %vm514, %v750
    %767 = vst.msk [vmem:[%s4 + $0x28] sm:$0xff] %vm514, %v751
    %768 = vst.msk [vmem:[%s4 + $0x30] sm:$0xff] %vm514, %v752
    %769 = vst.msk [vmem:[%s4 + $0x38] sm:$0xff] %vm514, %v753
    %770 = vst.msk [vmem:[%s4 + $0x40] sm:$0xff] %vm514, %v754
    %771 = vst.msk [vmem:[%s4 + $0x48] sm:$0xff] %vm514, %v755
    %772 = vst.msk [vmem:[%s4 + $0x50] sm:$0xff] %vm514, %v756
    %773 = vst.msk [vmem:[%s4 + $0x58] sm:$0xff] %vm514, %v757
    %774 = vst.msk [vmem:[%s4 + $0x60] sm:$0xff] %vm514, %v758
    %775 = vst.msk [vmem:[%s4 + $0x68] sm:$0xff] %vm514, %v759
    %776 = vst.msk [vmem:[%s4 + $0x70] sm:$0xff] %vm514, %v760
    %777 = vst.msk [vmem:[%s4 + $0x78] sm:$0xff] %vm514, %v761
    // Predicated region
    $region26: #{decoder_forward.5} parent=1 // pred_check
      _
    $region27: #{decoder_forward.5} parent=1 // pred_check_branch
      %779 = sbr.rel (0) target = $region29
    $region28: #{decoder_forward.5} parent=1 // pred_region
      _
    $region29: #{decoder_forward.5} parent=1 // pred_fallthru
      _
    // Predicated region
    $region30: #{decoder_forward.5} parent=1 // pred_check
      _
    $region31: #{decoder_forward.5} parent=1 // pred_check_branch
      %781 = sbr.rel (0) target = $region33
    $region32: #{decoder_forward.5} parent=1 // pred_region
      _
    $region33: #{decoder_forward.5} parent=1 // pred_fallthru
      _
    %782 = vsyncpa [#allocation3], 1
    %783 = vsyncpa [#allocation5], 1

// kernel: decoder_forward.6
$region0: #{decoder_forward.6}
  #allocation0 [shape = 'u32[]', space=smem, size = 0x4, offset = 0x4, fixed_abs, tag = 'smem constant byte address 0x4 - core index']
  #allocation1 [shape = 'u32[72,128]{1,0:T(1,128)}', space=vmem, size = 0x9000, scoped, tag = 'internal scratch']
  %s0 = inlined_call_operand.vmem [shape: bf16[512,144], index: 0, kind: input, shape index: {}]
  %s1 = inlined_call_operand.vmem [shape: bf16[144,32], index: 1, kind: input, shape index: {}]
  %s2 = inlined_call_operand.vmem [shape: f32[1,32], index: 2, kind: input, shape index: {}]
  %s3 = inlined_call_operand.vmem [shape: f32[1,32], index: 3, kind: input, shape index: {}]
  %s4 = inlined_call_operand.vmem [shape: f32[512,32], index: 4, kind: output, shape index: {}]
  %s5 = sld [smem:[#allocation0]]
  $region26: #{decoder_forward.6} parent=0
    _
  %s7 = ssub.s32 1, %s5
  %s8 = scalar_select 0, %s7, %s5
  // Predicated region
  $region2: #{decoder_forward.6} parent=0 // pred_check
    _
  $region3: #{decoder_forward.6} parent=0 // pred_check_branch
    %10 = sbr.rel (0) target = $region5
  $region4: #{decoder_forward.6} parent=0 // pred_region
    _
  $region5: #{decoder_forward.6} parent=0 // pred_fallthru
    _
  // Predicated region
  $region6: #{decoder_forward.6} parent=0 // pred_check
    _
  $region7: #{decoder_forward.6} parent=0 // pred_check_branch
    %12 = sbr.rel (0) target = $region9
  $region8: #{decoder_forward.6} parent=0 // pred_region
    _
  $region9: #{decoder_forward.6} parent=0 // pred_fallthru
    _
  // Predicated region
  $region10: #{decoder_forward.6} parent=0 // pred_check
    _
  $region11: #{decoder_forward.6} parent=0 // pred_check_branch
    %14 = sbr.rel (0) target = $region13
  $region12: #{decoder_forward.6} parent=0 // pred_region
    _
  $region13: #{decoder_forward.6} parent=0 // pred_fallthru
    _
  // Predicated region
  $region14: #{decoder_forward.6} parent=0 // pred_check
    _
  $region15: #{decoder_forward.6} parent=0 // pred_check_branch
    %16 = sbr.rel (0) target = $region17
  $region16: #{decoder_forward.6} parent=0 // pred_region
    _
  $region17: #{decoder_forward.6} parent=0 // pred_fallthru
    _
  %v18 = vld [vmem:[%s0] sm:$0xff]
  %v19 = vld [vmem:[%s0 + $0x8] sm:$0xff]
  %v20 = vld [vmem:[%s0 + $0x10] sm:$0xff]
  %v21 = vld [vmem:[%s0 + $0x18] sm:$0xff]
  %v22 = vld [vmem:[%s0 + $0x20] sm:$0xff]
  %v23 = vld [vmem:[%s0 + $0x28] sm:$0xff]
  %v24 = vld [vmem:[%s0 + $0x30] sm:$0xff]
  %v25 = vld [vmem:[%s0 + $0x38] sm:$0xff]
  %v26 = vld [vmem:[%s0 + $0x40] sm:$0xff]
  %v27 = vld [vmem:[%s0 + $0x48] sm:$0xff]
  %v28 = vld [vmem:[%s0 + $0x50] sm:$0xff]
  %v29 = vld [vmem:[%s0 + $0x58] sm:$0xff]
  %v30 = vld [vmem:[%s0 + $0x60] sm:$0xff]
  %v31 = vld [vmem:[%s0 + $0x68] sm:$0xff]
  %v32 = vld [vmem:[%s0 + $0x70] sm:$0xff]
  %v33 = vld [vmem:[%s0 + $0x78] sm:$0xff]
  %v34 = vld [vmem:[%s0 + $0x80] sm:$0xff]
  %v35 = vld [vmem:[%s0 + $0x88] sm:$0xff]
  %v36 = vld [vmem:[%s0 + $0x90] sm:$0xff]
  %v37 = vld [vmem:[%s0 + $0x98] sm:$0xff]
  %v38 = vld [vmem:[%s0 + $0xa0] sm:$0xff]
  %v39 = vld [vmem:[%s0 + $0xa8] sm:$0xff]
  %v40 = vld [vmem:[%s0 + $0xb0] sm:$0xff]
  %v41 = vld [vmem:[%s0 + $0xb8] sm:$0xff]
  %v42 = vld [vmem:[%s0 + $0xc0] sm:$0xff]
  %v43 = vld [vmem:[%s0 + $0xc8] sm:$0xff]
  %v44 = vld [vmem:[%s0 + $0xd0] sm:$0xff]
  %v45 = vld [vmem:[%s0 + $0xd8] sm:$0xff]
  %v46 = vld [vmem:[%s0 + $0xe0] sm:$0xff]
  %v47 = vld [vmem:[%s0 + $0xe8] sm:$0xff]
  %v48 = vld [vmem:[%s0 + $0xf0] sm:$0xff]
  %v49 = vld [vmem:[%s0 + $0xf8] sm:$0xff]
  %v50 = vld [vmem:[%s0 + $0x100] sm:$0xff]
  %v51 = vld [vmem:[%s0 + $0x108] sm:$0xff]
  %v52 = vld [vmem:[%s0 + $0x110] sm:$0xff]
  %v53 = vld [vmem:[%s0 + $0x118] sm:$0xff]
  %v54 = vld [vmem:[%s0 + $0x120] sm:$0xff]
  %v55 = vld [vmem:[%s0 + $0x128] sm:$0xff]
  %v56 = vld [vmem:[%s0 + $0x130] sm:$0xff]
  %v57 = vld [vmem:[%s0 + $0x138] sm:$0xff]
  %v58 = vld [vmem:[%s0 + $0x140] sm:$0xff]
  %v59 = vld [vmem:[%s0 + $0x148] sm:$0xff]
  %v60 = vld [vmem:[%s0 + $0x150] sm:$0xff]
  %v61 = vld [vmem:[%s0 + $0x158] sm:$0xff]
  %v62 = vld [vmem:[%s0 + $0x160] sm:$0xff]
  %v63 = vld [vmem:[%s0 + $0x168] sm:$0xff]
  %v64 = vld [vmem:[%s0 + $0x170] sm:$0xff]
  %v65 = vld [vmem:[%s0 + $0x178] sm:$0xff]
  %v66 = vld [vmem:[%s0 + $0x180] sm:$0xff]
  %v67 = vld [vmem:[%s0 + $0x188] sm:$0xff]
  %v68 = vld [vmem:[%s0 + $0x190] sm:$0xff]
  %v69 = vld [vmem:[%s0 + $0x198] sm:$0xff]
  %v70 = vld [vmem:[%s0 + $0x1a0] sm:$0xff]
  %v71 = vld [vmem:[%s0 + $0x1a8] sm:$0xff]
  %v72 = vld [vmem:[%s0 + $0x1b0] sm:$0xff]
  %v73 = vld [vmem:[%s0 + $0x1b8] sm:$0xff]
  %v74 = vld [vmem:[%s0 + $0x1c0] sm:$0xff]
  %v75 = vld [vmem:[%s0 + $0x1c8] sm:$0xff]
  %v76 = vld [vmem:[%s0 + $0x1d0] sm:$0xff]
  %v77 = vld [vmem:[%s0 + $0x1d8] sm:$0xff]
  %v78 = vld [vmem:[%s0 + $0x1e0] sm:$0xff]
  %v79 = vld [vmem:[%s0 + $0x1e8] sm:$0xff]
  %v80 = vld [vmem:[%s0 + $0x1f0] sm:$0xff]
  %v81 = vld [vmem:[%s0 + $0x1f8] sm:$0xff]
  %v82 = vld [vmem:[%s1] sm:$0xf]
  %v83 = vld [vmem:[%s1 + $0x4] sm:$0xf]
  %v84 = vld [vmem:[%s1 + $0x8] sm:$0xf]
  %v85 = vld [vmem:[%s1 + $0xc] sm:$0xf]
  %v86 = vld [vmem:[%s1 + $0x10] sm:$0xf]
  %v87 = vld [vmem:[%s1 + $0x14] sm:$0xf]
  %v88 = vld [vmem:[%s1 + $0x18] sm:$0xf]
  %v89 = vld [vmem:[%s1 + $0x1c] sm:$0xf]
  %v90 = vld [vmem:[%s1 + $0x20] sm:$0xf]
  %v91 = vld [vmem:[%s1 + $0x24] sm:$0xf]
  %v92 = vld [vmem:[%s1 + $0x28] sm:$0xf]
  %v93 = vld [vmem:[%s1 + $0x2c] sm:$0xf]
  %v94 = vld [vmem:[%s1 + $0x30] sm:$0xf]
  %v95 = vld [vmem:[%s1 + $0x34] sm:$0xf]
  %v96 = vld [vmem:[%s1 + $0x38] sm:$0xf]
  %v97 = vld [vmem:[%s1 + $0x3c] sm:$0xf]
  %v98 = vld [vmem:[%s1 + $0x40] sm:$0xf]
  %v99 = vld [vmem:[%s1 + $0x44] sm:$0xf]
  %v164 = vunpack.c.l.b16 %v18
  %v165 = vunpack.c.h.b16 %v18
  %v166 = vunpack.c.l.b16 %v19
  %v167 = vunpack.c.h.b16 %v19
  %v168 = vunpack.c.l.b16 %v20
  %v169 = vunpack.c.h.b16 %v20
  %v170 = vunpack.c.l.b16 %v21
  %v171 = vunpack.c.h.b16 %v21
  %v172 = vunpack.c.l.b16 %v22
  %v173 = vunpack.c.h.b16 %v22
  %v174 = vunpack.c.l.b16 %v23
  %v175 = vunpack.c.h.b16 %v23
  %v176 = vunpack.c.l.b16 %v24
  %v177 = vunpack.c.h.b16 %v24
  %v178 = vunpack.c.l.b16 %v25
  %v179 = vunpack.c.h.b16 %v25
  %v180 = vunpack.c.l.b16 %v26
  %v181 = vunpack.c.h.b16 %v26
  %v182 = vunpack.c.l.b16 %v27
  %v183 = vunpack.c.h.b16 %v27
  %v184 = vunpack.c.l.b16 %v28
  %v185 = vunpack.c.h.b16 %v28
  %v186 = vunpack.c.l.b16 %v29
  %v187 = vunpack.c.h.b16 %v29
  %v188 = vunpack.c.l.b16 %v30
  %v189 = vunpack.c.h.b16 %v30
  %v190 = vunpack.c.l.b16 %v31
  %v191 = vunpack.c.h.b16 %v31
  %v192 = vunpack.c.l.b16 %v32
  %v193 = vunpack.c.h.b16 %v32
  %v194 = vunpack.c.l.b16 %v33
  %v195 = vunpack.c.h.b16 %v33
  %v196 = vunpack.c.l.b16 %v34
  %v197 = vunpack.c.h.b16 %v34
  %v198 = vunpack.c.l.b16 %v35
  %v199 = vunpack.c.h.b16 %v35
  %v200 = vunpack.c.l.b16 %v36
  %v201 = vunpack.c.h.b16 %v36
  %v202 = vunpack.c.l.b16 %v37
  %v203 = vunpack.c.h.b16 %v37
  %v204 = vunpack.c.l.b16 %v38
  %v205 = vunpack.c.h.b16 %v38
  %v206 = vunpack.c.l.b16 %v39
  %v207 = vunpack.c.h.b16 %v39
  %v208 = vunpack.c.l.b16 %v40
  %v209 = vunpack.c.h.b16 %v40
  %v210 = vunpack.c.l.b16 %v41
  %v211 = vunpack.c.h.b16 %v41
  %v212 = vunpack.c.l.b16 %v42
  %v213 = vunpack.c.h.b16 %v42
  %v214 = vunpack.c.l.b16 %v43
  %v215 = vunpack.c.h.b16 %v43
  %v216 = vunpack.c.l.b16 %v44
  %v217 = vunpack.c.h.b16 %v44
  %v218 = vunpack.c.l.b16 %v45
  %v219 = vunpack.c.h.b16 %v45
  %v220 = vunpack.c.l.b16 %v46
  %v221 = vunpack.c.h.b16 %v46
  %v222 = vunpack.c.l.b16 %v47
  %v223 = vunpack.c.h.b16 %v47
  %v224 = vunpack.c.l.b16 %v48
  %v225 = vunpack.c.h.b16 %v48
  %v226 = vunpack.c.l.b16 %v49
  %v227 = vunpack.c.h.b16 %v49
  %v228 = vunpack.c.l.b16 %v50
  %v229 = vunpack.c.h.b16 %v50
  %v230 = vunpack.c.l.b16 %v51
  %v231 = vunpack.c.h.b16 %v51
  %v232 = vunpack.c.l.b16 %v52
  %v233 = vunpack.c.h.b16 %v52
  %v234 = vunpack.c.l.b16 %v53
  %v235 = vunpack.c.h.b16 %v53
  %v236 = vunpack.c.l.b16 %v54
  %v237 = vunpack.c.h.b16 %v54
  %v238 = vunpack.c.l.b16 %v55
  %v239 = vunpack.c.h.b16 %v55
  %v240 = vunpack.c.l.b16 %v56
  %v241 = vunpack.c.h.b16 %v56
  %v242 = vunpack.c.l.b16 %v57
  %v243 = vunpack.c.h.b16 %v57
  %v244 = vunpack.c.l.b16 %v58
  %v245 = vunpack.c.h.b16 %v58
  %v246 = vunpack.c.l.b16 %v59
  %v247 = vunpack.c.h.b16 %v59
  %v248 = vunpack.c.l.b16 %v60
  %v249 = vunpack.c.h.b16 %v60
  %v250 = vunpack.c.l.b16 %v61
  %v251 = vunpack.c.h.b16 %v61
  %v252 = vunpack.c.l.b16 %v62
  %v253 = vunpack.c.h.b16 %v62
  %v254 = vunpack.c.l.b16 %v63
  %v255 = vunpack.c.h.b16 %v63
  %v256 = vunpack.c.l.b16 %v64
  %v257 = vunpack.c.h.b16 %v64
  %v258 = vunpack.c.l.b16 %v65
  %v259 = vunpack.c.h.b16 %v65
  %v260 = vunpack.c.l.b16 %v66
  %v261 = vunpack.c.h.b16 %v66
  %v262 = vunpack.c.l.b16 %v67
  %v263 = vunpack.c.h.b16 %v67
  %v264 = vunpack.c.l.b16 %v68
  %v265 = vunpack.c.h.b16 %v68
  %v266 = vunpack.c.l.b16 %v69
  %v267 = vunpack.c.h.b16 %v69
  %v268 = vunpack.c.l.b16 %v70
  %v269 = vunpack.c.h.b16 %v70
  %v270 = vunpack.c.l.b16 %v71
  %v271 = vunpack.c.h.b16 %v71
  %v272 = vunpack.c.l.b16 %v72
  %v273 = vunpack.c.h.b16 %v72
  %v274 = vunpack.c.l.b16 %v73
  %v275 = vunpack.c.h.b16 %v73
  %v276 = vunpack.c.l.b16 %v74
  %v277 = vunpack.c.h.b16 %v74
  %v278 = vunpack.c.l.b16 %v75
  %v279 = vunpack.c.h.b16 %v75
  %v280 = vunpack.c.l.b16 %v76
  %v281 = vunpack.c.h.b16 %v76
  %v282 = vunpack.c.l.b16 %v77
  %v283 = vunpack.c.h.b16 %v77
  %v284 = vunpack.c.l.b16 %v78
  %v285 = vunpack.c.h.b16 %v78
  %v286 = vunpack.c.l.b16 %v79
  %v287 = vunpack.c.h.b16 %v79
  %v288 = vunpack.c.l.b16 %v80
  %v289 = vunpack.c.h.b16 %v80
  %v290 = vunpack.c.l.b16 %v81
  %v291 = vunpack.c.h.b16 %v81
  %v292 = vpack.c.b16 %v166, %v164
  %v293 = vpack.c.b16 %v167, %v165
  %v294 = vpack.c.b16 %v170, %v168
  %v295 = vpack.c.b16 %v171, %v169
  %v296 = vpack.c.b16 %v174, %v172
  %v297 = vpack.c.b16 %v175, %v173
  %v298 = vpack.c.b16 %v178, %v176
  %v299 = vpack.c.b16 %v179, %v177
  %v300 = vpack.c.b16 %v182, %v180
  %v301 = vpack.c.b16 %v183, %v181
  %v302 = vpack.c.b16 %v186, %v184
  %v303 = vpack.c.b16 %v187, %v185
  %v304 = vpack.c.b16 %v190, %v188
  %v305 = vpack.c.b16 %v191, %v189
  %v306 = vpack.c.b16 %v194, %v192
  %v307 = vpack.c.b16 %v195, %v193
  %v308 = vpack.c.b16 %v198, %v196
  %v309 = vpack.c.b16 %v199, %v197
  %v310 = vpack.c.b16 %v202, %v200
  %v311 = vpack.c.b16 %v203, %v201
  %v312 = vpack.c.b16 %v206, %v204
  %v313 = vpack.c.b16 %v207, %v205
  %v314 = vpack.c.b16 %v210, %v208
  %v315 = vpack.c.b16 %v211, %v209
  %v316 = vpack.c.b16 %v214, %v212
  %v317 = vpack.c.b16 %v215, %v213
  %v318 = vpack.c.b16 %v218, %v216
  %v319 = vpack.c.b16 %v219, %v217
  %v320 = vpack.c.b16 %v222, %v220
  %v321 = vpack.c.b16 %v223, %v221
  %v322 = vpack.c.b16 %v226, %v224
  %v323 = vpack.c.b16 %v227, %v225
  %v324 = vpack.c.b16 %v230, %v228
  %v325 = vpack.c.b16 %v231, %v229
  %v326 = vpack.c.b16 %v234, %v232
  %v327 = vpack.c.b16 %v235, %v233
  %v328 = vpack.c.b16 %v238, %v236
  %v329 = vpack.c.b16 %v239, %v237
  %v330 = vpack.c.b16 %v242, %v240
  %v331 = vpack.c.b16 %v243, %v241
  %v332 = vpack.c.b16 %v246, %v244
  %v333 = vpack.c.b16 %v247, %v245
  %v334 = vpack.c.b16 %v250, %v248
  %v335 = vpack.c.b16 %v251, %v249
  %v336 = vpack.c.b16 %v254, %v252
  %v337 = vpack.c.b16 %v255, %v253
  %v338 = vpack.c.b16 %v258, %v256
  %v339 = vpack.c.b16 %v259, %v257
  %v340 = vpack.c.b16 %v262, %v260
  %v341 = vpack.c.b16 %v263, %v261
  %v342 = vpack.c.b16 %v266, %v264
  %v343 = vpack.c.b16 %v267, %v265
  %v344 = vpack.c.b16 %v270, %v268
  %v345 = vpack.c.b16 %v271, %v269
  %v346 = vpack.c.b16 %v274, %v272
  %v347 = vpack.c.b16 %v275, %v273
  %v348 = vpack.c.b16 %v278, %v276
  %v349 = vpack.c.b16 %v279, %v277
  %v350 = vpack.c.b16 %v282, %v280
  %v351 = vpack.c.b16 %v283, %v281
  %v352 = vpack.c.b16 %v286, %v284
  %v353 = vpack.c.b16 %v287, %v285
  %v354 = vpack.c.b16 %v290, %v288
  %v355 = vpack.c.b16 %v291, %v289
  %v406 = vunpack.c.l.b16 %v82
  %v407 = vunpack.c.l.b16 %v83
  %v408 = vunpack.c.l.b16 %v84
  %v409 = vunpack.c.l.b16 %v85
  %v410 = vunpack.c.l.b16 %v86
  %v411 = vunpack.c.l.b16 %v87
  %v412 = vunpack.c.l.b16 %v88
  %v413 = vunpack.c.l.b16 %v89
  %v414 = vunpack.c.l.b16 %v90
  %v415 = vunpack.c.l.b16 %v91
  %v416 = vunpack.c.l.b16 %v92
  %v417 = vunpack.c.l.b16 %v93
  %v418 = vunpack.c.l.b16 %v94
  %v419 = vunpack.c.l.b16 %v95
  %v420 = vunpack.c.l.b16 %v96
  %v421 = vunpack.c.l.b16 %v97
  %v422 = vunpack.c.l.b16 %v98
  %v423 = vunpack.c.l.b16 %v99
  %v424 = vpack.c.b16 %v407, %v406
  %v425 = vpack.c.b16 %v409, %v408
  %v426 = vpack.c.b16 %v411, %v410
  %v427 = vpack.c.b16 %v413, %v412
  %v428 = vpack.c.b16 %v415, %v414
  %v429 = vpack.c.b16 %v417, %v416
  %v430 = vpack.c.b16 %v419, %v418
  %v431 = vpack.c.b16 %v421, %v420
  %v432 = vpack.c.b16 %v423, %v422
  %vm442 = vcmask 130048
  %v444 = vsel %vm442, %v293, 0
  %v447 = vsel %vm442, %v295, 0
  %v450 = vsel %vm442, %v297, 0
  %v453 = vsel %vm442, %v299, 0
  %v456 = vsel %vm442, %v301, 0
  %v459 = vsel %vm442, %v303, 0
  %v462 = vsel %vm442, %v305, 0
  %v465 = vsel %vm442, %v307, 0
  %v468 = vsel %vm442, %v309, 0
  %v471 = vsel %vm442, %v311, 0
  %v474 = vsel %vm442, %v313, 0
  %v477 = vsel %vm442, %v315, 0
  %v480 = vsel %vm442, %v317, 0
  %v483 = vsel %vm442, %v319, 0
  %v486 = vsel %vm442, %v321, 0
  %v489 = vsel %vm442, %v323, 0
  %v492 = vsel %vm442, %v325, 0
  %v495 = vsel %vm442, %v327, 0
  %v498 = vsel %vm442, %v329, 0
  %v501 = vsel %vm442, %v331, 0
  %v504 = vsel %vm442, %v333, 0
  %v507 = vsel %vm442, %v335, 0
  %v510 = vsel %vm442, %v337, 0
  %v513 = vsel %vm442, %v339, 0
  %v516 = vsel %vm442, %v341, 0
  %v519 = vsel %vm442, %v343, 0
  %v522 = vsel %vm442, %v345, 0
  %v525 = vsel %vm442, %v347, 0
  %v528 = vsel %vm442, %v349, 0
  %v531 = vsel %vm442, %v351, 0
  %v534 = vsel %vm442, %v353, 0
  %v537 = vsel %vm442, %v355, 0
  %539 = vmatpush.bf16.msra.mxu0 %v431
  %540 = vmatpush.bf16.msra.mxu0 %v430
  %541 = vmatpush.bf16.msra.mxu0 %v429
  %542 = vmatpush.bf16.msra.mxu0 %v428
  %543 = vmatpush.bf16.msra.mxu0 %v427
  %544 = vmatpush.bf16.msra.mxu0 %v426
  %545 = vmatpush.bf16.msra.mxu0 %v425
  %546 = vmatpush.bf16.msra.mxu0 %v424
  %547 = vmatmul.bf16.gmra.mxu0 %v292
  %v548 = vpop.f32.mrf.mxu0
  %v549 = vadd.f32 0.0, %v548
  %v550 = vpop.f32.mrf.mxu0
  %v551 = vadd.f32 0.0, %v550
  %552 = vmatmul.bf16.gmra.mxu0 %v294
  %v553 = vpop.f32.mrf.mxu0
  %v554 = vadd.f32 0.0, %v553
  %v555 = vpop.f32.mrf.mxu0
  %v556 = vadd.f32 0.0, %v555
  %557 = vmatmul.bf16.gmra.mxu0 %v296
  %v558 = vpop.f32.mrf.mxu0
  %v559 = vadd.f32 0.0, %v558
  %v560 = vpop.f32.mrf.mxu0
  %v561 = vadd.f32 0.0, %v560
  %562 = vmatmul.bf16.gmra.mxu0 %v298
  %v563 = vpop.f32.mrf.mxu0
  %v564 = vadd.f32 0.0, %v563
  %v565 = vpop.f32.mrf.mxu0
  %v566 = vadd.f32 0.0, %v565
  %567 = vmatmul.bf16.gmra.mxu0 %v300
  %v568 = vpop.f32.mrf.mxu0
  %v569 = vadd.f32 0.0, %v568
  %v570 = vpop.f32.mrf.mxu0
  %v571 = vadd.f32 0.0, %v570
  %572 = vmatmul.bf16.gmra.mxu0 %v302
  %v573 = vpop.f32.mrf.mxu0
  %v574 = vadd.f32 0.0, %v573
  %v575 = vpop.f32.mrf.mxu0
  %v576 = vadd.f32 0.0, %v575
  %577 = vmatmul.bf16.gmra.mxu0 %v304
  %v578 = vpop.f32.mrf.mxu0
  %v579 = vadd.f32 0.0, %v578
  %v580 = vpop.f32.mrf.mxu0
  %v581 = vadd.f32 0.0, %v580
  %582 = vmatmul.bf16.gmra.mxu0 %v306
  %v583 = vpop.f32.mrf.mxu0
  %v584 = vadd.f32 0.0, %v583
  %v585 = vpop.f32.mrf.mxu0
  %v586 = vadd.f32 0.0, %v585
  %587 = vmatmul.bf16.gmra.mxu0 %v308
  %v588 = vpop.f32.mrf.mxu0
  %v589 = vadd.f32 0.0, %v588
  %v590 = vpop.f32.mrf.mxu0
  %v591 = vadd.f32 0.0, %v590
  %592 = vmatmul.bf16.gmra.mxu0 %v310
  %v593 = vpop.f32.mrf.mxu0
  %v594 = vadd.f32 0.0, %v593
  %v595 = vpop.f32.mrf.mxu0
  %v596 = vadd.f32 0.0, %v595
  %597 = vmatmul.bf16.gmra.mxu0 %v312
  %v598 = vpop.f32.mrf.mxu0
  %v599 = vadd.f32 0.0, %v598
  %v600 = vpop.f32.mrf.mxu0
  %v601 = vadd.f32 0.0, %v600
  %602 = vmatmul.bf16.gmra.mxu0 %v314
  %v603 = vpop.f32.mrf.mxu0
  %v604 = vadd.f32 0.0, %v603
  %v605 = vpop.f32.mrf.mxu0
  %v606 = vadd.f32 0.0, %v605
  %607 = vmatmul.bf16.gmra.mxu0 %v316
  %v608 = vpop.f32.mrf.mxu0
  %v609 = vadd.f32 0.0, %v608
  %v610 = vpop.f32.mrf.mxu0
  %v611 = vadd.f32 0.0, %v610
  %612 = vmatmul.bf16.gmra.mxu0 %v318
  %v613 = vpop.f32.mrf.mxu0
  %v614 = vadd.f32 0.0, %v613
  %v615 = vpop.f32.mrf.mxu0
  %v616 = vadd.f32 0.0, %v615
  %617 = vmatmul.bf16.gmra.mxu0 %v320
  %v618 = vpop.f32.mrf.mxu0
  %v619 = vadd.f32 0.0, %v618
  %v620 = vpop.f32.mrf.mxu0
  %v621 = vadd.f32 0.0, %v620
  %622 = vmatmul.bf16.gmra.mxu0 %v322
  %v623 = vpop.f32.mrf.mxu0
  %v624 = vadd.f32 0.0, %v623
  %v625 = vpop.f32.mrf.mxu0
  %v626 = vadd.f32 0.0, %v625
  %627 = vmatmul.bf16.gmra.mxu0 %v324
  %v628 = vpop.f32.mrf.mxu0
  %v629 = vadd.f32 0.0, %v628
  %v630 = vpop.f32.mrf.mxu0
  %v631 = vadd.f32 0.0, %v630
  %632 = vmatmul.bf16.gmra.mxu0 %v326
  %v633 = vpop.f32.mrf.mxu0
  %v634 = vadd.f32 0.0, %v633
  %v635 = vpop.f32.mrf.mxu0
  %v636 = vadd.f32 0.0, %v635
  %637 = vmatmul.bf16.gmra.mxu0 %v328
  %v638 = vpop.f32.mrf.mxu0
  %v639 = vadd.f32 0.0, %v638
  %v640 = vpop.f32.mrf.mxu0
  %v641 = vadd.f32 0.0, %v640
  %642 = vmatmul.bf16.gmra.mxu0 %v330
  %v643 = vpop.f32.mrf.mxu0
  %v644 = vadd.f32 0.0, %v643
  %v645 = vpop.f32.mrf.mxu0
  %v646 = vadd.f32 0.0, %v645
  %647 = vmatmul.bf16.gmra.mxu0 %v332
  %v648 = vpop.f32.mrf.mxu0
  %v649 = vadd.f32 0.0, %v648
  %v650 = vpop.f32.mrf.mxu0
  %v651 = vadd.f32 0.0, %v650
  %652 = vmatmul.bf16.gmra.mxu0 %v334
  %v653 = vpop.f32.mrf.mxu0
  %v654 = vadd.f32 0.0, %v653
  %v655 = vpop.f32.mrf.mxu0
  %v656 = vadd.f32 0.0, %v655
  %657 = vmatmul.bf16.gmra.mxu0 %v336
  %v658 = vpop.f32.mrf.mxu0
  %v659 = vadd.f32 0.0, %v658
  %v660 = vpop.f32.mrf.mxu0
  %v661 = vadd.f32 0.0, %v660
  %662 = vmatmul.bf16.gmra.mxu0 %v338
  %v663 = vpop.f32.mrf.mxu0
  %v664 = vadd.f32 0.0, %v663
  %v665 = vpop.f32.mrf.mxu0
  %v666 = vadd.f32 0.0, %v665
  %667 = vmatmul.bf16.gmra.mxu0 %v340
  %v668 = vpop.f32.mrf.mxu0
  %v669 = vadd.f32 0.0, %v668
  %v670 = vpop.f32.mrf.mxu0
  %v671 = vadd.f32 0.0, %v670
  %672 = vmatmul.bf16.gmra.mxu0 %v342
  %v673 = vpop.f32.mrf.mxu0
  %v674 = vadd.f32 0.0, %v673
  %v675 = vpop.f32.mrf.mxu0
  %v676 = vadd.f32 0.0, %v675
  %677 = vmatmul.bf16.gmra.mxu0 %v344
  %v678 = vpop.f32.mrf.mxu0
  %v679 = vadd.f32 0.0, %v678
  %v680 = vpop.f32.mrf.mxu0
  %v681 = vadd.f32 0.0, %v680
  %682 = vmatmul.bf16.gmra.mxu0 %v346
  %v683 = vpop.f32.mrf.mxu0
  %v684 = vadd.f32 0.0, %v683
  %v685 = vpop.f32.mrf.mxu0
  %v686 = vadd.f32 0.0, %v685
  %687 = vmatmul.bf16.gmra.mxu0 %v348
  %v688 = vpop.f32.mrf.mxu0
  %v689 = vadd.f32 0.0, %v688
  %v690 = vpop.f32.mrf.mxu0
  %v691 = vadd.f32 0.0, %v690
  %692 = vmatmul.bf16.gmra.mxu0 %v350
  %v693 = vpop.f32.mrf.mxu0
  %v694 = vadd.f32 0.0, %v693
  %v695 = vpop.f32.mrf.mxu0
  %v696 = vadd.f32 0.0, %v695
  %697 = vmatmul.bf16.gmra.mxu0 %v352
  %v698 = vpop.f32.mrf.mxu0
  %v699 = vadd.f32 0.0, %v698
  %v700 = vpop.f32.mrf.mxu0
  %v701 = vadd.f32 0.0, %v700
  %702 = vmatmul.bf16.gmra.mxu0 %v354
  %v703 = vpop.f32.mrf.mxu0
  %v704 = vadd.f32 0.0, %v703
  %v705 = vpop.f32.mrf.mxu0
  %v706 = vadd.f32 0.0, %v705
  %707 = vdwg.mxu0
  %708 = vmatpush.bf16.msra.mxu0 0
  %709 = vmatpush.bf16.msra.mxu0 0
  %710 = vmatpush.bf16.msra.mxu0 0
  %711 = vmatpush.bf16.msra.mxu0 0
  %712 = vmatpush.bf16.msra.mxu0 0
  %713 = vmatpush.bf16.msra.mxu0 0
  %714 = vmatpush.bf16.msra.mxu0 0
  %715 = vmatpush.bf16.msra.mxu0 %v432
  %716 = vmatmul.bf16.gmra.mxu0 %v444
  %v717 = vpop.f32.mrf.mxu0
  %v718 = vadd.f32 %v549, %v717
  %v719 = vpop.f32.mrf.mxu0
  %v720 = vadd.f32 %v551, %v719
  %721 = vmatmul.bf16.gmra.mxu0 %v447
  %v722 = vpop.f32.mrf.mxu0
  %v723 = vadd.f32 %v554, %v722
  %v724 = vpop.f32.mrf.mxu0
  %v725 = vadd.f32 %v556, %v724
  %726 = vmatmul.bf16.gmra.mxu0 %v450
  %v727 = vpop.f32.mrf.mxu0
  %v728 = vadd.f32 %v559, %v727
  %v729 = vpop.f32.mrf.mxu0
  %v730 = vadd.f32 %v561, %v729
  %731 = vmatmul.bf16.gmra.mxu0 %v453
  %v732 = vpop.f32.mrf.mxu0
  %v733 = vadd.f32 %v564, %v732
  %v734 = vpop.f32.mrf.mxu0
  %v735 = vadd.f32 %v566, %v734
  %736 = vmatmul.bf16.gmra.mxu0 %v456
  %v737 = vpop.f32.mrf.mxu0
  %v738 = vadd.f32 %v569, %v737
  %v739 = vpop.f32.mrf.mxu0
  %v740 = vadd.f32 %v571, %v739
  %741 = vmatmul.bf16.gmra.mxu0 %v459
  %v742 = vpop.f32.mrf.mxu0
  %v743 = vadd.f32 %v574, %v742
  %v744 = vpop.f32.mrf.mxu0
  %v745 = vadd.f32 %v576, %v744
  %746 = vmatmul.bf16.gmra.mxu0 %v462
  %v747 = vpop.f32.mrf.mxu0
  %v748 = vadd.f32 %v579, %v747
  %v749 = vpop.f32.mrf.mxu0
  %v750 = vadd.f32 %v581, %v749
  %751 = vmatmul.bf16.gmra.mxu0 %v465
  %v752 = vpop.f32.mrf.mxu0
  %v753 = vadd.f32 %v584, %v752
  %v754 = vpop.f32.mrf.mxu0
  %v755 = vadd.f32 %v586, %v754
  %756 = vmatmul.bf16.gmra.mxu0 %v468
  %v757 = vpop.f32.mrf.mxu0
  %v758 = vadd.f32 %v589, %v757
  %v759 = vpop.f32.mrf.mxu0
  %v760 = vadd.f32 %v591, %v759
  %761 = vmatmul.bf16.gmra.mxu0 %v471
  %v762 = vpop.f32.mrf.mxu0
  %v763 = vadd.f32 %v594, %v762
  %v764 = vpop.f32.mrf.mxu0
  %v765 = vadd.f32 %v596, %v764
  %766 = vmatmul.bf16.gmra.mxu0 %v474
  %v767 = vpop.f32.mrf.mxu0
  %v768 = vadd.f32 %v599, %v767
  %v769 = vpop.f32.mrf.mxu0
  %v770 = vadd.f32 %v601, %v769
  %771 = vmatmul.bf16.gmra.mxu0 %v477
  %v772 = vpop.f32.mrf.mxu0
  %v773 = vadd.f32 %v604, %v772
  %v774 = vpop.f32.mrf.mxu0
  %v775 = vadd.f32 %v606, %v774
  %776 = vmatmul.bf16.gmra.mxu0 %v480
  %v777 = vpop.f32.mrf.mxu0
  %v778 = vadd.f32 %v609, %v777
  %v779 = vpop.f32.mrf.mxu0
  %v780 = vadd.f32 %v611, %v779
  %781 = vmatmul.bf16.gmra.mxu0 %v483
  %v782 = vpop.f32.mrf.mxu0
  %v783 = vadd.f32 %v614, %v782
  %v784 = vpop.f32.mrf.mxu0
  %v785 = vadd.f32 %v616, %v784
  %786 = vmatmul.bf16.gmra.mxu0 %v486
  %v787 = vpop.f32.mrf.mxu0
  %v788 = vadd.f32 %v619, %v787
  %v789 = vpop.f32.mrf.mxu0
  %v790 = vadd.f32 %v621, %v789
  %791 = vmatmul.bf16.gmra.mxu0 %v489
  %v792 = vpop.f32.mrf.mxu0
  %v793 = vadd.f32 %v624, %v792
  %v794 = vpop.f32.mrf.mxu0
  %v795 = vadd.f32 %v626, %v794
  %796 = vmatmul.bf16.gmra.mxu0 %v492
  %v797 = vpop.f32.mrf.mxu0
  %v798 = vadd.f32 %v629, %v797
  %v799 = vpop.f32.mrf.mxu0
  %v800 = vadd.f32 %v631, %v799
  %801 = vmatmul.bf16.gmra.mxu0 %v495
  %v802 = vpop.f32.mrf.mxu0
  %v803 = vadd.f32 %v634, %v802
  %v804 = vpop.f32.mrf.mxu0
  %v805 = vadd.f32 %v636, %v804
  %806 = vmatmul.bf16.gmra.mxu0 %v498
  %v807 = vpop.f32.mrf.mxu0
  %v808 = vadd.f32 %v639, %v807
  %v809 = vpop.f32.mrf.mxu0
  %v810 = vadd.f32 %v641, %v809
  %811 = vmatmul.bf16.gmra.mxu0 %v501
  %v812 = vpop.f32.mrf.mxu0
  %v813 = vadd.f32 %v644, %v812
  %v814 = vpop.f32.mrf.mxu0
  %v815 = vadd.f32 %v646, %v814
  %816 = vmatmul.bf16.gmra.mxu0 %v504
  %v817 = vpop.f32.mrf.mxu0
  %v818 = vadd.f32 %v649, %v817
  %v819 = vpop.f32.mrf.mxu0
  %v820 = vadd.f32 %v651, %v819
  %821 = vmatmul.bf16.gmra.mxu0 %v507
  %v822 = vpop.f32.mrf.mxu0
  %v823 = vadd.f32 %v654, %v822
  %v824 = vpop.f32.mrf.mxu0
  %v825 = vadd.f32 %v656, %v824
  %826 = vmatmul.bf16.gmra.mxu0 %v510
  %v827 = vpop.f32.mrf.mxu0
  %v828 = vadd.f32 %v659, %v827
  %v829 = vpop.f32.mrf.mxu0
  %v830 = vadd.f32 %v661, %v829
  %831 = vmatmul.bf16.gmra.mxu0 %v513
  %v832 = vpop.f32.mrf.mxu0
  %v833 = vadd.f32 %v664, %v832
  %v834 = vpop.f32.mrf.mxu0
  %v835 = vadd.f32 %v666, %v834
  %836 = vmatmul.bf16.gmra.mxu0 %v516
  %v837 = vpop.f32.mrf.mxu0
  %v838 = vadd.f32 %v669, %v837
  %v839 = vpop.f32.mrf.mxu0
  %v840 = vadd.f32 %v671, %v839
  %841 = vmatmul.bf16.gmra.mxu0 %v519
  %v842 = vpop.f32.mrf.mxu0
  %v843 = vadd.f32 %v674, %v842
  %v844 = vpop.f32.mrf.mxu0
  %v845 = vadd.f32 %v676, %v844
  %846 = vmatmul.bf16.gmra.mxu0 %v522
  %v847 = vpop.f32.mrf.mxu0
  %v848 = vadd.f32 %v679, %v847
  %v849 = vpop.f32.mrf.mxu0
  %v850 = vadd.f32 %v681, %v849
  %851 = vmatmul.bf16.gmra.mxu0 %v525
  %v852 = vpop.f32.mrf.mxu0
  %v853 = vadd.f32 %v684, %v852
  %v854 = vpop.f32.mrf.mxu0
  %v855 = vadd.f32 %v686, %v854
  %856 = vmatmul.bf16.gmra.mxu0 %v528
  %v857 = vpop.f32.mrf.mxu0
  %v858 = vadd.f32 %v689, %v857
  %v859 = vpop.f32.mrf.mxu0
  %v860 = vadd.f32 %v691, %v859
  %861 = vmatmul.bf16.gmra.mxu0 %v531
  %v862 = vpop.f32.mrf.mxu0
  %v863 = vadd.f32 %v694, %v862
  %v864 = vpop.f32.mrf.mxu0
  %v865 = vadd.f32 %v696, %v864
  %866 = vmatmul.bf16.gmra.mxu0 %v534
  %v867 = vpop.f32.mrf.mxu0
  %v868 = vadd.f32 %v699, %v867
  %v869 = vpop.f32.mrf.mxu0
  %v870 = vadd.f32 %v701, %v869
  %871 = vmatmul.bf16.gmra.mxu0 %v537
  %v872 = vpop.f32.mrf.mxu0
  %v873 = vadd.f32 %v704, %v872
  %v874 = vpop.f32.mrf.mxu0
  %v875 = vadd.f32 %v706, %v874
  %876 = vdwg.mxu0
  %vm877 = vcmask 261120
  %v878 = vsel %vm877, %v718, 0.0
  %v879 = vsel %vm877, %v720, 0.0
  %v880 = vadd.f32 %v878, %v879
  %v881 = vsel %vm877, %v723, 0.0
  %v882 = vadd.f32 %v880, %v881
  %v883 = vsel %vm877, %v725, 0.0
  %v884 = vadd.f32 %v882, %v883
  %v885 = vsel %vm877, %v728, 0.0
  %v886 = vadd.f32 %v884, %v885
  %v887 = vsel %vm877, %v730, 0.0
  %v888 = vadd.f32 %v886, %v887
  %v889 = vsel %vm877, %v733, 0.0
  %v890 = vadd.f32 %v888, %v889
  %v891 = vsel %vm877, %v735, 0.0
  %v892 = vadd.f32 %v890, %v891
  %v893 = vsel %vm877, %v738, 0.0
  %v894 = vadd.f32 %v892, %v893
  %v895 = vsel %vm877, %v740, 0.0
  %v896 = vadd.f32 %v894, %v895
  %v897 = vsel %vm877, %v743, 0.0
  %v898 = vadd.f32 %v896, %v897
  %v899 = vsel %vm877, %v745, 0.0
  %v900 = vadd.f32 %v898, %v899
  %v901 = vsel %vm877, %v748, 0.0
  %v902 = vadd.f32 %v900, %v901
  %v903 = vsel %vm877, %v750, 0.0
  %v904 = vadd.f32 %v902, %v903
  %v905 = vsel %vm877, %v753, 0.0
  %v906 = vadd.f32 %v904, %v905
  %v907 = vsel %vm877, %v755, 0.0
  %v908 = vadd.f32 %v906, %v907
  %v909 = vsel %vm877, %v758, 0.0
  %v910 = vadd.f32 %v908, %v909
  %v911 = vsel %vm877, %v760, 0.0
  %v912 = vadd.f32 %v910, %v911
  %v913 = vsel %vm877, %v763, 0.0
  %v914 = vadd.f32 %v912, %v913
  %v915 = vsel %vm877, %v765, 0.0
  %v916 = vadd.f32 %v914, %v915
  %v917 = vsel %vm877, %v768, 0.0
  %v918 = vadd.f32 %v916, %v917
  %v919 = vsel %vm877, %v770, 0.0
  %v920 = vadd.f32 %v918, %v919
  %v921 = vsel %vm877, %v773, 0.0
  %v922 = vadd.f32 %v920, %v921
  %v923 = vsel %vm877, %v775, 0.0
  %v924 = vadd.f32 %v922, %v923
  %v925 = vsel %vm877, %v778, 0.0
  %v926 = vadd.f32 %v924, %v925
  %v927 = vsel %vm877, %v780, 0.0
  %v928 = vadd.f32 %v926, %v927
  %v929 = vsel %vm877, %v783, 0.0
  %v930 = vadd.f32 %v928, %v929
  %v931 = vsel %vm877, %v785, 0.0
  %v932 = vadd.f32 %v930, %v931
  %v933 = vsel %vm877, %v788, 0.0
  %v934 = vadd.f32 %v932, %v933
  %v935 = vsel %vm877, %v790, 0.0
  %v936 = vadd.f32 %v934, %v935
  %v937 = vsel %vm877, %v793, 0.0
  %v938 = vadd.f32 %v936, %v937
  %v939 = vsel %vm877, %v795, 0.0
  %v940 = vadd.f32 %v938, %v939
  %v941 = vsel %vm877, %v798, 0.0
  %v942 = vadd.f32 %v940, %v941
  %v943 = vsel %vm877, %v800, 0.0
  %v944 = vadd.f32 %v942, %v943
  %v945 = vsel %vm877, %v803, 0.0
  %v946 = vadd.f32 %v944, %v945
  %v947 = vsel %vm877, %v805, 0.0
  %v948 = vadd.f32 %v946, %v947
  %v949 = vsel %vm877, %v808, 0.0
  %v950 = vadd.f32 %v948, %v949
  %v951 = vsel %vm877, %v810, 0.0
  %v952 = vadd.f32 %v950, %v951
  %v953 = vsel %vm877, %v813, 0.0
  %v954 = vadd.f32 %v952, %v953
  %v955 = vsel %vm877, %v815, 0.0
  %v956 = vadd.f32 %v954, %v955
  %v957 = vsel %vm877, %v818, 0.0
  %v958 = vadd.f32 %v956, %v957
  %v959 = vsel %vm877, %v820, 0.0
  %v960 = vadd.f32 %v958, %v959
  %v961 = vsel %vm877, %v823, 0.0
  %v962 = vadd.f32 %v960, %v961
  %v963 = vsel %vm877, %v825, 0.0
  %v964 = vadd.f32 %v962, %v963
  %v965 = vsel %vm877, %v828, 0.0
  %v966 = vadd.f32 %v964, %v965
  %v967 = vsel %vm877, %v830, 0.0
  %v968 = vadd.f32 %v966, %v967
  %v969 = vsel %vm877, %v833, 0.0
  %v970 = vadd.f32 %v968, %v969
  %v971 = vsel %vm877, %v835, 0.0
  %v972 = vadd.f32 %v970, %v971
  %v973 = vsel %vm877, %v838, 0.0
  %v974 = vadd.f32 %v972, %v973
  %v975 = vsel %vm877, %v840, 0.0
  %v976 = vadd.f32 %v974, %v975
  %v977 = vsel %vm877, %v843, 0.0
  %v978 = vadd.f32 %v976, %v977
  %v979 = vsel %vm877, %v845, 0.0
  %v980 = vadd.f32 %v978, %v979
  %v981 = vsel %vm877, %v848, 0.0
  %v982 = vadd.f32 %v980, %v981
  %v983 = vsel %vm877, %v850, 0.0
  %v984 = vadd.f32 %v982, %v983
  %v985 = vsel %vm877, %v853, 0.0
  %v986 = vadd.f32 %v984, %v985
  %v987 = vsel %vm877, %v855, 0.0
  %v988 = vadd.f32 %v986, %v987
  %v989 = vsel %vm877, %v858, 0.0
  %v990 = vadd.f32 %v988, %v989
  %v991 = vsel %vm877, %v860, 0.0
  %v992 = vadd.f32 %v990, %v991
  %v993 = vsel %vm877, %v863, 0.0
  %v994 = vadd.f32 %v992, %v993
  %v995 = vsel %vm877, %v865, 0.0
  %v996 = vadd.f32 %v994, %v995
  %v997 = vsel %vm877, %v868, 0.0
  %v998 = vadd.f32 %v996, %v997
  %v999 = vsel %vm877, %v870, 0.0
  %v1000 = vadd.f32 %v998, %v999
  %v1001 = vsel %vm877, %v873, 0.0
  %v1002 = vadd.f32 %v1000, %v1001
  %v1003 = vsel %vm877, %v875, 0.0
  %v1004 = vadd.f32 %v1002, %v1003
  %v1005 = vrot.slane %v1004, 4
  %v1006 = vadd.f32 %v1004, %v1005
  %v1007 = vrot.slane %v1006, 2
  %v1008 = vadd.f32 %v1006, %v1007
  %v1009 = vrot.slane %v1008, 1
  %v1010 = vadd.f32 %v1008, %v1009
  %1012 = vrot.lane.b32.xlu0 %v1010, 120
  %v1013 = vpop.permute.xlu0 %1012
  %v1015 = vadd.f32 %v1010, %v1013
  %1016 = vrot.lane.b32.xlu0 %v1010, 112
  %v1017 = vpop.permute.xlu0 %1016
  %v1019 = vadd.f32 %v1015, %v1017
  %1020 = vrot.lane.b32.xlu0 %v1010, 104
  %v1021 = vpop.permute.xlu0 %1020
  %v1023 = vadd.f32 %v1019, %v1021
  %v1024 = vmul.f32 %v1023, 0.00048828125
  %1026 = vrot.lane.b32.xlu0 %v1024, 8
  %v1027 = vpop.permute.xlu0 %1026
  %1029 = vrot.lane.b32.xlu0 %v1024, 16
  %v1030 = vpop.permute.xlu0 %1029
  %1032 = vrot.lane.b32.xlu0 %v1024, 24
  %v1033 = vpop.permute.xlu0 %1032
  %vm1035 = vcmask 64512
  %v1036 = vsel %vm1035, %v1024, %v1027
  %v1037 = vsel %vm442, %v1036, %v1030
  %vm1038 = vcmask 195584
  %v1039 = vsel %vm1038, %v1037, %v1033
  %v1040 = vperm.slane %v1039, 0
  %v1041 = vsub.f32 %v718, %v1040
  %v1042 = vsub.f32 %v720, %v1040
  %v1043 = vsub.f32 %v723, %v1040
  %v1044 = vsub.f32 %v725, %v1040
  %v1045 = vsub.f32 %v728, %v1040
  %v1046 = vsub.f32 %v730, %v1040
  %v1047 = vsub.f32 %v733, %v1040
  %v1048 = vsub.f32 %v735, %v1040
  %v1049 = vsub.f32 %v738, %v1040
  %v1050 = vsub.f32 %v740, %v1040
  %v1051 = vsub.f32 %v743, %v1040
  %v1052 = vsub.f32 %v745, %v1040
  %v1053 = vsub.f32 %v748, %v1040
  %v1054 = vsub.f32 %v750, %v1040
  %v1055 = vsub.f32 %v753, %v1040
  %v1056 = vsub.f32 %v755, %v1040
  %v1057 = vsub.f32 %v758, %v1040
  %v1058 = vsub.f32 %v760, %v1040
  %v1059 = vsub.f32 %v763, %v1040
  %v1060 = vsub.f32 %v765, %v1040
  %v1061 = vsub.f32 %v768, %v1040
  %v1062 = vsub.f32 %v770, %v1040
  %v1063 = vsub.f32 %v773, %v1040
  %v1064 = vsub.f32 %v775, %v1040
  %v1065 = vsub.f32 %v778, %v1040
  %v1066 = vsub.f32 %v780, %v1040
  %v1067 = vsub.f32 %v783, %v1040
  %v1068 = vsub.f32 %v785, %v1040
  %v1069 = vsub.f32 %v788, %v1040
  %v1070 = vsub.f32 %v790, %v1040
  %v1071 = vsub.f32 %v793, %v1040
  %v1072 = vsub.f32 %v795, %v1040
  %v1073 = vsub.f32 %v798, %v1040
  %v1074 = vsub.f32 %v800, %v1040
  %v1075 = vsub.f32 %v803, %v1040
  %v1076 = vsub.f32 %v805, %v1040
  %v1077 = vsub.f32 %v808, %v1040
  %v1078 = vsub.f32 %v810, %v1040
  %v1079 = vsub.f32 %v813, %v1040
  %v1080 = vsub.f32 %v815, %v1040
  %v1081 = vsub.f32 %v818, %v1040
  %v1082 = vsub.f32 %v820, %v1040
  %v1083 = vsub.f32 %v823, %v1040
  %v1084 = vsub.f32 %v825, %v1040
  %v1085 = vsub.f32 %v828, %v1040
  %v1086 = vsub.f32 %v830, %v1040
  %v1087 = vsub.f32 %v833, %v1040
  %v1088 = vsub.f32 %v835, %v1040
  %v1089 = vsub.f32 %v838, %v1040
  %v1090 = vsub.f32 %v840, %v1040
  %v1091 = vsub.f32 %v843, %v1040
  %v1092 = vsub.f32 %v845, %v1040
  %v1093 = vsub.f32 %v848, %v1040
  %v1094 = vsub.f32 %v850, %v1040
  %v1095 = vsub.f32 %v853, %v1040
  %v1096 = vsub.f32 %v855, %v1040
  %v1097 = vsub.f32 %v858, %v1040
  %v1098 = vsub.f32 %v860, %v1040
  %v1099 = vsub.f32 %v863, %v1040
  %v1100 = vsub.f32 %v865, %v1040
  %v1101 = vsub.f32 %v868, %v1040
  %v1102 = vsub.f32 %v870, %v1040
  %v1103 = vsub.f32 %v873, %v1040
  %v1104 = vsub.f32 %v875, %v1040
  %v1105 = vmul.f32 %v1041, %v1041
  %v1106 = vmul.f32 %v1042, %v1042
  %v1107 = vmul.f32 %v1043, %v1043
  %v1108 = vmul.f32 %v1044, %v1044
  %v1109 = vmul.f32 %v1045, %v1045
  %v1110 = vmul.f32 %v1046, %v1046
  %v1111 = vmul.f32 %v1047, %v1047
  %v1112 = vmul.f32 %v1048, %v1048
  %v1113 = vmul.f32 %v1049, %v1049
  %v1114 = vmul.f32 %v1050, %v1050
  %v1115 = vmul.f32 %v1051, %v1051
  %v1116 = vmul.f32 %v1052, %v1052
  %v1117 = vmul.f32 %v1053, %v1053
  %v1118 = vmul.f32 %v1054, %v1054
  %v1119 = vmul.f32 %v1055, %v1055
  %v1120 = vmul.f32 %v1056, %v1056
  %v1121 = vmul.f32 %v1057, %v1057
  %v1122 = vmul.f32 %v1058, %v1058
  %v1123 = vmul.f32 %v1059, %v1059
  %v1124 = vmul.f32 %v1060, %v1060
  %v1125 = vmul.f32 %v1061, %v1061
  %v1126 = vmul.f32 %v1062, %v1062
  %v1127 = vmul.f32 %v1063, %v1063
  %v1128 = vmul.f32 %v1064, %v1064
  %v1129 = vmul.f32 %v1065, %v1065
  %v1130 = vmul.f32 %v1066, %v1066
  %v1131 = vmul.f32 %v1067, %v1067
  %v1132 = vmul.f32 %v1068, %v1068
  %v1133 = vmul.f32 %v1069, %v1069
  %v1134 = vmul.f32 %v1070, %v1070
  %v1135 = vmul.f32 %v1071, %v1071
  %v1136 = vmul.f32 %v1072, %v1072
  %v1137 = vmul.f32 %v1073, %v1073
  %v1138 = vmul.f32 %v1074, %v1074
  %v1139 = vmul.f32 %v1075, %v1075
  %v1140 = vmul.f32 %v1076, %v1076
  %v1141 = vmul.f32 %v1077, %v1077
  %v1142 = vmul.f32 %v1078, %v1078
  %v1143 = vmul.f32 %v1079, %v1079
  %v1144 = vmul.f32 %v1080, %v1080
  %v1145 = vmul.f32 %v1081, %v1081
  %v1146 = vmul.f32 %v1082, %v1082
  %v1147 = vmul.f32 %v1083, %v1083
  %v1148 = vmul.f32 %v1084, %v1084
  %v1149 = vmul.f32 %v1085, %v1085
  %v1150 = vmul.f32 %v1086, %v1086
  %v1151 = vmul.f32 %v1087, %v1087
  %v1152 = vmul.f32 %v1088, %v1088
  %v1153 = vmul.f32 %v1089, %v1089
  %v1154 = vmul.f32 %v1090, %v1090
  %v1155 = vmul.f32 %v1091, %v1091
  %v1156 = vmul.f32 %v1092, %v1092
  %v1157 = vmul.f32 %v1093, %v1093
  %v1158 = vmul.f32 %v1094, %v1094
  %v1159 = vmul.f32 %v1095, %v1095
  %v1160 = vmul.f32 %v1096, %v1096
  %v1161 = vmul.f32 %v1097, %v1097
  %v1162 = vmul.f32 %v1098, %v1098
  %v1163 = vmul.f32 %v1099, %v1099
  %v1164 = vmul.f32 %v1100, %v1100
  %v1165 = vmul.f32 %v1101, %v1101
  %v1166 = vmul.f32 %v1102, %v1102
  %v1167 = vmul.f32 %v1103, %v1103
  %v1168 = vmul.f32 %v1104, %v1104
  %v1169 = vsel %vm877, %v1105, 0.0
  %v1170 = vsel %vm877, %v1106, 0.0
  %v1171 = vadd.f32 %v1169, %v1170
  %v1172 = vsel %vm877, %v1107, 0.0
  %v1173 = vadd.f32 %v1171, %v1172
  %v1174 = vsel %vm877, %v1108, 0.0
  %v1175 = vadd.f32 %v1173, %v1174
  %v1176 = vsel %vm877, %v1109, 0.0
  %v1177 = vadd.f32 %v1175, %v1176
  %v1178 = vsel %vm877, %v1110, 0.0
  %v1179 = vadd.f32 %v1177, %v1178
  %v1180 = vsel %vm877, %v1111, 0.0
  %v1181 = vadd.f32 %v1179, %v1180
  %v1182 = vsel %vm877, %v1112, 0.0
  %v1183 = vadd.f32 %v1181, %v1182
  %v1184 = vsel %vm877, %v1113, 0.0
  %v1185 = vadd.f32 %v1183, %v1184
  %v1186 = vsel %vm877, %v1114, 0.0
  %v1187 = vadd.f32 %v1185, %v1186
  %v1188 = vsel %vm877, %v1115, 0.0
  %v1189 = vadd.f32 %v1187, %v1188
  %v1190 = vsel %vm877, %v1116, 0.0
  %v1191 = vadd.f32 %v1189, %v1190
  %v1192 = vsel %vm877, %v1117, 0.0
  %v1193 = vadd.f32 %v1191, %v1192
  %v1194 = vsel %vm877, %v1118, 0.0
  %v1195 = vadd.f32 %v1193, %v1194
  %v1196 = vsel %vm877, %v1119, 0.0
  %v1197 = vadd.f32 %v1195, %v1196
  %v1198 = vsel %vm877, %v1120, 0.0
  %v1199 = vadd.f32 %v1197, %v1198
  %v1200 = vsel %vm877, %v1121, 0.0
  %v1201 = vadd.f32 %v1199, %v1200
  %v1202 = vsel %vm877, %v1122, 0.0
  %v1203 = vadd.f32 %v1201, %v1202
  %v1204 = vsel %vm877, %v1123, 0.0
  %v1205 = vadd.f32 %v1203, %v1204
  %v1206 = vsel %vm877, %v1124, 0.0
  %v1207 = vadd.f32 %v1205, %v1206
  %v1208 = vsel %vm877, %v1125, 0.0
  %v1209 = vadd.f32 %v1207, %v1208
  %v1210 = vsel %vm877, %v1126, 0.0
  %v1211 = vadd.f32 %v1209, %v1210
  %v1212 = vsel %vm877, %v1127, 0.0
  %v1213 = vadd.f32 %v1211, %v1212
  %v1214 = vsel %vm877, %v1128, 0.0
  %v1215 = vadd.f32 %v1213, %v1214
  %v1216 = vsel %vm877, %v1129, 0.0
  %v1217 = vadd.f32 %v1215, %v1216
  %v1218 = vsel %vm877, %v1130, 0.0
  %v1219 = vadd.f32 %v1217, %v1218
  %v1220 = vsel %vm877, %v1131, 0.0
  %v1221 = vadd.f32 %v1219, %v1220
  %v1222 = vsel %vm877, %v1132, 0.0
  %v1223 = vadd.f32 %v1221, %v1222
  %v1224 = vsel %vm877, %v1133, 0.0
  %v1225 = vadd.f32 %v1223, %v1224
  %v1226 = vsel %vm877, %v1134, 0.0
  %v1227 = vadd.f32 %v1225, %v1226
  %v1228 = vsel %vm877, %v1135, 0.0
  %v1229 = vadd.f32 %v1227, %v1228
  %v1230 = vsel %vm877, %v1136, 0.0
  %v1231 = vadd.f32 %v1229, %v1230
  %v1232 = vsel %vm877, %v1137, 0.0
  %v1233 = vadd.f32 %v1231, %v1232
  %v1234 = vsel %vm877, %v1138, 0.0
  %v1235 = vadd.f32 %v1233, %v1234
  %v1236 = vsel %vm877, %v1139, 0.0
  %v1237 = vadd.f32 %v1235, %v1236
  %v1238 = vsel %vm877, %v1140, 0.0
  %v1239 = vadd.f32 %v1237, %v1238
  %v1240 = vsel %vm877, %v1141, 0.0
  %v1241 = vadd.f32 %v1239, %v1240
  %v1242 = vsel %vm877, %v1142, 0.0
  %v1243 = vadd.f32 %v1241, %v1242
  %v1244 = vsel %vm877, %v1143, 0.0
  %v1245 = vadd.f32 %v1243, %v1244
  %v1246 = vsel %vm877, %v1144, 0.0
  %v1247 = vadd.f32 %v1245, %v1246
  %v1248 = vsel %vm877, %v1145, 0.0
  %v1249 = vadd.f32 %v1247, %v1248
  %v1250 = vsel %vm877, %v1146, 0.0
  %v1251 = vadd.f32 %v1249, %v1250
  %v1252 = vsel %vm877, %v1147, 0.0
  %v1253 = vadd.f32 %v1251, %v1252
  %v1254 = vsel %vm877, %v1148, 0.0
  %v1255 = vadd.f32 %v1253, %v1254
  %v1256 = vsel %vm877, %v1149, 0.0
  %v1257 = vadd.f32 %v1255, %v1256
  %v1258 = vsel %vm877, %v1150, 0.0
  %v1259 = vadd.f32 %v1257, %v1258
  %v1260 = vsel %vm877, %v1151, 0.0
  %v1261 = vadd.f32 %v1259, %v1260
  %v1262 = vsel %vm877, %v1152, 0.0
  %v1263 = vadd.f32 %v1261, %v1262
  %v1264 = vsel %vm877, %v1153, 0.0
  %v1265 = vadd.f32 %v1263, %v1264
  %v1266 = vsel %vm877, %v1154, 0.0
  %v1267 = vadd.f32 %v1265, %v1266
  %v1268 = vsel %vm877, %v1155, 0.0
  %v1269 = vadd.f32 %v1267, %v1268
  %v1270 = vsel %vm877, %v1156, 0.0
  %v1271 = vadd.f32 %v1269, %v1270
  %v1272 = vsel %vm877, %v1157, 0.0
  %v1273 = vadd.f32 %v1271, %v1272
  %v1274 = vsel %vm877, %v1158, 0.0
  %v1275 = vadd.f32 %v1273, %v1274
  %v1276 = vsel %vm877, %v1159, 0.0
  %v1277 = vadd.f32 %v1275, %v1276
  %v1278 = vsel %vm877, %v1160, 0.0
  %v1279 = vadd.f32 %v1277, %v1278
  %v1280 = vsel %vm877, %v1161, 0.0
  %v1281 = vadd.f32 %v1279, %v1280
  %v1282 = vsel %vm877, %v1162, 0.0
  %v1283 = vadd.f32 %v1281, %v1282
  %v1284 = vsel %vm877, %v1163, 0.0
  %v1285 = vadd.f32 %v1283, %v1284
  %v1286 = vsel %vm877, %v1164, 0.0
  %v1287 = vadd.f32 %v1285, %v1286
  %v1288 = vsel %vm877, %v1165, 0.0
  %v1289 = vadd.f32 %v1287, %v1288
  %v1290 = vsel %vm877, %v1166, 0.0
  %v1291 = vadd.f32 %v1289, %v1290
  %v1292 = vsel %vm877, %v1167, 0.0
  %v1293 = vadd.f32 %v1291, %v1292
  %v1294 = vsel %vm877, %v1168, 0.0
  %v1295 = vadd.f32 %v1293, %v1294
  %v1296 = vrot.slane %v1295, 4
  %v1297 = vadd.f32 %v1295, %v1296
  %v1298 = vrot.slane %v1297, 2
  %v1299 = vadd.f32 %v1297, %v1298
  %v1300 = vrot.slane %v1299, 1
  %v1301 = vadd.f32 %v1299, %v1300
  %1303 = vrot.lane.b32.xlu0 %v1301, 120
  %v1304 = vpop.permute.xlu0 %1303
  %v1306 = vadd.f32 %v1301, %v1304
  %1307 = vrot.lane.b32.xlu0 %v1301, 112
  %v1308 = vpop.permute.xlu0 %1307
  %v1310 = vadd.f32 %v1306, %v1308
  %1311 = vrot.lane.b32.xlu0 %v1301, 104
  %v1312 = vpop.permute.xlu0 %1311
  %v1314 = vadd.f32 %v1310, %v1312
  %v1315 = vmul.f32 %v1314, 0.00048828125
  %1317 = vrot.lane.b32.xlu0 %v1315, 8
  %v1318 = vpop.permute.xlu0 %1317
  %1320 = vrot.lane.b32.xlu0 %v1315, 16
  %v1321 = vpop.permute.xlu0 %1320
  %1323 = vrot.lane.b32.xlu0 %v1315, 24
  %v1324 = vpop.permute.xlu0 %1323
  %v1326 = vsel %vm1035, %v1315, %v1318
  %v1327 = vsel %vm442, %v1326, %v1321
  %v1328 = vsel %vm1038, %v1327, %v1324
  %v1329 = vadd.f32 %v1328, 1e-05
  %v1330 = vrsqrt.pop %v1329
  %v1331 = vmul.f32 %v1330, %v1329
  %v1332 = vmul.f32 %v1331, %v1330
  %v1333 = vmul.f32 0.5, %v1332
  %v1334 = vsub.f32 1.5, %v1333
  %v1335 = vmul.f32 %v1330, %v1334
  %vm1336 = vweird.f32 %v1329
  %vm1337 = vweird.f32 %v1330
  %vm1338 = vmor %vm1336, %vm1337
  %v1339 = vsel %vm1338, %v1330, %v1335
  %v1340 = vperm.slane %v1339, 0
  %v1341 = vmul.f32 %v1041, %v1340
  %v1342 = vmul.f32 %v1042, %v1340
  %v1343 = vmul.f32 %v1043, %v1340
  %v1344 = vmul.f32 %v1044, %v1340
  %v1345 = vmul.f32 %v1045, %v1340
  %v1346 = vmul.f32 %v1046, %v1340
  %v1347 = vmul.f32 %v1047, %v1340
  %v1348 = vmul.f32 %v1048, %v1340
  %v1349 = vmul.f32 %v1049, %v1340
  %v1350 = vmul.f32 %v1050, %v1340
  %v1351 = vmul.f32 %v1051, %v1340
  %v1352 = vmul.f32 %v1052, %v1340
  %v1353 = vmul.f32 %v1053, %v1340
  %v1354 = vmul.f32 %v1054, %v1340
  %v1355 = vmul.f32 %v1055, %v1340
  %v1356 = vmul.f32 %v1056, %v1340
  %v1357 = vmul.f32 %v1057, %v1340
  %v1358 = vmul.f32 %v1058, %v1340
  %v1359 = vmul.f32 %v1059, %v1340
  %v1360 = vmul.f32 %v1060, %v1340
  %v1361 = vmul.f32 %v1061, %v1340
  %v1362 = vmul.f32 %v1062, %v1340
  %v1363 = vmul.f32 %v1063, %v1340
  %v1364 = vmul.f32 %v1064, %v1340
  %v1365 = vmul.f32 %v1065, %v1340
  %v1366 = vmul.f32 %v1066, %v1340
  %v1367 = vmul.f32 %v1067, %v1340
  %v1368 = vmul.f32 %v1068, %v1340
  %v1369 = vmul.f32 %v1069, %v1340
  %v1370 = vmul.f32 %v1070, %v1340
  %v1371 = vmul.f32 %v1071, %v1340
  %v1372 = vmul.f32 %v1072, %v1340
  %v1373 = vmul.f32 %v1073, %v1340
  %v1374 = vmul.f32 %v1074, %v1340
  %v1375 = vmul.f32 %v1075, %v1340
  %v1376 = vmul.f32 %v1076, %v1340
  %v1377 = vmul.f32 %v1077, %v1340
  %v1378 = vmul.f32 %v1078, %v1340
  %v1379 = vmul.f32 %v1079, %v1340
  %v1380 = vmul.f32 %v1080, %v1340
  %v1381 = vmul.f32 %v1081, %v1340
  %v1382 = vmul.f32 %v1082, %v1340
  %v1383 = vmul.f32 %v1083, %v1340
  %v1384 = vmul.f32 %v1084, %v1340
  %v1385 = vmul.f32 %v1085, %v1340
  %v1386 = vmul.f32 %v1086, %v1340
  %v1387 = vmul.f32 %v1087, %v1340
  %v1388 = vmul.f32 %v1088, %v1340
  %v1389 = vmul.f32 %v1089, %v1340
  %v1390 = vmul.f32 %v1090, %v1340
  %v1391 = vmul.f32 %v1091, %v1340
  %v1392 = vmul.f32 %v1092, %v1340
  %v1393 = vmul.f32 %v1093, %v1340
  %v1394 = vmul.f32 %v1094, %v1340
  %v1395 = vmul.f32 %v1095, %v1340
  %v1396 = vmul.f32 %v1096, %v1340
  %v1397 = vmul.f32 %v1097, %v1340
  %v1398 = vmul.f32 %v1098, %v1340
  %v1399 = vmul.f32 %v1099, %v1340
  %v1400 = vmul.f32 %v1100, %v1340
  %v1401 = vmul.f32 %v1101, %v1340
  %v1402 = vmul.f32 %v1102, %v1340
  %v1403 = vmul.f32 %v1103, %v1340
  %v1404 = vmul.f32 %v1104, %v1340
  %v1405 = vld [vmem:[%s2] sm:$0x1]
  %v1407 = vperm.slane %v1405, 0
  %v1409 = vmul.f32 %v1341, %v1407
  %v1410 = vmul.f32 %v1342, %v1407
  %v1411 = vmul.f32 %v1343, %v1407
  %v1412 = vmul.f32 %v1344, %v1407
  %v1413 = vmul.f32 %v1345, %v1407
  %v1414 = vmul.f32 %v1346, %v1407
  %v1415 = vmul.f32 %v1347, %v1407
  %v1416 = vmul.f32 %v1348, %v1407
  %v1417 = vmul.f32 %v1349, %v1407
  %v1418 = vmul.f32 %v1350, %v1407
  %v1419 = vmul.f32 %v1351, %v1407
  %v1420 = vmul.f32 %v1352, %v1407
  %v1421 = vmul.f32 %v1353, %v1407
  %v1422 = vmul.f32 %v1354, %v1407
  %v1423 = vmul.f32 %v1355, %v1407
  %v1424 = vmul.f32 %v1356, %v1407
  %v1425 = vmul.f32 %v1357, %v1407
  %v1426 = vmul.f32 %v1358, %v1407
  %v1427 = vmul.f32 %v1359, %v1407
  %v1428 = vmul.f32 %v1360, %v1407
  %v1429 = vmul.f32 %v1361, %v1407
  %v1430 = vmul.f32 %v1362, %v1407
  %v1431 = vmul.f32 %v1363, %v1407
  %v1432 = vmul.f32 %v1364, %v1407
  %v1433 = vmul.f32 %v1365, %v1407
  %v1434 = vmul.f32 %v1366, %v1407
  %v1435 = vmul.f32 %v1367, %v1407
  %v1436 = vmul.f32 %v1368, %v1407
  %v1437 = vmul.f32 %v1369, %v1407
  %v1438 = vmul.f32 %v1370, %v1407
  %v1439 = vmul.f32 %v1371, %v1407
  %v1440 = vmul.f32 %v1372, %v1407
  %v1441 = vmul.f32 %v1373, %v1407
  %v1442 = vmul.f32 %v1374, %v1407
  %v1443 = vmul.f32 %v1375, %v1407
  %v1444 = vmul.f32 %v1376, %v1407
  %v1445 = vmul.f32 %v1377, %v1407
  %v1446 = vmul.f32 %v1378, %v1407
  %v1447 = vmul.f32 %v1379, %v1407
  %v1448 = vmul.f32 %v1380, %v1407
  %v1449 = vmul.f32 %v1381, %v1407
  %v1450 = vmul.f32 %v1382, %v1407
  %v1451 = vmul.f32 %v1383, %v1407
  %v1452 = vmul.f32 %v1384, %v1407
  %v1453 = vmul.f32 %v1385, %v1407
  %v1454 = vmul.f32 %v1386, %v1407
  %v1455 = vmul.f32 %v1387, %v1407
  %v1456 = vmul.f32 %v1388, %v1407
  %v1457 = vmul.f32 %v1389, %v1407
  %v1458 = vmul.f32 %v1390, %v1407
  %v1459 = vmul.f32 %v1391, %v1407
  %v1460 = vmul.f32 %v1392, %v1407
  %v1461 = vmul.f32 %v1393, %v1407
  %v1462 = vmul.f32 %v1394, %v1407
  %v1463 = vmul.f32 %v1395, %v1407
  %v1464 = vmul.f32 %v1396, %v1407
  %v1465 = vmul.f32 %v1397, %v1407
  %v1466 = vmul.f32 %v1398, %v1407
  %v1467 = vmul.f32 %v1399, %v1407
  %v1468 = vmul.f32 %v1400, %v1407
  %v1469 = vmul.f32 %v1401, %v1407
  %v1470 = vmul.f32 %v1402, %v1407
  %v1471 = vmul.f32 %v1403, %v1407
  %v1472 = vmul.f32 %v1404, %v1407
  %v1473 = vld [vmem:[%s3] sm:$0x1]
  %v1475 = vperm.slane %v1473, 0
  %v1477 = vadd.f32 %v1409, %v1475
  %v1478 = vadd.f32 %v1410, %v1475
  %v1479 = vadd.f32 %v1411, %v1475
  %v1480 = vadd.f32 %v1412, %v1475
  %v1481 = vadd.f32 %v1413, %v1475
  %v1482 = vadd.f32 %v1414, %v1475
  %v1483 = vadd.f32 %v1415, %v1475
  %v1484 = vadd.f32 %v1416, %v1475
  %v1485 = vadd.f32 %v1417, %v1475
  %v1486 = vadd.f32 %v1418, %v1475
  %v1487 = vadd.f32 %v1419, %v1475
  %v1488 = vadd.f32 %v1420, %v1475
  %v1489 = vadd.f32 %v1421, %v1475
  %v1490 = vadd.f32 %v1422, %v1475
  %v1491 = vadd.f32 %v1423, %v1475
  %v1492 = vadd.f32 %v1424, %v1475
  %v1493 = vadd.f32 %v1425, %v1475
  %v1494 = vadd.f32 %v1426, %v1475
  %v1495 = vadd.f32 %v1427, %v1475
  %v1496 = vadd.f32 %v1428, %v1475
  %v1497 = vadd.f32 %v1429, %v1475
  %v1498 = vadd.f32 %v1430, %v1475
  %v1499 = vadd.f32 %v1431, %v1475
  %v1500 = vadd.f32 %v1432, %v1475
  %v1501 = vadd.f32 %v1433, %v1475
  %v1502 = vadd.f32 %v1434, %v1475
  %v1503 = vadd.f32 %v1435, %v1475
  %v1504 = vadd.f32 %v1436, %v1475
  %v1505 = vadd.f32 %v1437, %v1475
  %v1506 = vadd.f32 %v1438, %v1475
  %v1507 = vadd.f32 %v1439, %v1475
  %v1508 = vadd.f32 %v1440, %v1475
  %v1509 = vadd.f32 %v1441, %v1475
  %v1510 = vadd.f32 %v1442, %v1475
  %v1511 = vadd.f32 %v1443, %v1475
  %v1512 = vadd.f32 %v1444, %v1475
  %v1513 = vadd.f32 %v1445, %v1475
  %v1514 = vadd.f32 %v1446, %v1475
  %v1515 = vadd.f32 %v1447, %v1475
  %v1516 = vadd.f32 %v1448, %v1475
  %v1517 = vadd.f32 %v1449, %v1475
  %v1518 = vadd.f32 %v1450, %v1475
  %v1519 = vadd.f32 %v1451, %v1475
  %v1520 = vadd.f32 %v1452, %v1475
  %v1521 = vadd.f32 %v1453, %v1475
  %v1522 = vadd.f32 %v1454, %v1475
  %v1523 = vadd.f32 %v1455, %v1475
  %v1524 = vadd.f32 %v1456, %v1475
  %v1525 = vadd.f32 %v1457, %v1475
  %v1526 = vadd.f32 %v1458, %v1475
  %v1527 = vadd.f32 %v1459, %v1475
  %v1528 = vadd.f32 %v1460, %v1475
  %v1529 = vadd.f32 %v1461, %v1475
  %v1530 = vadd.f32 %v1462, %v1475
  %v1531 = vadd.f32 %v1463, %v1475
  %v1532 = vadd.f32 %v1464, %v1475
  %v1533 = vadd.f32 %v1465, %v1475
  %v1534 = vadd.f32 %v1466, %v1475
  %v1535 = vadd.f32 %v1467, %v1475
  %v1536 = vadd.f32 %v1468, %v1475
  %v1537 = vadd.f32 %v1469, %v1475
  %v1538 = vadd.f32 %v1470, %v1475
  %v1539 = vadd.f32 %v1471, %v1475
  %v1540 = vadd.f32 %v1472, %v1475
  %v1541 = vmax.f32 %v1477, 0.0
  %v1542 = vmax.f32 %v1478, 0.0
  %v1543 = vmax.f32 %v1479, 0.0
  %v1544 = vmax.f32 %v1480, 0.0
  %v1545 = vmax.f32 %v1481, 0.0
  %v1546 = vmax.f32 %v1482, 0.0
  %v1547 = vmax.f32 %v1483, 0.0
  %v1548 = vmax.f32 %v1484, 0.0
  %v1549 = vmax.f32 %v1485, 0.0
  %v1550 = vmax.f32 %v1486, 0.0
  %v1551 = vmax.f32 %v1487, 0.0
  %v1552 = vmax.f32 %v1488, 0.0
  %v1553 = vmax.f32 %v1489, 0.0
  %v1554 = vmax.f32 %v1490, 0.0
  %v1555 = vmax.f32 %v1491, 0.0
  %v1556 = vmax.f32 %v1492, 0.0
  %v1557 = vmax.f32 %v1493, 0.0
  %v1558 = vmax.f32 %v1494, 0.0
  %v1559 = vmax.f32 %v1495, 0.0
  %v1560 = vmax.f32 %v1496, 0.0
  %v1561 = vmax.f32 %v1497, 0.0
  %v1562 = vmax.f32 %v1498, 0.0
  %v1563 = vmax.f32 %v1499, 0.0
  %v1564 = vmax.f32 %v1500, 0.0
  %v1565 = vmax.f32 %v1501, 0.0
  %v1566 = vmax.f32 %v1502, 0.0
  %v1567 = vmax.f32 %v1503, 0.0
  %v1568 = vmax.f32 %v1504, 0.0
  %v1569 = vmax.f32 %v1505, 0.0
  %v1570 = vmax.f32 %v1506, 0.0
  %v1571 = vmax.f32 %v1507, 0.0
  %v1572 = vmax.f32 %v1508, 0.0
  %v1573 = vmax.f32 %v1509, 0.0
  %v1574 = vmax.f32 %v1510, 0.0
  %v1575 = vmax.f32 %v1511, 0.0
  %v1576 = vmax.f32 %v1512, 0.0
  %v1577 = vmax.f32 %v1513, 0.0
  %v1578 = vmax.f32 %v1514, 0.0
  %v1579 = vmax.f32 %v1515, 0.0
  %v1580 = vmax.f32 %v1516, 0.0
  %v1581 = vmax.f32 %v1517, 0.0
  %v1582 = vmax.f32 %v1518, 0.0
  %v1583 = vmax.f32 %v1519, 0.0
  %v1584 = vmax.f32 %v1520, 0.0
  %v1585 = vmax.f32 %v1521, 0.0
  %v1586 = vmax.f32 %v1522, 0.0
  %v1587 = vmax.f32 %v1523, 0.0
  %v1588 = vmax.f32 %v1524, 0.0
  %v1589 = vmax.f32 %v1525, 0.0
  %v1590 = vmax.f32 %v1526, 0.0
  %v1591 = vmax.f32 %v1527, 0.0
  %v1592 = vmax.f32 %v1528, 0.0
  %v1593 = vmax.f32 %v1529, 0.0
  %v1594 = vmax.f32 %v1530, 0.0
  %v1595 = vmax.f32 %v1531, 0.0
  %v1596 = vmax.f32 %v1532, 0.0
  %v1597 = vmax.f32 %v1533, 0.0
  %v1598 = vmax.f32 %v1534, 0.0
  %v1599 = vmax.f32 %v1535, 0.0
  %v1600 = vmax.f32 %v1536, 0.0
  %v1601 = vmax.f32 %v1537, 0.0
  %v1602 = vmax.f32 %v1538, 0.0
  %v1603 = vmax.f32 %v1539, 0.0
  %v1604 = vmax.f32 %v1540, 0.0
  %1605 = vst.msk [vmem:[%s4] sm:$0xff] %vm877, %v1541
  %1606 = vst.msk [vmem:[%s4 + $0x8] sm:$0xff] %vm877, %v1542
  %1607 = vst.msk [vmem:[%s4 + $0x10] sm:$0xff] %vm877, %v1543
  %1608 = vst.msk [vmem:[%s4 + $0x18] sm:$0xff] %vm877, %v1544
  %1609 = vst.msk [vmem:[%s4 + $0x20] sm:$0xff] %vm877, %v1545
  %1610 = vst.msk [vmem:[%s4 + $0x28] sm:$0xff] %vm877, %v1546
  %1611 = vst.msk [vmem:[%s4 + $0x30] sm:$0xff] %vm877, %v1547
  %1612 = vst.msk [vmem:[%s4 + $0x38] sm:$0xff] %vm877, %v1548
  %1613 = vst.msk [vmem:[%s4 + $0x40] sm:$0xff] %vm877, %v1549
  %1614 = vst.msk [vmem:[%s4 + $0x48] sm:$0xff] %vm877, %v1550
  %1615 = vst.msk [vmem:[%s4 + $0x50] sm:$0xff] %vm877, %v1551
  %1616 = vst.msk [vmem:[%s4 + $0x58] sm:$0xff] %vm877, %v1552
  %1617 = vst.msk [vmem:[%s4 + $0x60] sm:$0xff] %vm877, %v1553
  %1618 = vst.msk [vmem:[%s4 + $0x68] sm:$0xff] %vm877, %v1554
  %1619 = vst.msk [vmem:[%s4 + $0x70] sm:$0xff] %vm877, %v1555
  %1620 = vst.msk [vmem:[%s4 + $0x78] sm:$0xff] %vm877, %v1556
  %1621 = vst.msk [vmem:[%s4 + $0x80] sm:$0xff] %vm877, %v1557
  %1622 = vst.msk [vmem:[%s4 + $0x88] sm:$0xff] %vm877, %v1558
  %1623 = vst.msk [vmem:[%s4 + $0x90] sm:$0xff] %vm877, %v1559
  %1624 = vst.msk [vmem:[%s4 + $0x98] sm:$0xff] %vm877, %v1560
  %1625 = vst.msk [vmem:[%s4 + $0xa0] sm:$0xff] %vm877, %v1561
  %1626 = vst.msk [vmem:[%s4 + $0xa8] sm:$0xff] %vm877, %v1562
  %1627 = vst.msk [vmem:[%s4 + $0xb0] sm:$0xff] %vm877, %v1563
  %1628 = vst.msk [vmem:[%s4 + $0xb8] sm:$0xff] %vm877, %v1564
  %1629 = vst.msk [vmem:[%s4 + $0xc0] sm:$0xff] %vm877, %v1565
  %1630 = vst.msk [vmem:[%s4 + $0xc8] sm:$0xff] %vm877, %v1566
  %1631 = vst.msk [vmem:[%s4 + $0xd0] sm:$0xff] %vm877, %v1567
  %1632 = vst.msk [vmem:[%s4 + $0xd8] sm:$0xff] %vm877, %v1568
  %1633 = vst.msk [vmem:[%s4 + $0xe0] sm:$0xff] %vm877, %v1569
  %1634 = vst.msk [vmem:[%s4 + $0xe8] sm:$0xff] %vm877, %v1570
  %1635 = vst.msk [vmem:[%s4 + $0xf0] sm:$0xff] %vm877, %v1571
  %1636 = vst.msk [vmem:[%s4 + $0xf8] sm:$0xff] %vm877, %v1572
  %1637 = vst.msk [vmem:[%s4 + $0x100] sm:$0xff] %vm877, %v1573
  %1638 = vst.msk [vmem:[%s4 + $0x108] sm:$0xff] %vm877, %v1574
  %1639 = vst.msk [vmem:[%s4 + $0x110] sm:$0xff] %vm877, %v1575
  %1640 = vst.msk [vmem:[%s4 + $0x118] sm:$0xff] %vm877, %v1576
  %1641 = vst.msk [vmem:[%s4 + $0x120] sm:$0xff] %vm877, %v1577
  %1642 = vst.msk [vmem:[%s4 + $0x128] sm:$0xff] %vm877, %v1578
  %1643 = vst.msk [vmem:[%s4 + $0x130] sm:$0xff] %vm877, %v1579
  %1644 = vst.msk [vmem:[%s4 + $0x138] sm:$0xff] %vm877, %v1580
  %1645 = vst.msk [vmem:[%s4 + $0x140] sm:$0xff] %vm877, %v1581
  %1646 = vst.msk [vmem:[%s4 + $0x148] sm:$0xff] %vm877, %v1582
  %1647 = vst.msk [vmem:[%s4 + $0x150] sm:$0xff] %vm877, %v1583
  %1648 = vst.msk [vmem:[%s4 + $0x158] sm:$0xff] %vm877, %v1584
  %1649 = vst.msk [vmem:[%s4 + $0x160] sm:$0xff] %vm877, %v1585
  %1650 = vst.msk [vmem:[%s4 + $0x168] sm:$0xff] %vm877, %v1586
  %1651 = vst.msk [vmem:[%s4 + $0x170] sm:$0xff] %vm877, %v1587
  %1652 = vst.msk [vmem:[%s4 + $0x178] sm:$0xff] %vm877, %v1588
  %1653 = vst.msk [vmem:[%s4 + $0x180] sm:$0xff] %vm877, %v1589
  %1654 = vst.msk [vmem:[%s4 + $0x188] sm:$0xff] %vm877, %v1590
  %1655 = vst.msk [vmem:[%s4 + $0x190] sm:$0xff] %vm877, %v1591
  %1656 = vst.msk [vmem:[%s4 + $0x198] sm:$0xff] %vm877, %v1592
  %1657 = vst.msk [vmem:[%s4 + $0x1a0] sm:$0xff] %vm877, %v1593
  %1658 = vst.msk [vmem:[%s4 + $0x1a8] sm:$0xff] %vm877, %v1594
  %1659 = vst.msk [vmem:[%s4 + $0x1b0] sm:$0xff] %vm877, %v1595
  %1660 = vst.msk [vmem:[%s4 + $0x1b8] sm:$0xff] %vm877, %v1596
  %1661 = vst.msk [vmem:[%s4 + $0x1c0] sm:$0xff] %vm877, %v1597
  %1662 = vst.msk [vmem:[%s4 + $0x1c8] sm:$0xff] %vm877, %v1598
  %1663 = vst.msk [vmem:[%s4 + $0x1d0] sm:$0xff] %vm877, %v1599
  %1664 = vst.msk [vmem:[%s4 + $0x1d8] sm:$0xff] %vm877, %v1600
  %1665 = vst.msk [vmem:[%s4 + $0x1e0] sm:$0xff] %vm877, %v1601
  %1666 = vst.msk [vmem:[%s4 + $0x1e8] sm:$0xff] %vm877, %v1602
  %1667 = vst.msk [vmem:[%s4 + $0x1f0] sm:$0xff] %vm877, %v1603
  %1668 = vst.msk [vmem:[%s4 + $0x1f8] sm:$0xff] %vm877, %v1604
  // Predicated region
  $region18: #{decoder_forward.6} parent=0 // pred_check
    _
  $region19: #{decoder_forward.6} parent=0 // pred_check_branch
    %1670 = sbr.rel (0) target = $region21
  $region20: #{decoder_forward.6} parent=0 // pred_region
    _
  $region21: #{decoder_forward.6} parent=0 // pred_fallthru
    _
  // Predicated region
  $region22: #{decoder_forward.6} parent=0 // pred_check
    _
  $region23: #{decoder_forward.6} parent=0 // pred_check_branch
    %1672 = sbr.rel (0) target = $region25
  $region24: #{decoder_forward.6} parent=0 // pred_region
    _
  $region25: #{decoder_forward.6} parent=0 // pred_fallthru
    _

// kernel: decoder_forward.7
$region0: #{decoder_forward.7}
  #allocation0 [shape = 'u32[]', space=smem, size = 0x4, offset = 0x4, fixed_abs, tag = 'smem constant byte address 0x4 - core index']
  #allocation1 [shape = 'u32[72,128]{1,0:T(1,128)}', space=vmem, size = 0x9000, scoped, tag = 'internal scratch']
  %s0 = inlined_call_operand.vmem [shape: bf16[4,72], index: 0, kind: input, shape index: {}]
  %s1 = inlined_call_operand.vmem [shape: bf16[72,2048], index: 1, kind: input, shape index: {}]
  %s2 = inlined_call_operand.vmem [shape: f32[1,2048], index: 2, kind: input, shape index: {}]
  %s3 = inlined_call_operand.vmem [shape: f32[4,2048], index: 3, kind: output, shape index: {}]
  %s4 = sld [smem:[#allocation0]]
  $region22: #{decoder_forward.7} parent=0
    _
  %s6 = ssub.s32 1, %s4
  %s7 = scalar_select 0, %s6, %s4
  // Predicated region
  $region2: #{decoder_forward.7} parent=0 // pred_check
    _
  $region3: #{decoder_forward.7} parent=0 // pred_check_branch
    %9 = sbr.rel (0) target = $region5
  $region4: #{decoder_forward.7} parent=0 // pred_region
    _
  $region5: #{decoder_forward.7} parent=0 // pred_fallthru
    _
  // Predicated region
  $region6: #{decoder_forward.7} parent=0 // pred_check
    _
  $region7: #{decoder_forward.7} parent=0 // pred_check_branch
    %11 = sbr.rel (0) target = $region9
  $region8: #{decoder_forward.7} parent=0 // pred_region
    _
  $region9: #{decoder_forward.7} parent=0 // pred_fallthru
    _
  // Predicated region
  $region10: #{decoder_forward.7} parent=0 // pred_check
    _
  $region11: #{decoder_forward.7} parent=0 // pred_check_branch
    %13 = sbr.rel (0) target = $region13
  $region12: #{decoder_forward.7} parent=0 // pred_region
    _
  $region13: #{decoder_forward.7} parent=0 // pred_fallthru
    _
  %v15 = vld [vmem:[%s0] sm:$0x3]
  %v16 = vld [vmem:[%s1] sm:$0xff]
  %v17 = vld [vmem:[%s1 + $0x8] sm:$0xff]
  %v18 = vld [vmem:[%s1 + $0x10] sm:$0xff]
  %v19 = vld [vmem:[%s1 + $0x18] sm:$0xff]
  %v20 = vld [vmem:[%s1 + $0x20] sm:$0xff]
  %v21 = vld [vmem:[%s1 + $0x28] sm:$0xff]
  %v22 = vld [vmem:[%s1 + $0x30] sm:$0xff]
  %v23 = vld [vmem:[%s1 + $0x38] sm:$0xff]
  %v24 = vld [vmem:[%s1 + $0x40] sm:$0xff]
  %v25 = vld [vmem:[%s1 + $0x48] sm:$0xff]
  %v26 = vld [vmem:[%s1 + $0x50] sm:$0xff]
  %v27 = vld [vmem:[%s1 + $0x58] sm:$0xff]
  %v28 = vld [vmem:[%s1 + $0x60] sm:$0xff]
  %v29 = vld [vmem:[%s1 + $0x68] sm:$0xff]
  %v30 = vld [vmem:[%s1 + $0x70] sm:$0xff]
  %v31 = vld [vmem:[%s1 + $0x78] sm:$0xff]
  %v32 = vld [vmem:[%s1 + $0x80] sm:$0xff]
  %v33 = vld [vmem:[%s1 + $0x88] sm:$0xff]
  %v34 = vld [vmem:[%s1 + $0x90] sm:$0xff]
  %v35 = vld [vmem:[%s1 + $0x98] sm:$0xff]
  %v36 = vld [vmem:[%s1 + $0xa0] sm:$0xff]
  %v37 = vld [vmem:[%s1 + $0xa8] sm:$0xff]
  %v38 = vld [vmem:[%s1 + $0xb0] sm:$0xff]
  %v39 = vld [vmem:[%s1 + $0xb8] sm:$0xff]
  %v40 = vld [vmem:[%s1 + $0xc0] sm:$0xff]
  %v41 = vld [vmem:[%s1 + $0xc8] sm:$0xff]
  %v42 = vld [vmem:[%s1 + $0xd0] sm:$0xff]
  %v43 = vld [vmem:[%s1 + $0xd8] sm:$0xff]
  %v44 = vld [vmem:[%s1 + $0xe0] sm:$0xff]
  %v45 = vld [vmem:[%s1 + $0xe8] sm:$0xff]
  %v46 = vld [vmem:[%s1 + $0xf0] sm:$0xff]
  %v47 = vld [vmem:[%s1 + $0xf8] sm:$0xff]
  %v48 = vld [vmem:[%s1 + $0x100] sm:$0xff]
  %v49 = vld [vmem:[%s1 + $0x108] sm:$0xff]
  %v50 = vld [vmem:[%s1 + $0x110] sm:$0xff]
  %v51 = vld [vmem:[%s1 + $0x118] sm:$0xff]
  %v52 = vld [vmem:[%s1 + $0x120] sm:$0xff]
  %v53 = vld [vmem:[%s1 + $0x128] sm:$0xff]
  %v54 = vld [vmem:[%s1 + $0x130] sm:$0xff]
  %v55 = vld [vmem:[%s1 + $0x138] sm:$0xff]
  %v56 = vld [vmem:[%s1 + $0x140] sm:$0xff]
  %v57 = vld [vmem:[%s1 + $0x148] sm:$0xff]
  %v58 = vld [vmem:[%s1 + $0x150] sm:$0xff]
  %v59 = vld [vmem:[%s1 + $0x158] sm:$0xff]
  %v60 = vld [vmem:[%s1 + $0x160] sm:$0xff]
  %v61 = vld [vmem:[%s1 + $0x168] sm:$0xff]
  %v62 = vld [vmem:[%s1 + $0x170] sm:$0xff]
  %v63 = vld [vmem:[%s1 + $0x178] sm:$0xff]
  %v64 = vld [vmem:[%s1 + $0x180] sm:$0xff]
  %v65 = vld [vmem:[%s1 + $0x188] sm:$0xff]
  %v66 = vld [vmem:[%s1 + $0x190] sm:$0xff]
  %v67 = vld [vmem:[%s1 + $0x198] sm:$0xff]
  %v68 = vld [vmem:[%s1 + $0x1a0] sm:$0xff]
  %v69 = vld [vmem:[%s1 + $0x1a8] sm:$0xff]
  %v70 = vld [vmem:[%s1 + $0x1b0] sm:$0xff]
  %v71 = vld [vmem:[%s1 + $0x1b8] sm:$0xff]
  %v72 = vld [vmem:[%s1 + $0x1c0] sm:$0xff]
  %v73 = vld [vmem:[%s1 + $0x1c8] sm:$0xff]
  %v74 = vld [vmem:[%s1 + $0x1d0] sm:$0xff]
  %v75 = vld [vmem:[%s1 + $0x1d8] sm:$0xff]
  %v76 = vld [vmem:[%s1 + $0x1e0] sm:$0xff]
  %v77 = vld [vmem:[%s1 + $0x1e8] sm:$0xff]
  %v78 = vld [vmem:[%s1 + $0x1f0] sm:$0xff]
  %v79 = vld [vmem:[%s1 + $0x1f8] sm:$0xff]
  %v80 = vld [vmem:[%s1 + $0x200] sm:$0xff]
  %v81 = vld [vmem:[%s1 + $0x208] sm:$0xff]
  %v82 = vld [vmem:[%s1 + $0x210] sm:$0xff]
  %v83 = vld [vmem:[%s1 + $0x218] sm:$0xff]
  %v84 = vld [vmem:[%s1 + $0x220] sm:$0xff]
  %v85 = vld [vmem:[%s1 + $0x228] sm:$0xff]
  %v86 = vld [vmem:[%s1 + $0x230] sm:$0xff]
  %v87 = vld [vmem:[%s1 + $0x238] sm:$0xff]
  %v88 = vld [vmem:[%s2] sm:$0xff]
  %v89 = vld [vmem:[%s2 + $0x8] sm:$0xff]
  %v92 = vperm.slane %v88, 0
  %v93 = vperm.slane %v88, 1
  %v94 = vperm.slane %v88, 2
  %v95 = vperm.slane %v88, 3
  %v96 = vperm.slane %v88, 4
  %v97 = vperm.slane %v88, 5
  %v98 = vperm.slane %v88, 6
  %v99 = vperm.slane %v88, 7
  %v100 = vperm.slane %v89, 0
  %v101 = vperm.slane %v89, 1
  %v102 = vperm.slane %v89, 2
  %v103 = vperm.slane %v89, 3
  %v104 = vperm.slane %v89, 4
  %v105 = vperm.slane %v89, 5
  %v106 = vperm.slane %v89, 6
  %v107 = vperm.slane %v89, 7
  %v196 = vunpack.c.l.b16 %v16
  %v197 = vunpack.c.h.b16 %v16
  %v198 = vunpack.c.l.b16 %v17
  %v199 = vunpack.c.h.b16 %v17
  %v200 = vunpack.c.l.b16 %v18
  %v201 = vunpack.c.h.b16 %v18
  %v202 = vunpack.c.l.b16 %v19
  %v203 = vunpack.c.h.b16 %v19
  %v204 = vunpack.c.l.b16 %v20
  %v205 = vunpack.c.h.b16 %v20
  %v206 = vunpack.c.l.b16 %v21
  %v207 = vunpack.c.h.b16 %v21
  %v208 = vunpack.c.l.b16 %v22
  %v209 = vunpack.c.h.b16 %v22
  %v210 = vunpack.c.l.b16 %v23
  %v211 = vunpack.c.h.b16 %v23
  %v212 = vunpack.c.l.b16 %v24
  %v213 = vunpack.c.h.b16 %v24
  %v214 = vunpack.c.l.b16 %v25
  %v215 = vunpack.c.h.b16 %v25
  %v216 = vunpack.c.l.b16 %v26
  %v217 = vunpack.c.h.b16 %v26
  %v218 = vunpack.c.l.b16 %v27
  %v219 = vunpack.c.h.b16 %v27
  %v220 = vunpack.c.l.b16 %v28
  %v221 = vunpack.c.h.b16 %v28
  %v222 = vunpack.c.l.b16 %v29
  %v223 = vunpack.c.h.b16 %v29
  %v224 = vunpack.c.l.b16 %v30
  %v225 = vunpack.c.h.b16 %v30
  %v226 = vunpack.c.l.b16 %v31
  %v227 = vunpack.c.h.b16 %v31
  %v228 = vunpack.c.l.b16 %v32
  %v229 = vunpack.c.h.b16 %v32
  %v230 = vunpack.c.l.b16 %v33
  %v231 = vunpack.c.h.b16 %v33
  %v232 = vunpack.c.l.b16 %v34
  %v233 = vunpack.c.h.b16 %v34
  %v234 = vunpack.c.l.b16 %v35
  %v235 = vunpack.c.h.b16 %v35
  %v236 = vunpack.c.l.b16 %v36
  %v237 = vunpack.c.h.b16 %v36
  %v238 = vunpack.c.l.b16 %v37
  %v239 = vunpack.c.h.b16 %v37
  %v240 = vunpack.c.l.b16 %v38
  %v241 = vunpack.c.h.b16 %v38
  %v242 = vunpack.c.l.b16 %v39
  %v243 = vunpack.c.h.b16 %v39
  %v244 = vunpack.c.l.b16 %v40
  %v245 = vunpack.c.h.b16 %v40
  %v246 = vunpack.c.l.b16 %v41
  %v247 = vunpack.c.h.b16 %v41
  %v248 = vunpack.c.l.b16 %v42
  %v249 = vunpack.c.h.b16 %v42
  %v250 = vunpack.c.l.b16 %v43
  %v251 = vunpack.c.h.b16 %v43
  %v252 = vunpack.c.l.b16 %v44
  %v253 = vunpack.c.h.b16 %v44
  %v254 = vunpack.c.l.b16 %v45
  %v255 = vunpack.c.h.b16 %v45
  %v256 = vunpack.c.l.b16 %v46
  %v257 = vunpack.c.h.b16 %v46
  %v258 = vunpack.c.l.b16 %v47
  %v259 = vunpack.c.h.b16 %v47
  %v260 = vunpack.c.l.b16 %v48
  %v261 = vunpack.c.h.b16 %v48
  %v262 = vunpack.c.l.b16 %v49
  %v263 = vunpack.c.h.b16 %v49
  %v264 = vunpack.c.l.b16 %v50
  %v265 = vunpack.c.h.b16 %v50
  %v266 = vunpack.c.l.b16 %v51
  %v267 = vunpack.c.h.b16 %v51
  %v268 = vunpack.c.l.b16 %v52
  %v269 = vunpack.c.h.b16 %v52
  %v270 = vunpack.c.l.b16 %v53
  %v271 = vunpack.c.h.b16 %v53
  %v272 = vunpack.c.l.b16 %v54
  %v273 = vunpack.c.h.b16 %v54
  %v274 = vunpack.c.l.b16 %v55
  %v275 = vunpack.c.h.b16 %v55
  %v276 = vunpack.c.l.b16 %v56
  %v277 = vunpack.c.h.b16 %v56
  %v278 = vunpack.c.l.b16 %v57
  %v279 = vunpack.c.h.b16 %v57
  %v280 = vunpack.c.l.b16 %v58
  %v281 = vunpack.c.h.b16 %v58
  %v282 = vunpack.c.l.b16 %v59
  %v283 = vunpack.c.h.b16 %v59
  %v284 = vunpack.c.l.b16 %v60
  %v285 = vunpack.c.h.b16 %v60
  %v286 = vunpack.c.l.b16 %v61
  %v287 = vunpack.c.h.b16 %v61
  %v288 = vunpack.c.l.b16 %v62
  %v289 = vunpack.c.h.b16 %v62
  %v290 = vunpack.c.l.b16 %v63
  %v291 = vunpack.c.h.b16 %v63
  %v292 = vunpack.c.l.b16 %v64
  %v293 = vunpack.c.h.b16 %v64
  %v294 = vunpack.c.l.b16 %v65
  %v295 = vunpack.c.h.b16 %v65
  %v296 = vunpack.c.l.b16 %v66
  %v297 = vunpack.c.h.b16 %v66
  %v298 = vunpack.c.l.b16 %v67
  %v299 = vunpack.c.h.b16 %v67
  %v300 = vunpack.c.l.b16 %v68
  %v301 = vunpack.c.h.b16 %v68
  %v302 = vunpack.c.l.b16 %v69
  %v303 = vunpack.c.h.b16 %v69
  %v304 = vunpack.c.l.b16 %v70
  %v305 = vunpack.c.h.b16 %v70
  %v306 = vunpack.c.l.b16 %v71
  %v307 = vunpack.c.h.b16 %v71
  %v308 = vunpack.c.l.b16 %v72
  %v309 = vunpack.c.h.b16 %v72
  %v310 = vunpack.c.l.b16 %v73
  %v311 = vunpack.c.h.b16 %v73
  %v312 = vunpack.c.l.b16 %v74
  %v313 = vunpack.c.h.b16 %v74
  %v314 = vunpack.c.l.b16 %v75
  %v315 = vunpack.c.h.b16 %v75
  %v316 = vunpack.c.l.b16 %v76
  %v317 = vunpack.c.h.b16 %v76
  %v318 = vunpack.c.l.b16 %v77
  %v319 = vunpack.c.h.b16 %v77
  %v320 = vunpack.c.l.b16 %v78
  %v321 = vunpack.c.h.b16 %v78
  %v322 = vunpack.c.l.b16 %v79
  %v323 = vunpack.c.h.b16 %v79
  %v324 = vunpack.c.l.b16 %v80
  %v325 = vunpack.c.h.b16 %v80
  %v326 = vunpack.c.l.b16 %v81
  %v327 = vunpack.c.h.b16 %v81
  %v328 = vunpack.c.l.b16 %v82
  %v329 = vunpack.c.h.b16 %v82
  %v330 = vunpack.c.l.b16 %v83
  %v331 = vunpack.c.h.b16 %v83
  %v332 = vunpack.c.l.b16 %v84
  %v333 = vunpack.c.h.b16 %v84
  %v334 = vunpack.c.l.b16 %v85
  %v335 = vunpack.c.h.b16 %v85
  %v336 = vunpack.c.l.b16 %v86
  %v337 = vunpack.c.h.b16 %v86
  %v338 = vunpack.c.l.b16 %v87
  %v339 = vunpack.c.h.b16 %v87
  %v340 = vpack.c.b16 %v212, %v196
  %v341 = vpack.c.b16 %v213, %v197
  %v342 = vpack.c.b16 %v214, %v198
  %v343 = vpack.c.b16 %v215, %v199
  %v344 = vpack.c.b16 %v216, %v200
  %v345 = vpack.c.b16 %v217, %v201
  %v346 = vpack.c.b16 %v218, %v202
  %v347 = vpack.c.b16 %v219, %v203
  %v348 = vpack.c.b16 %v220, %v204
  %v349 = vpack.c.b16 %v221, %v205
  %v350 = vpack.c.b16 %v222, %v206
  %v351 = vpack.c.b16 %v223, %v207
  %v352 = vpack.c.b16 %v224, %v208
  %v353 = vpack.c.b16 %v225, %v209
  %v354 = vpack.c.b16 %v226, %v210
  %v355 = vpack.c.b16 %v227, %v211
  %v356 = vpack.c.b16 %v244, %v228
  %v357 = vpack.c.b16 %v245, %v229
  %v358 = vpack.c.b16 %v246, %v230
  %v359 = vpack.c.b16 %v247, %v231
  %v360 = vpack.c.b16 %v248, %v232
  %v361 = vpack.c.b16 %v249, %v233
  %v362 = vpack.c.b16 %v250, %v234
  %v363 = vpack.c.b16 %v251, %v235
  %v364 = vpack.c.b16 %v252, %v236
  %v365 = vpack.c.b16 %v253, %v237
  %v366 = vpack.c.b16 %v254, %v238
  %v367 = vpack.c.b16 %v255, %v239
  %v368 = vpack.c.b16 %v256, %v240
  %v369 = vpack.c.b16 %v257, %v241
  %v370 = vpack.c.b16 %v258, %v242
  %v371 = vpack.c.b16 %v259, %v243
  %v372 = vpack.c.b16 %v276, %v260
  %v373 = vpack.c.b16 %v277, %v261
  %v374 = vpack.c.b16 %v278, %v262
  %v375 = vpack.c.b16 %v279, %v263
  %v376 = vpack.c.b16 %v280, %v264
  %v377 = vpack.c.b16 %v281, %v265
  %v378 = vpack.c.b16 %v282, %v266
  %v379 = vpack.c.b16 %v283, %v267
  %v380 = vpack.c.b16 %v284, %v268
  %v381 = vpack.c.b16 %v285, %v269
  %v382 = vpack.c.b16 %v286, %v270
  %v383 = vpack.c.b16 %v287, %v271
  %v384 = vpack.c.b16 %v288, %v272
  %v385 = vpack.c.b16 %v289, %v273
  %v386 = vpack.c.b16 %v290, %v274
  %v387 = vpack.c.b16 %v291, %v275
  %v388 = vpack.c.b16 %v308, %v292
  %v389 = vpack.c.b16 %v309, %v293
  %v390 = vpack.c.b16 %v310, %v294
  %v391 = vpack.c.b16 %v311, %v295
  %v392 = vpack.c.b16 %v312, %v296
  %v393 = vpack.c.b16 %v313, %v297
  %v394 = vpack.c.b16 %v314, %v298
  %v395 = vpack.c.b16 %v315, %v299
  %v396 = vpack.c.b16 %v316, %v300
  %v397 = vpack.c.b16 %v317, %v301
  %v398 = vpack.c.b16 %v318, %v302
  %v399 = vpack.c.b16 %v319, %v303
  %v400 = vpack.c.b16 %v320, %v304
  %v401 = vpack.c.b16 %v321, %v305
  %v402 = vpack.c.b16 %v322, %v306
  %v403 = vpack.c.b16 %v323, %v307
  %v404 = vpack.c.b16 %v324, %v324
  %v405 = vpack.c.b16 %v325, %v325
  %v406 = vpack.c.b16 %v326, %v326
  %v407 = vpack.c.b16 %v327, %v327
  %v408 = vpack.c.b16 %v328, %v328
  %v409 = vpack.c.b16 %v329, %v329
  %v410 = vpack.c.b16 %v330, %v330
  %v411 = vpack.c.b16 %v331, %v331
  %v412 = vpack.c.b16 %v332, %v332
  %v413 = vpack.c.b16 %v333, %v333
  %v414 = vpack.c.b16 %v334, %v334
  %v415 = vpack.c.b16 %v335, %v335
  %v416 = vpack.c.b16 %v336, %v336
  %v417 = vpack.c.b16 %v337, %v337
  %v418 = vpack.c.b16 %v338, %v338
  %v419 = vpack.c.b16 %v339, %v339
  %vm484 = vcmask 588800
  %v486 = vsel %vm484, %v15, 0
  %vm488 = vcmask 1043456
  %v490 = vsel %vm488, %v404, 0
  %v493 = vsel %vm488, %v405, 0
  %v496 = vsel %vm488, %v406, 0
  %v499 = vsel %vm488, %v407, 0
  %v502 = vsel %vm488, %v408, 0
  %v505 = vsel %vm488, %v409, 0
  %v508 = vsel %vm488, %v410, 0
  %v511 = vsel %vm488, %v411, 0
  %v514 = vsel %vm488, %v412, 0
  %v517 = vsel %vm488, %v413, 0
  %v520 = vsel %vm488, %v414, 0
  %v523 = vsel %vm488, %v415, 0
  %v526 = vsel %vm488, %v416, 0
  %v529 = vsel %vm488, %v417, 0
  %v532 = vsel %vm488, %v418, 0
  %v535 = vsel %vm488, %v419, 0
  %537 = vmatpush.bf16.msra.mxu0 0
  %538 = vmatpush.bf16.msra.mxu0 0
  %539 = vmatpush.bf16.msra.mxu0 0
  %540 = vmatpush.bf16.msra.mxu0 %v490
  %541 = vmatpush.bf16.msra.mxu0 %v388
  %542 = vmatpush.bf16.msra.mxu0 %v372
  %543 = vmatpush.bf16.msra.mxu0 %v356
  %544 = vmatpush.bf16.msra.mxu0 %v340
  %545 = vmatmul.bf16.gmra.mxu0 %v486
  %v546 = vpop.f32.mrf.mxu0
  %v547 = vadd.f32 %v92, %v546
  %v548 = vpop.f32.mrf.mxu0
  %549 = vdwg.mxu0
  %550 = vmatpush.bf16.msra.mxu0 0
  %551 = vmatpush.bf16.msra.mxu0 0
  %552 = vmatpush.bf16.msra.mxu0 0
  %553 = vmatpush.bf16.msra.mxu0 %v493
  %554 = vmatpush.bf16.msra.mxu0 %v389
  %555 = vmatpush.bf16.msra.mxu0 %v373
  %556 = vmatpush.bf16.msra.mxu0 %v357
  %557 = vmatpush.bf16.msra.mxu0 %v341
  %558 = vmatmul.bf16.gmra.mxu0 %v486
  %v559 = vpop.f32.mrf.mxu0
  %v560 = vadd.f32 %v93, %v559
  %v561 = vpop.f32.mrf.mxu0
  %562 = vdwg.mxu0
  %563 = vmatpush.bf16.msra.mxu0 0
  %564 = vmatpush.bf16.msra.mxu0 0
  %565 = vmatpush.bf16.msra.mxu0 0
  %566 = vmatpush.bf16.msra.mxu0 %v496
  %567 = vmatpush.bf16.msra.mxu0 %v390
  %568 = vmatpush.bf16.msra.mxu0 %v374
  %569 = vmatpush.bf16.msra.mxu0 %v358
  %570 = vmatpush.bf16.msra.mxu0 %v342
  %571 = vmatmul.bf16.gmra.mxu0 %v486
  %v572 = vpop.f32.mrf.mxu0
  %v573 = vadd.f32 %v94, %v572
  %v574 = vpop.f32.mrf.mxu0
  %575 = vdwg.mxu0
  %576 = vmatpush.bf16.msra.mxu0 0
  %577 = vmatpush.bf16.msra.mxu0 0
  %578 = vmatpush.bf16.msra.mxu0 0
  %579 = vmatpush.bf16.msra.mxu0 %v499
  %580 = vmatpush.bf16.msra.mxu0 %v391
  %581 = vmatpush.bf16.msra.mxu0 %v375
  %582 = vmatpush.bf16.msra.mxu0 %v359
  %583 = vmatpush.bf16.msra.mxu0 %v343
  %584 = vmatmul.bf16.gmra.mxu0 %v486
  %v585 = vpop.f32.mrf.mxu0
  %v586 = vadd.f32 %v95, %v585
  %v587 = vpop.f32.mrf.mxu0
  %588 = vdwg.mxu0
  %589 = vmatpush.bf16.msra.mxu0 0
  %590 = vmatpush.bf16.msra.mxu0 0
  %591 = vmatpush.bf16.msra.mxu0 0
  %592 = vmatpush.bf16.msra.mxu0 %v502
  %593 = vmatpush.bf16.msra.mxu0 %v392
  %594 = vmatpush.bf16.msra.mxu0 %v376
  %595 = vmatpush.bf16.msra.mxu0 %v360
  %596 = vmatpush.bf16.msra.mxu0 %v344
  %597 = vmatmul.bf16.gmra.mxu0 %v486
  %v598 = vpop.f32.mrf.mxu0
  %v599 = vadd.f32 %v96, %v598
  %v600 = vpop.f32.mrf.mxu0
  %601 = vdwg.mxu0
  %602 = vmatpush.bf16.msra.mxu0 0
  %603 = vmatpush.bf16.msra.mxu0 0
  %604 = vmatpush.bf16.msra.mxu0 0
  %605 = vmatpush.bf16.msra.mxu0 %v505
  %606 = vmatpush.bf16.msra.mxu0 %v393
  %607 = vmatpush.bf16.msra.mxu0 %v377
  %608 = vmatpush.bf16.msra.mxu0 %v361
  %609 = vmatpush.bf16.msra.mxu0 %v345
  %610 = vmatmul.bf16.gmra.mxu0 %v486
  %v611 = vpop.f32.mrf.mxu0
  %v612 = vadd.f32 %v97, %v611
  %v613 = vpop.f32.mrf.mxu0
  %614 = vdwg.mxu0
  %615 = vmatpush.bf16.msra.mxu0 0
  %616 = vmatpush.bf16.msra.mxu0 0
  %617 = vmatpush.bf16.msra.mxu0 0
  %618 = vmatpush.bf16.msra.mxu0 %v508
  %619 = vmatpush.bf16.msra.mxu0 %v394
  %620 = vmatpush.bf16.msra.mxu0 %v378
  %621 = vmatpush.bf16.msra.mxu0 %v362
  %622 = vmatpush.bf16.msra.mxu0 %v346
  %623 = vmatmul.bf16.gmra.mxu0 %v486
  %v624 = vpop.f32.mrf.mxu0
  %v625 = vadd.f32 %v98, %v624
  %v626 = vpop.f32.mrf.mxu0
  %627 = vdwg.mxu0
  %628 = vmatpush.bf16.msra.mxu0 0
  %629 = vmatpush.bf16.msra.mxu0 0
  %630 = vmatpush.bf16.msra.mxu0 0
  %631 = vmatpush.bf16.msra.mxu0 %v511
  %632 = vmatpush.bf16.msra.mxu0 %v395
  %633 = vmatpush.bf16.msra.mxu0 %v379
  %634 = vmatpush.bf16.msra.mxu0 %v363
  %635 = vmatpush.bf16.msra.mxu0 %v347
  %636 = vmatmul.bf16.gmra.mxu0 %v486
  %v637 = vpop.f32.mrf.mxu0
  %v638 = vadd.f32 %v99, %v637
  %v639 = vpop.f32.mrf.mxu0
  %640 = vdwg.mxu0
  %641 = vmatpush.bf16.msra.mxu0 0
  %642 = vmatpush.bf16.msra.mxu0 0
  %643 = vmatpush.bf16.msra.mxu0 0
  %644 = vmatpush.bf16.msra.mxu0 %v514
  %645 = vmatpush.bf16.msra.mxu0 %v396
  %646 = vmatpush.bf16.msra.mxu0 %v380
  %647 = vmatpush.bf16.msra.mxu0 %v364
  %648 = vmatpush.bf16.msra.mxu0 %v348
  %649 = vmatmul.bf16.gmra.mxu0 %v486
  %v650 = vpop.f32.mrf.mxu0
  %v651 = vadd.f32 %v100, %v650
  %v652 = vpop.f32.mrf.mxu0
  %653 = vdwg.mxu0
  %654 = vmatpush.bf16.msra.mxu0 0
  %655 = vmatpush.bf16.msra.mxu0 0
  %656 = vmatpush.bf16.msra.mxu0 0
  %657 = vmatpush.bf16.msra.mxu0 %v517
  %658 = vmatpush.bf16.msra.mxu0 %v397
  %659 = vmatpush.bf16.msra.mxu0 %v381
  %660 = vmatpush.bf16.msra.mxu0 %v365
  %661 = vmatpush.bf16.msra.mxu0 %v349
  %662 = vmatmul.bf16.gmra.mxu0 %v486
  %v663 = vpop.f32.mrf.mxu0
  %v664 = vadd.f32 %v101, %v663
  %v665 = vpop.f32.mrf.mxu0
  %666 = vdwg.mxu0
  %667 = vmatpush.bf16.msra.mxu0 0
  %668 = vmatpush.bf16.msra.mxu0 0
  %669 = vmatpush.bf16.msra.mxu0 0
  %670 = vmatpush.bf16.msra.mxu0 %v520
  %671 = vmatpush.bf16.msra.mxu0 %v398
  %672 = vmatpush.bf16.msra.mxu0 %v382
  %673 = vmatpush.bf16.msra.mxu0 %v366
  %674 = vmatpush.bf16.msra.mxu0 %v350
  %675 = vmatmul.bf16.gmra.mxu0 %v486
  %v676 = vpop.f32.mrf.mxu0
  %v677 = vadd.f32 %v102, %v676
  %v678 = vpop.f32.mrf.mxu0
  %679 = vdwg.mxu0
  %680 = vmatpush.bf16.msra.mxu0 0
  %681 = vmatpush.bf16.msra.mxu0 0
  %682 = vmatpush.bf16.msra.mxu0 0
  %683 = vmatpush.bf16.msra.mxu0 %v523
  %684 = vmatpush.bf16.msra.mxu0 %v399
  %685 = vmatpush.bf16.msra.mxu0 %v383
  %686 = vmatpush.bf16.msra.mxu0 %v367
  %687 = vmatpush.bf16.msra.mxu0 %v351
  %688 = vmatmul.bf16.gmra.mxu0 %v486
  %v689 = vpop.f32.mrf.mxu0
  %v690 = vadd.f32 %v103, %v689
  %v691 = vpop.f32.mrf.mxu0
  %692 = vdwg.mxu0
  %693 = vmatpush.bf16.msra.mxu0 0
  %694 = vmatpush.bf16.msra.mxu0 0
  %695 = vmatpush.bf16.msra.mxu0 0
  %696 = vmatpush.bf16.msra.mxu0 %v526
  %697 = vmatpush.bf16.msra.mxu0 %v400
  %698 = vmatpush.bf16.msra.mxu0 %v384
  %699 = vmatpush.bf16.msra.mxu0 %v368
  %700 = vmatpush.bf16.msra.mxu0 %v352
  %701 = vmatmul.bf16.gmra.mxu0 %v486
  %v702 = vpop.f32.mrf.mxu0
  %v703 = vadd.f32 %v104, %v702
  %v704 = vpop.f32.mrf.mxu0
  %705 = vdwg.mxu0
  %706 = vmatpush.bf16.msra.mxu0 0
  %707 = vmatpush.bf16.msra.mxu0 0
  %708 = vmatpush.bf16.msra.mxu0 0
  %709 = vmatpush.bf16.msra.mxu0 %v529
  %710 = vmatpush.bf16.msra.mxu0 %v401
  %711 = vmatpush.bf16.msra.mxu0 %v385
  %712 = vmatpush.bf16.msra.mxu0 %v369
  %713 = vmatpush.bf16.msra.mxu0 %v353
  %714 = vmatmul.bf16.gmra.mxu0 %v486
  %v715 = vpop.f32.mrf.mxu0
  %v716 = vadd.f32 %v105, %v715
  %v717 = vpop.f32.mrf.mxu0
  %718 = vdwg.mxu0
  %719 = vmatpush.bf16.msra.mxu0 0
  %720 = vmatpush.bf16.msra.mxu0 0
  %721 = vmatpush.bf16.msra.mxu0 0
  %722 = vmatpush.bf16.msra.mxu0 %v532
  %723 = vmatpush.bf16.msra.mxu0 %v402
  %724 = vmatpush.bf16.msra.mxu0 %v386
  %725 = vmatpush.bf16.msra.mxu0 %v370
  %726 = vmatpush.bf16.msra.mxu0 %v354
  %727 = vmatmul.bf16.gmra.mxu0 %v486
  %v728 = vpop.f32.mrf.mxu0
  %v729 = vadd.f32 %v106, %v728
  %v730 = vpop.f32.mrf.mxu0
  %731 = vdwg.mxu0
  %732 = vmatpush.bf16.msra.mxu0 0
  %733 = vmatpush.bf16.msra.mxu0 0
  %734 = vmatpush.bf16.msra.mxu0 0
  %735 = vmatpush.bf16.msra.mxu0 %v535
  %736 = vmatpush.bf16.msra.mxu0 %v403
  %737 = vmatpush.bf16.msra.mxu0 %v387
  %738 = vmatpush.bf16.msra.mxu0 %v371
  %739 = vmatpush.bf16.msra.mxu0 %v355
  %740 = vmatmul.bf16.gmra.mxu0 %v486
  %v741 = vpop.f32.mrf.mxu0
  %v742 = vadd.f32 %v107, %v741
  %v743 = vpop.f32.mrf.mxu0
  %744 = vdwg.mxu0
  %v745 = vxor.u32 %v547, 2147483648
  %v746 = vxor.u32 %v560, 2147483648
  %v747 = vxor.u32 %v573, 2147483648
  %v748 = vxor.u32 %v586, 2147483648
  %v749 = vxor.u32 %v599, 2147483648
  %v750 = vxor.u32 %v612, 2147483648
  %v751 = vxor.u32 %v625, 2147483648
  %v752 = vxor.u32 %v638, 2147483648
  %v753 = vxor.u32 %v651, 2147483648
  %v754 = vxor.u32 %v664, 2147483648
  %v755 = vxor.u32 %v677, 2147483648
  %v756 = vxor.u32 %v690, 2147483648
  %v757 = vxor.u32 %v703, 2147483648
  %v758 = vxor.u32 %v716, 2147483648
  %v759 = vxor.u32 %v729, 2147483648
  %v760 = vxor.u32 %v742, 2147483648
  %v761 = vmul.f32 %v745, 1.442695
  %v762 = vpow.pop %v761
  %v763 = vmul.f32 %v746, 1.442695
  %v764 = vpow.pop %v763
  %v765 = vmul.f32 %v747, 1.442695
  %v766 = vpow.pop %v765
  %v767 = vmul.f32 %v748, 1.442695
  %v768 = vpow.pop %v767
  %v769 = vmul.f32 %v749, 1.442695
  %v770 = vpow.pop %v769
  %v771 = vmul.f32 %v750, 1.442695
  %v772 = vpow.pop %v771
  %v773 = vmul.f32 %v751, 1.442695
  %v774 = vpow.pop %v773
  %v775 = vmul.f32 %v752, 1.442695
  %v776 = vpow.pop %v775
  %v777 = vmul.f32 %v753, 1.442695
  %v778 = vpow.pop %v777
  %v779 = vmul.f32 %v754, 1.442695
  %v780 = vpow.pop %v779
  %v781 = vmul.f32 %v755, 1.442695
  %v782 = vpow.pop %v781
  %v783 = vmul.f32 %v756, 1.442695
  %v784 = vpow.pop %v783
  %v785 = vmul.f32 %v757, 1.442695
  %v786 = vpow.pop %v785
  %v787 = vmul.f32 %v758, 1.442695
  %v788 = vpow.pop %v787
  %v789 = vmul.f32 %v759, 1.442695
  %v790 = vpow.pop %v789
  %v791 = vmul.f32 %v760, 1.442695
  %v792 = vpow.pop %v791
  %v793 = vadd.f32 %v762, 1.0
  %v794 = vadd.f32 %v764, 1.0
  %v795 = vadd.f32 %v766, 1.0
  %v796 = vadd.f32 %v768, 1.0
  %v797 = vadd.f32 %v770, 1.0
  %v798 = vadd.f32 %v772, 1.0
  %v799 = vadd.f32 %v774, 1.0
  %v800 = vadd.f32 %v776, 1.0
  %v801 = vadd.f32 %v778, 1.0
  %v802 = vadd.f32 %v780, 1.0
  %v803 = vadd.f32 %v782, 1.0
  %v804 = vadd.f32 %v784, 1.0
  %v805 = vadd.f32 %v786, 1.0
  %v806 = vadd.f32 %v788, 1.0
  %v807 = vadd.f32 %v790, 1.0
  %v808 = vadd.f32 %v792, 1.0
  %v809 = vrcp.pop %v793
  %v810 = vmul.f32 %v793, %v809
  %v811 = vsub.f32 1.0, %v810
  %v812 = vmul.f32 %v809, %v811
  %v813 = vadd.f32 %v809, %v812
  %vm814 = vweird.f32 %v793
  %vm815 = vweird.f32 %v809
  %vm816 = vmor %vm814, %vm815
  %v817 = vsel %vm816, %v809, %v813
  %v818 = vand.u32 2147483647, %v793
  %vm819 = vcmp.eq.f32.partialorder %v818, 8.507059e+37
  %v820 = vand.u32 %v793, 2147483648
  %v821 = vor.u32 1.1754944e-38, %v820
  %v822 = vsel %vm819, %v821, %v817
  %v823 = vmul.f32 1.0, %v822
  %v824 = vrcp.pop %v794
  %v825 = vmul.f32 %v794, %v824
  %v826 = vsub.f32 1.0, %v825
  %v827 = vmul.f32 %v824, %v826
  %v828 = vadd.f32 %v824, %v827
  %vm829 = vweird.f32 %v794
  %vm830 = vweird.f32 %v824
  %vm831 = vmor %vm829, %vm830
  %v832 = vsel %vm831, %v824, %v828
  %v833 = vand.u32 2147483647, %v794
  %vm834 = vcmp.eq.f32.partialorder %v833, 8.507059e+37
  %v835 = vand.u32 %v794, 2147483648
  %v836 = vor.u32 1.1754944e-38, %v835
  %v837 = vsel %vm834, %v836, %v832
  %v838 = vmul.f32 1.0, %v837
  %v839 = vrcp.pop %v795
  %v840 = vmul.f32 %v795, %v839
  %v841 = vsub.f32 1.0, %v840
  %v842 = vmul.f32 %v839, %v841
  %v843 = vadd.f32 %v839, %v842
  %vm844 = vweird.f32 %v795
  %vm845 = vweird.f32 %v839
  %vm846 = vmor %vm844, %vm845
  %v847 = vsel %vm846, %v839, %v843
  %v848 = vand.u32 2147483647, %v795
  %vm849 = vcmp.eq.f32.partialorder %v848, 8.507059e+37
  %v850 = vand.u32 %v795, 2147483648
  %v851 = vor.u32 1.1754944e-38, %v850
  %v852 = vsel %vm849, %v851, %v847
  %v853 = vmul.f32 1.0, %v852
  %v854 = vrcp.pop %v796
  %v855 = vmul.f32 %v796, %v854
  %v856 = vsub.f32 1.0, %v855
  %v857 = vmul.f32 %v854, %v856
  %v858 = vadd.f32 %v854, %v857
  %vm859 = vweird.f32 %v796
  %vm860 = vweird.f32 %v854
  %vm861 = vmor %vm859, %vm860
  %v862 = vsel %vm861, %v854, %v858
  %v863 = vand.u32 2147483647, %v796
  %vm864 = vcmp.eq.f32.partialorder %v863, 8.507059e+37
  %v865 = vand.u32 %v796, 2147483648
  %v866 = vor.u32 1.1754944e-38, %v865
  %v867 = vsel %vm864, %v866, %v862
  %v868 = vmul.f32 1.0, %v867
  %v869 = vrcp.pop %v797
  %v870 = vmul.f32 %v797, %v869
  %v871 = vsub.f32 1.0, %v870
  %v872 = vmul.f32 %v869, %v871
  %v873 = vadd.f32 %v869, %v872
  %vm874 = vweird.f32 %v797
  %vm875 = vweird.f32 %v869
  %vm876 = vmor %vm874, %vm875
  %v877 = vsel %vm876, %v869, %v873
  %v878 = vand.u32 2147483647, %v797
  %vm879 = vcmp.eq.f32.partialorder %v878, 8.507059e+37
  %v880 = vand.u32 %v797, 2147483648
  %v881 = vor.u32 1.1754944e-38, %v880
  %v882 = vsel %vm879, %v881, %v877
  %v883 = vmul.f32 1.0, %v882
  %v884 = vrcp.pop %v798
  %v885 = vmul.f32 %v798, %v884
  %v886 = vsub.f32 1.0, %v885
  %v887 = vmul.f32 %v884, %v886
  %v888 = vadd.f32 %v884, %v887
  %vm889 = vweird.f32 %v798
  %vm890 = vweird.f32 %v884
  %vm891 = vmor %vm889, %vm890
  %v892 = vsel %vm891, %v884, %v888
  %v893 = vand.u32 2147483647, %v798
  %vm894 = vcmp.eq.f32.partialorder %v893, 8.507059e+37
  %v895 = vand.u32 %v798, 2147483648
  %v896 = vor.u32 1.1754944e-38, %v895
  %v897 = vsel %vm894, %v896, %v892
  %v898 = vmul.f32 1.0, %v897
  %v899 = vrcp.pop %v799
  %v900 = vmul.f32 %v799, %v899
  %v901 = vsub.f32 1.0, %v900
  %v902 = vmul.f32 %v899, %v901
  %v903 = vadd.f32 %v899, %v902
  %vm904 = vweird.f32 %v799
  %vm905 = vweird.f32 %v899
  %vm906 = vmor %vm904, %vm905
  %v907 = vsel %vm906, %v899, %v903
  %v908 = vand.u32 2147483647, %v799
  %vm909 = vcmp.eq.f32.partialorder %v908, 8.507059e+37
  %v910 = vand.u32 %v799, 2147483648
  %v911 = vor.u32 1.1754944e-38, %v910
  %v912 = vsel %vm909, %v911, %v907
  %v913 = vmul.f32 1.0, %v912
  %v914 = vrcp.pop %v800
  %v915 = vmul.f32 %v800, %v914
  %v916 = vsub.f32 1.0, %v915
  %v917 = vmul.f32 %v914, %v916
  %v918 = vadd.f32 %v914, %v917
  %vm919 = vweird.f32 %v800
  %vm920 = vweird.f32 %v914
  %vm921 = vmor %vm919, %vm920
  %v922 = vsel %vm921, %v914, %v918
  %v923 = vand.u32 2147483647, %v800
  %vm924 = vcmp.eq.f32.partialorder %v923, 8.507059e+37
  %v925 = vand.u32 %v800, 2147483648
  %v926 = vor.u32 1.1754944e-38, %v925
  %v927 = vsel %vm924, %v926, %v922
  %v928 = vmul.f32 1.0, %v927
  %v929 = vrcp.pop %v801
  %v930 = vmul.f32 %v801, %v929
  %v931 = vsub.f32 1.0, %v930
  %v932 = vmul.f32 %v929, %v931
  %v933 = vadd.f32 %v929, %v932
  %vm934 = vweird.f32 %v801
  %vm935 = vweird.f32 %v929
  %vm936 = vmor %vm934, %vm935
  %v937 = vsel %vm936, %v929, %v933
  %v938 = vand.u32 2147483647, %v801
  %vm939 = vcmp.eq.f32.partialorder %v938, 8.507059e+37
  %v940 = vand.u32 %v801, 2147483648
  %v941 = vor.u32 1.1754944e-38, %v940
  %v942 = vsel %vm939, %v941, %v937
  %v943 = vmul.f32 1.0, %v942
  %v944 = vrcp.pop %v802
  %v945 = vmul.f32 %v802, %v944
  %v946 = vsub.f32 1.0, %v945
  %v947 = vmul.f32 %v944, %v946
  %v948 = vadd.f32 %v944, %v947
  %vm949 = vweird.f32 %v802
  %vm950 = vweird.f32 %v944
  %vm951 = vmor %vm949, %vm950
  %v952 = vsel %vm951, %v944, %v948
  %v953 = vand.u32 2147483647, %v802
  %vm954 = vcmp.eq.f32.partialorder %v953, 8.507059e+37
  %v955 = vand.u32 %v802, 2147483648
  %v956 = vor.u32 1.1754944e-38, %v955
  %v957 = vsel %vm954, %v956, %v952
  %v958 = vmul.f32 1.0, %v957
  %v959 = vrcp.pop %v803
  %v960 = vmul.f32 %v803, %v959
  %v961 = vsub.f32 1.0, %v960
  %v962 = vmul.f32 %v959, %v961
  %v963 = vadd.f32 %v959, %v962
  %vm964 = vweird.f32 %v803
  %vm965 = vweird.f32 %v959
  %vm966 = vmor %vm964, %vm965
  %v967 = vsel %vm966, %v959, %v963
  %v968 = vand.u32 2147483647, %v803
  %vm969 = vcmp.eq.f32.partialorder %v968, 8.507059e+37
  %v970 = vand.u32 %v803, 2147483648
  %v971 = vor.u32 1.1754944e-38, %v970
  %v972 = vsel %vm969, %v971, %v967
  %v973 = vmul.f32 1.0, %v972
  %v974 = vrcp.pop %v804
  %v975 = vmul.f32 %v804, %v974
  %v976 = vsub.f32 1.0, %v975
  %v977 = vmul.f32 %v974, %v976
  %v978 = vadd.f32 %v974, %v977
  %vm979 = vweird.f32 %v804
  %vm980 = vweird.f32 %v974
  %vm981 = vmor %vm979, %vm980
  %v982 = vsel %vm981, %v974, %v978
  %v983 = vand.u32 2147483647, %v804
  %vm984 = vcmp.eq.f32.partialorder %v983, 8.507059e+37
  %v985 = vand.u32 %v804, 2147483648
  %v986 = vor.u32 1.1754944e-38, %v985
  %v987 = vsel %vm984, %v986, %v982
  %v988 = vmul.f32 1.0, %v987
  %v989 = vrcp.pop %v805
  %v990 = vmul.f32 %v805, %v989
  %v991 = vsub.f32 1.0, %v990
  %v992 = vmul.f32 %v989, %v991
  %v993 = vadd.f32 %v989, %v992
  %vm994 = vweird.f32 %v805
  %vm995 = vweird.f32 %v989
  %vm996 = vmor %vm994, %vm995
  %v997 = vsel %vm996, %v989, %v993
  %v998 = vand.u32 2147483647, %v805
  %vm999 = vcmp.eq.f32.partialorder %v998, 8.507059e+37
  %v1000 = vand.u32 %v805, 2147483648
  %v1001 = vor.u32 1.1754944e-38, %v1000
  %v1002 = vsel %vm999, %v1001, %v997
  %v1003 = vmul.f32 1.0, %v1002
  %v1004 = vrcp.pop %v806
  %v1005 = vmul.f32 %v806, %v1004
  %v1006 = vsub.f32 1.0, %v1005
  %v1007 = vmul.f32 %v1004, %v1006
  %v1008 = vadd.f32 %v1004, %v1007
  %vm1009 = vweird.f32 %v806
  %vm1010 = vweird.f32 %v1004
  %vm1011 = vmor %vm1009, %vm1010
  %v1012 = vsel %vm1011, %v1004, %v1008
  %v1013 = vand.u32 2147483647, %v806
  %vm1014 = vcmp.eq.f32.partialorder %v1013, 8.507059e+37
  %v1015 = vand.u32 %v806, 2147483648
  %v1016 = vor.u32 1.1754944e-38, %v1015
  %v1017 = vsel %vm1014, %v1016, %v1012
  %v1018 = vmul.f32 1.0, %v1017
  %v1019 = vrcp.pop %v807
  %v1020 = vmul.f32 %v807, %v1019
  %v1021 = vsub.f32 1.0, %v1020
  %v1022 = vmul.f32 %v1019, %v1021
  %v1023 = vadd.f32 %v1019, %v1022
  %vm1024 = vweird.f32 %v807
  %vm1025 = vweird.f32 %v1019
  %vm1026 = vmor %vm1024, %vm1025
  %v1027 = vsel %vm1026, %v1019, %v1023
  %v1028 = vand.u32 2147483647, %v807
  %vm1029 = vcmp.eq.f32.partialorder %v1028, 8.507059e+37
  %v1030 = vand.u32 %v807, 2147483648
  %v1031 = vor.u32 1.1754944e-38, %v1030
  %v1032 = vsel %vm1029, %v1031, %v1027
  %v1033 = vmul.f32 1.0, %v1032
  %v1034 = vrcp.pop %v808
  %v1035 = vmul.f32 %v808, %v1034
  %v1036 = vsub.f32 1.0, %v1035
  %v1037 = vmul.f32 %v1034, %v1036
  %v1038 = vadd.f32 %v1034, %v1037
  %vm1039 = vweird.f32 %v808
  %vm1040 = vweird.f32 %v1034
  %vm1041 = vmor %vm1039, %vm1040
  %v1042 = vsel %vm1041, %v1034, %v1038
  %v1043 = vand.u32 2147483647, %v808
  %vm1044 = vcmp.eq.f32.partialorder %v1043, 8.507059e+37
  %v1045 = vand.u32 %v808, 2147483648
  %v1046 = vor.u32 1.1754944e-38, %v1045
  %v1047 = vsel %vm1044, %v1046, %v1042
  %v1048 = vmul.f32 1.0, %v1047
  %v1065 = vrot.slane %v838, 4
  %v1066 = vrot.slane %v868, 4
  %v1067 = vrot.slane %v898, 4
  %v1068 = vrot.slane %v928, 4
  %v1069 = vrot.slane %v958, 4
  %v1070 = vrot.slane %v988, 4
  %v1071 = vrot.slane %v1018, 4
  %v1072 = vrot.slane %v1048, 4
  %v1073 = vsel %vm488, %v823, %v1065
  %v1074 = vsel %vm488, %v853, %v1066
  %v1075 = vsel %vm488, %v883, %v1067
  %v1076 = vsel %vm488, %v913, %v1068
  %v1077 = vsel %vm488, %v943, %v1069
  %v1078 = vsel %vm488, %v973, %v1070
  %v1079 = vsel %vm488, %v1003, %v1071
  %v1080 = vsel %vm488, %v1033, %v1072
  %1089 = vst [vmem:[%s3] sm:$0xff] %v1073
  %1090 = vst [vmem:[%s3 + $0x8] sm:$0xff] %v1074
  %1091 = vst [vmem:[%s3 + $0x10] sm:$0xff] %v1075
  %1092 = vst [vmem:[%s3 + $0x18] sm:$0xff] %v1076
  %1093 = vst [vmem:[%s3 + $0x20] sm:$0xff] %v1077
  %1094 = vst [vmem:[%s3 + $0x28] sm:$0xff] %v1078
  %1095 = vst [vmem:[%s3 + $0x30] sm:$0xff] %v1079
  %1096 = vst [vmem:[%s3 + $0x38] sm:$0xff] %v1080
  // Predicated region
  $region14: #{decoder_forward.7} parent=0 // pred_check
    _
  $region15: #{decoder_forward.7} parent=0 // pred_check_branch
    %1098 = sbr.rel (0) target = $region17
  $region16: #{decoder_forward.7} parent=0 // pred_region
    _
  $region17: #{decoder_forward.7} parent=0 // pred_fallthru
    _
  // Predicated region
  $region18: #{decoder_forward.7} parent=0 // pred_check
    _
  $region19: #{decoder_forward.7} parent=0 // pred_check_branch
    %1100 = sbr.rel (0) target = $region21
  $region20: #{decoder_forward.7} parent=0 // pred_region
    _
  $region21: #{decoder_forward.7} parent=0 // pred_fallthru
    _

</llo_original>
